<compile_context>
chip_gen: v7x
topology: tpu7x:2x2x1
jax: 0.10.0
libtpu: 0.0.40
codegen_flags: <defaults>
</compile_context>

<pallas_src>
import functools

import jax
import jax.numpy as jnp
from jax.experimental import pallas as pl
from jax.experimental.pallas import tpu as pltpu

LANE = 128


def _round_up(n, m):
    return ((n + m - 1) // m) * m


def _hardswish(x):
    # relu6(x + 3) / 6 * x  — pure VPU ops on the f32 accumulator.
    return jnp.clip(x + 3.0, 0.0, 6.0) * (1.0 / 6.0) * x


def _qnet_kernel(inv_action_dim, mid_p, out_p,
                 s_ref, w1_ref, w2_ref, wh1_ref, wh2_ref, b_ref, o_ref):
    bf16 = jnp.bfloat16
    f32 = jnp.float32

    # Bias slab rows: [b1 | b2 | bh1 | bh2] (zero-padded to a common width).
    b1 = b_ref[0:1, :mid_p]
    b2 = b_ref[1:2, :mid_p]
    bh1 = b_ref[2:3, :4 * mid_p]
    bh2 = b_ref[3:4, :4 * out_p]

    # Shared trunk (bf16 operands, f32 accumulate on the MXU).
    h = jnp.dot(s_ref[...], w1_ref[...], preferred_element_type=f32) + b1
    h = jnp.maximum(h, 0.0)                                      # ReLU (VPU, f32)
    x = jnp.dot(h.astype(bf16), w2_ref[...], preferred_element_type=f32) + b2
    x = _hardswish(x)

    # Both heads, layer 1 fused into one 4*mid_p-wide dot:
    #   columns = [hv1 | ha1 | hv2 | ha2]
    hh = jnp.dot(x.astype(bf16), wh1_ref[...], preferred_element_type=f32) + bh1
    hh = _hardswish(hh)

    # Both heads, layer 2 via one block-diagonal weight:
    #   columns = [val1(replicated) | adv1 | val2(replicated) | adv2]
    y = jnp.dot(hh.astype(bf16), wh2_ref[...], preferred_element_type=f32) + bh2

    def dueling(val, adv):
        # Padded adv columns are exactly zero (zero weight cols + zero bias, and
        # 0 is exact in bf16), so the padded row-sum equals the true sum; divide
        # by the true action_dim.
        adv_mean = jnp.sum(adv, axis=-1, keepdims=True) * inv_action_dim
        return val + adv - adv_mean

    q1 = dueling(y[:, :out_p], y[:, out_p:2 * out_p])
    q2 = dueling(y[:, 2 * out_p:3 * out_p], y[:, 3 * out_p:])
    o_ref[...] = jnp.minimum(q1, q2).astype(o_ref.dtype)


def prepare_qnet_params(params, action_dim):
    """Pad / fuse / replicate / cast the QNetDuelTwin parameters ONCE (off the hot path).

    params: dict with keys w1,b1,w2,b2, wv1,bv1,wv2,bv2, wa1,ba1,wa2,ba2 and the
    second-head variants suffixed "2".  Weights are (in, out) (transposed vs
    PyTorch nn.Linear), biases are (1, out).
    """
    state_dim, mid_dim = params["w1"].shape
    mid_p = _round_up(mid_dim, LANE)
    out_p = _round_up(action_dim, LANE)

    def pad2(a, rows, cols):
        return jnp.pad(a, ((0, rows - a.shape[0]), (0, cols - a.shape[1])))

    w1 = pad2(params["w1"], state_dim, mid_p)
    w2 = pad2(params["w2"], mid_p, mid_p)

    # Fused first head layer: [wv1 | wa1 | wv1b | wa1b]  -> (mid_p, 4*mid_p).
    wh1 = jnp.concatenate(
        [pad2(params["wv1"], mid_p, mid_p), pad2(params["wa1"], mid_p, mid_p),
         pad2(params["wv12"], mid_p, mid_p), pad2(params["wa12"], mid_p, mid_p)],
        axis=1)
    bh1 = jnp.concatenate(
        [pad2(params["bv1"], 1, mid_p), pad2(params["ba1"], 1, mid_p),
         pad2(params["bv12"], 1, mid_p), pad2(params["ba12"], 1, mid_p)],
        axis=1)

    # Fused second head layer: block-diag(wv2_rep, wa2, wv2b_rep, wa2b)
    # -> (4*mid_p, 4*out_p).  The single value column is replicated across all
    # out_p lanes so "val + adv" needs no cross-lane broadcast in the kernel.
    def val_rep(w):
        return jnp.tile(pad2(w, mid_p, 1), (1, out_p))

    diag = [val_rep(params["wv2"]), pad2(params["wa2"], mid_p, out_p),
            val_rep(params["wv22"]), pad2(params["wa22"], mid_p, out_p)]
    zero = jnp.zeros((mid_p, out_p), jnp.float32)
    wh2 = jnp.concatenate(
        [jnp.concatenate([blk if j == i else zero for j in range(4)], axis=1)
         for i, blk in enumerate(diag)], axis=0)
    bh2 = jnp.concatenate(
        [jnp.tile(params["bv2"], (1, out_p)), pad2(params["ba2"], 1, out_p),
         jnp.tile(params["bv22"], (1, out_p)), pad2(params["ba22"], 1, out_p)],
        axis=1)

    # Single bias slab (4, max_width) so all biases arrive in one DMA (f32).
    maxw = max(4 * mid_p, 4 * out_p)
    bias = jnp.concatenate(
        [pad2(pad2(params["b1"], 1, mid_p), 1, maxw),
         pad2(pad2(params["b2"], 1, mid_p), 1, maxw),
         pad2(bh1, 1, maxw),
         pad2(bh2, 1, maxw)], axis=0)

    bf16 = jnp.bfloat16
    return dict(
        w1=w1.astype(bf16), w2=w2.astype(bf16),
        wh1=wh1.astype(bf16), wh2=wh2.astype(bf16),
        bias=bias.astype(jnp.float32),
        state_dim=int(state_dim), action_dim=int(action_dim),
        mid_p=int(mid_p), out_p=int(out_p))


def qnet_duel_twin_forward(state, packed, *, block_m=256):
    """state: (batch, state_dim) f32.  packed: output of prepare_qnet_params()."""
    batch, state_dim = state.shape
    assert state_dim == packed["state_dim"]
    mid_p, out_p = packed["mid_p"], packed["out_p"]
    action_dim = packed["action_dim"]

    # One grid step for small batches; larger row blocks amortize the ~0.35 us
    # per-step overhead.  Keep block_m a multiple of 16 (bf16 sublane packing).
    block_m = _round_up(max(block_m, 16), 16)
    block_m = min(block_m, _round_up(batch, 16))
    batch_p = _round_up(batch, block_m)

    s_bf = state.astype(jnp.bfloat16)
    if batch_p != batch:
        s_bf = jnp.pad(s_bf, ((0, batch_p - batch), (0, 0)))
    grid = (batch_p // block_m,)

    weights = [packed[k] for k in ("w1", "w2", "wh1", "wh2", "bias")]

    in_specs = [pl.BlockSpec((block_m, state_dim), lambda i: (i, 0))]
    # Parameters: full-array blocks with constant index_map -> VMEM-resident
    # across all grid steps while the activation stream is double-buffered.
    in_specs += [pl.BlockSpec(w.shape, lambda i: (0, 0)) for w in weights]
    out_spec = pl.BlockSpec((block_m, out_p), lambda i: (i, 0))

    param_bytes = sum(int(w.size) * w.dtype.itemsize for w in weights)
    act_bytes = block_m * (state_dim * 2 + out_p * 4)
    vmem_limit = int(min(max(2 * (param_bytes + act_bytes) + (8 << 20),
                             32 << 20), 64 << 20))

    flops_per_row = 2 * (state_dim * mid_p + mid_p * mid_p
                         + mid_p * 4 * mid_p + 4 * mid_p * 4 * out_p)
    cost = pl.CostEstimate(
        flops=int(batch_p * flops_per_row),
        transcendentals=0,
        bytes_accessed=int(s_bf.size * 2 + batch_p * out_p * 4 + param_bytes))

    q = pl.pallas_call(
        functools.partial(_qnet_kernel, 1.0 / float(action_dim), mid_p, out_p),
        out_shape=jax.ShapeDtypeStruct((batch_p, out_p), jnp.float32),
        grid=grid,
        in_specs=in_specs,
        out_specs=out_spec,
        compiler_params=pltpu.CompilerParams(
            dimension_semantics=("parallel",),
            vmem_limit_bytes=vmem_limit),
        cost_estimate=cost,
    )(s_bf, *weights)

    # NOTE: this slice is a copy of the (lane-dense, padded) kernel output;
    # downstream consumers that can read the padded (batch_p, out_p) array
    # directly should skip it.
    return q[:batch, :action_dim]


def _init_linear(key, fan_in, fan_out):
    # Mimics PyTorch Linear default U(-1/sqrt(fan_in), 1/sqrt(fan_in)).
    kw, kb = jax.random.split(key)
    bound = 1.0 / jnp.sqrt(jnp.float32(fan_in))
    w = jax.random.uniform(kw, (fan_in, fan_out), jnp.float32, -bound, bound)
    b = jax.random.uniform(kb, (1, fan_out), jnp.float32, -bound, bound)
    return w, b


if __name__ == "__main__":
    state_dim, action_dim, mid_dim = 16, 8, 32
    batch = 200

    key = jax.random.PRNGKey(0)
    keys = jax.random.split(key, 11)

    s = jax.random.normal(keys[0], (batch, state_dim), jnp.float32)

    params = {}
    params["w1"], params["b1"] = _init_linear(keys[1], state_dim, mid_dim)
    params["w2"], params["b2"] = _init_linear(keys[2], mid_dim, mid_dim)
    params["wv1"], params["bv1"] = _init_linear(keys[3], mid_dim, mid_dim)
    params["wv2"], params["bv2"] = _init_linear(keys[4], mid_dim, 1)
    params["wa1"], params["ba1"] = _init_linear(keys[5], mid_dim, mid_dim)
    params["wa2"], params["ba2"] = _init_linear(keys[6], mid_dim, action_dim)
    params["wv12"], params["bv12"] = _init_linear(keys[7], mid_dim, mid_dim)
    params["wv22"], params["bv22"] = _init_linear(keys[8], mid_dim, 1)
    params["wa12"], params["ba12"] = _init_linear(keys[9], mid_dim, mid_dim)
    params["wa22"], params["ba22"] = _init_linear(keys[10], mid_dim, action_dim)

    # Padding / fusion / bf16 cast done ONCE, off the forward hot path.
    packed = prepare_qnet_params(params, action_dim)

    fwd = jax.jit(lambda st: qnet_duel_twin_forward(st, packed))
    out = jax.block_until_ready(fwd(s))

    # Pure-JAX f32 reference of the same math (unpadded).
    def hs(x):
        return jnp.clip(x + 3.0, 0.0, 6.0) / 6.0 * x

    x = hs(jnp.maximum(s @ params["w1"] + params["b1"], 0.0)
           @ params["w2"] + params["b2"])

    def head_ref(suffix):
        val = (hs(x @ params["wv1" + suffix] + params["bv1" + suffix])
               @ params["wv2" + suffix] + params["bv2" + suffix])
        adv = (hs(x @ params["wa1" + suffix] + params["ba1" + suffix])
               @ params["wa2" + suffix] + params["ba2" + suffix])
        return val + adv - adv.mean(axis=1, keepdims=True)

    ref = jnp.minimum(head_ref(""), head_ref("2"))

    assert out.shape == (batch, action_dim)
    err = float(jnp.max(jnp.abs(out - ref)))
    # bf16 matmul operands with f32 accumulation: expect ~1e-2 abs agreement.
    assert err < 5e-2, f"mismatch vs reference: max abs diff {err}"

    print("KERNEL_OK")
</pallas_src>

<mosaic_0001>
module attributes {stable_mosaic.version = 11 : i64} {
  func.func @_qnet_kernel(%arg0: i32, %arg1: memref<208x16xbf16, #tpu.memory_space<vmem>>, %arg2: memref<16x128xbf16, #tpu.memory_space<vmem>>, %arg3: memref<128x128xbf16, #tpu.memory_space<vmem>>, %arg4: memref<128x512xbf16, #tpu.memory_space<vmem>>, %arg5: memref<512x512xbf16, #tpu.memory_space<vmem>>, %arg6: memref<4x512xf32, #tpu.memory_space<vmem>>, %arg7: memref<208x128xf32, #tpu.memory_space<vmem>>) attributes {dimension_semantics = [#tpu.dimension_semantics<parallel>], iteration_bounds = array<i64: 1>, scalar_prefetch = 0 : i64, scratch_operands = 0 : i64, tpu.core_type = #tpu.core_type<tc>, window_params = [{transform_indices = @transform_0, window_bounds = array<i64: 208, 16>}, {pipeline_mode = #tpu.pipeline_mode<synchronous>, transform_indices = @transform_1, window_bounds = array<i64: 16, 128>}, {pipeline_mode = #tpu.pipeline_mode<synchronous>, transform_indices = @transform_2, window_bounds = array<i64: 128, 128>}, {pipeline_mode = #tpu.pipeline_mode<synchronous>, transform_indices = @transform_3, window_bounds = array<i64: 128, 512>}, {pipeline_mode = #tpu.pipeline_mode<synchronous>, transform_indices = @transform_4, window_bounds = array<i64: 512, 512>}, {pipeline_mode = #tpu.pipeline_mode<synchronous>, transform_indices = @transform_5, window_bounds = array<i64: 4, 512>}, {transform_indices = @transform_6, window_bounds = array<i64: 208, 128>}]} {
    %c0 = arith.constant 0 : index
    %c0_0 = arith.constant 0 : index
    %0 = vector.load %arg6[%c0, %c0_0] : memref<4x512xf32, #tpu.memory_space<vmem>>, vector<1x128xf32>
    %c1 = arith.constant 1 : index
    %c0_1 = arith.constant 0 : index
    %1 = vector.load %arg6[%c1, %c0_1] : memref<4x512xf32, #tpu.memory_space<vmem>>, vector<1x128xf32>
    %c2 = arith.constant 2 : index
    %c0_2 = arith.constant 0 : index
    %2 = vector.load %arg6[%c2, %c0_2] : memref<4x512xf32, #tpu.memory_space<vmem>>, vector<1x512xf32>
    %c3 = arith.constant 3 : index
    %c0_3 = arith.constant 0 : index
    %3 = vector.load %arg6[%c3, %c0_3] : memref<4x512xf32, #tpu.memory_space<vmem>>, vector<1x512xf32>
    %c0_4 = arith.constant 0 : index
    %c0_5 = arith.constant 0 : index
    %4 = vector.load %arg1[%c0_4, %c0_5] : memref<208x16xbf16, #tpu.memory_space<vmem>>, vector<208x16xbf16>
    %c0_6 = arith.constant 0 : index
    %c0_7 = arith.constant 0 : index
    %5 = vector.load %arg2[%c0_6, %c0_7] : memref<16x128xbf16, #tpu.memory_space<vmem>>, vector<16x128xbf16>
    %cst = arith.constant dense<0.000000e+00> : vector<208x128xf32>
    %6 = tpu.matmul %4, %5, %cst {dimension_numbers = #tpu.dot_dimension_numbers<[1], [0], [0], [1], [0, 0, 1, 1], [], []>} : vector<208x16xbf16>, vector<16x128xbf16>, vector<208x128xf32> -> vector<208x128xf32>
    %7 = vector.broadcast %0 : vector<1x128xf32> to vector<208x128xf32>
    %8 = arith.addf %6, %7 : vector<208x128xf32>
    %cst_8 = arith.constant 0.000000e+00 : f32
    %9 = vector.broadcast %cst_8 : f32 to vector<208x128xf32>
    %10 = arith.maximumf %8, %9 : vector<208x128xf32>
    %11 = arith.truncf %10 : vector<208x128xf32> to vector<208x128xbf16>
    %c0_9 = arith.constant 0 : index
    %c0_10 = arith.constant 0 : index
    %12 = vector.load %arg3[%c0_9, %c0_10] : memref<128x128xbf16, #tpu.memory_space<vmem>>, vector<128x128xbf16>
    %cst_11 = arith.constant dense<0.000000e+00> : vector<208x128xf32>
    %13 = tpu.matmul %11, %12, %cst_11 {dimension_numbers = #tpu.dot_dimension_numbers<[1], [0], [0], [1], [0, 0, 1, 1], [], []>} : vector<208x128xbf16>, vector<128x128xbf16>, vector<208x128xf32> -> vector<208x128xf32>
    %14 = vector.broadcast %1 : vector<1x128xf32> to vector<208x128xf32>
    %15 = arith.addf %13, %14 : vector<208x128xf32>
    %cst_12 = arith.constant 3.000000e+00 : f32
    %16 = vector.broadcast %cst_12 : f32 to vector<208x128xf32>
    %17 = arith.addf %15, %16 : vector<208x128xf32>
    %cst_13 = arith.constant 0.000000e+00 : f32
    %cst_14 = arith.constant 6.000000e+00 : f32
    %18 = vector.broadcast %cst_13 : f32 to vector<208x128xf32>
    %19 = arith.maximumf %18, %17 : vector<208x128xf32>
    %20 = vector.broadcast %cst_14 : f32 to vector<208x128xf32>
    %21 = arith.minimumf %20, %19 : vector<208x128xf32>
    %cst_15 = arith.constant 0.166666672 : f32
    %22 = vector.broadcast %cst_15 : f32 to vector<208x128xf32>
    %23 = arith.mulf %21, %22 : vector<208x128xf32>
    %24 = arith.mulf %23, %15 : vector<208x128xf32>
    %25 = arith.truncf %24 : vector<208x128xf32> to vector<208x128xbf16>
    %c0_16 = arith.constant 0 : index
    %c0_17 = arith.constant 0 : index
    %26 = vector.load %arg4[%c0_16, %c0_17] : memref<128x512xbf16, #tpu.memory_space<vmem>>, vector<128x512xbf16>
    %cst_18 = arith.constant dense<0.000000e+00> : vector<208x512xf32>
    %27 = tpu.matmul %25, %26, %cst_18 {dimension_numbers = #tpu.dot_dimension_numbers<[1], [0], [0], [1], [0, 0, 1, 1], [], []>} : vector<208x128xbf16>, vector<128x512xbf16>, vector<208x512xf32> -> vector<208x512xf32>
    %28 = vector.broadcast %2 : vector<1x512xf32> to vector<208x512xf32>
    %29 = arith.addf %27, %28 : vector<208x512xf32>
    %cst_19 = arith.constant 3.000000e+00 : f32
    %30 = vector.broadcast %cst_19 : f32 to vector<208x512xf32>
    %31 = arith.addf %29, %30 : vector<208x512xf32>
    %cst_20 = arith.constant 0.000000e+00 : f32
    %cst_21 = arith.constant 6.000000e+00 : f32
    %32 = vector.broadcast %cst_20 : f32 to vector<208x512xf32>
    %33 = arith.maximumf %32, %31 : vector<208x512xf32>
    %34 = vector.broadcast %cst_21 : f32 to vector<208x512xf32>
    %35 = arith.minimumf %34, %33 : vector<208x512xf32>
    %cst_22 = arith.constant 0.166666672 : f32
    %36 = vector.broadcast %cst_22 : f32 to vector<208x512xf32>
    %37 = arith.mulf %35, %36 : vector<208x512xf32>
    %38 = arith.mulf %37, %29 : vector<208x512xf32>
    %39 = arith.truncf %38 : vector<208x512xf32> to vector<208x512xbf16>
    %c0_23 = arith.constant 0 : index
    %c0_24 = arith.constant 0 : index
    %40 = vector.load %arg5[%c0_23, %c0_24] : memref<512x512xbf16, #tpu.memory_space<vmem>>, vector<512x512xbf16>
    %cst_25 = arith.constant dense<0.000000e+00> : vector<208x512xf32>
    %41 = tpu.matmul %39, %40, %cst_25 {dimension_numbers = #tpu.dot_dimension_numbers<[1], [0], [0], [1], [0, 0, 1, 1], [], []>} : vector<208x512xbf16>, vector<512x512xbf16>, vector<208x512xf32> -> vector<208x512xf32>
    %42 = vector.broadcast %3 : vector<1x512xf32> to vector<208x512xf32>
    %43 = arith.addf %41, %42 : vector<208x512xf32>
    %44 = vector.extract_strided_slice %43 {offsets = [0, 0], sizes = [208, 128], strides = [1, 1]} : vector<208x512xf32> to vector<208x128xf32>
    %45 = vector.extract_strided_slice %43 {offsets = [0, 128], sizes = [208, 128], strides = [1, 1]} : vector<208x512xf32> to vector<208x128xf32>
    %cst_26 = arith.constant dense<0.000000e+00> : vector<208xf32>
    %46 = vector.multi_reduction <add>, %45, %cst_26 [1] : vector<208x128xf32> to vector<208xf32>
    %47 = vector.shape_cast %46 : vector<208xf32> to vector<208x1xf32>
    %cst_27 = arith.constant 1.250000e-01 : f32
    %48 = vector.broadcast %cst_27 : f32 to vector<208x1xf32>
    %49 = arith.mulf %47, %48 : vector<208x1xf32>
    %50 = arith.addf %44, %45 : vector<208x128xf32>
    %51 = vector.broadcast %49 : vector<208x1xf32> to vector<208x128xf32>
    %52 = arith.subf %50, %51 : vector<208x128xf32>
    %53 = vector.extract_strided_slice %43 {offsets = [0, 256], sizes = [208, 128], strides = [1, 1]} : vector<208x512xf32> to vector<208x128xf32>
    %54 = vector.extract_strided_slice %43 {offsets = [0, 384], sizes = [208, 128], strides = [1, 1]} : vector<208x512xf32> to vector<208x128xf32>
    %cst_28 = arith.constant dense<0.000000e+00> : vector<208xf32>
    %55 = vector.multi_reduction <add>, %54, %cst_28 [1] : vector<208x128xf32> to vector<208xf32>
    %56 = vector.shape_cast %55 : vector<208xf32> to vector<208x1xf32>
    %cst_29 = arith.constant 1.250000e-01 : f32
    %57 = vector.broadcast %cst_29 : f32 to vector<208x1xf32>
    %58 = arith.mulf %56, %57 : vector<208x1xf32>
    %59 = arith.addf %53, %54 : vector<208x128xf32>
    %60 = vector.broadcast %58 : vector<208x1xf32> to vector<208x128xf32>
    %61 = arith.subf %59, %60 : vector<208x128xf32>
    %62 = arith.minimumf %52, %61 : vector<208x128xf32>
    %c0_30 = arith.constant 0 : index
    %c0_31 = arith.constant 0 : index
    %63 = vector.load %arg7[%c0_30, %c0_31] : memref<208x128xf32, #tpu.memory_space<vmem>>, vector<208x128xf32>
    tpu.vector_store %arg7[%c0_30, %c0_31], %62 {strides = array<i32>} : memref<208x128xf32, #tpu.memory_space<vmem>>, vector<208x128xf32>,
    return
  }
  func.func @transform_0(%arg0: i32) -> (i32, i32) {
    %c0_i32 = arith.constant 0 : i32
    %c0_i32_0 = arith.constant 0 : i32
    return %arg0, %c0_i32 : i32, i32
  }
  func.func @transform_1(%arg0: i32) -> (i32, i32) {
    %c0_i32 = arith.constant 0 : i32
    %c0_i32_0 = arith.constant 0 : i32
    %c0_i32_1 = arith.constant 0 : i32
    return %c0_i32, %c0_i32_0 : i32, i32
  }
  func.func @transform_2(%arg0: i32) -> (i32, i32) {
    %c0_i32 = arith.constant 0 : i32
    %c0_i32_0 = arith.constant 0 : i32
    %c0_i32_1 = arith.constant 0 : i32
    return %c0_i32, %c0_i32_0 : i32, i32
  }
  func.func @transform_3(%arg0: i32) -> (i32, i32) {
    %c0_i32 = arith.constant 0 : i32
    %c0_i32_0 = arith.constant 0 : i32
    %c0_i32_1 = arith.constant 0 : i32
    return %c0_i32, %c0_i32_0 : i32, i32
  }
  func.func @transform_4(%arg0: i32) -> (i32, i32) {
    %c0_i32 = arith.constant 0 : i32
    %c0_i32_0 = arith.constant 0 : i32
    %c0_i32_1 = arith.constant 0 : i32
    return %c0_i32, %c0_i32_0 : i32, i32
  }
  func.func @transform_5(%arg0: i32) -> (i32, i32) {
    %c0_i32 = arith.constant 0 : i32
    %c0_i32_0 = arith.constant 0 : i32
    %c0_i32_1 = arith.constant 0 : i32
    return %c0_i32, %c0_i32_0 : i32, i32
  }
  func.func @transform_6(%arg0: i32) -> (i32, i32) {
    %c0_i32 = arith.constant 0 : i32
    %c0_i32_0 = arith.constant 0 : i32
    return %arg0, %c0_i32 : i32, i32
  }
}

</mosaic_0001>

<llo_original>
// kernel: _lambda_.1
$region0: #{_lambda_.1}
  #allocation0 [shape = 'u32[]', space=smem, size = 0x4, offset = 0x4, fixed_abs, tag = 'smem constant byte address 0x4 - core index']
  #allocation1 [shape = 'u32[144,128]{1,0:T(1,128)}', space=vmem, size = 0x12000, scoped, tag = 'internal scratch']
  %s0 = inlined_call_operand.vmem [shape: bf16[208,16], index: 0, kind: input, shape index: {}]
  %s1 = inlined_call_operand.vmem [shape: bf16[16,128], index: 1, kind: input, shape index: {}]
  %s2 = inlined_call_operand.vmem [shape: bf16[128,128], index: 2, kind: input, shape index: {}]
  %s3 = inlined_call_operand.vmem [shape: bf16[128,512], index: 3, kind: input, shape index: {}]
  %s4 = inlined_call_operand.vmem [shape: bf16[512,512], index: 4, kind: input, shape index: {}]
  %s5 = inlined_call_operand.vmem [shape: f32[4,512], index: 5, kind: input, shape index: {}]
  %s6 = inlined_call_operand.vmem [shape: f32[208,128], index: 6, kind: output, shape index: {}]
  %s7 = sld [smem:[#allocation0]]
  $region34: #{_lambda_.1} parent=0
    _
  %s9 = ssub.s32 1, %s7
  %s10 = scalar_select 0, %s9, %s7
  // Predicated region
  $region2: #{_lambda_.1} parent=0 // pred_check
    _
  $region3: #{_lambda_.1} parent=0 // pred_check_branch
    %12 = sbr.rel (0) target = $region5
  $region4: #{_lambda_.1} parent=0 // pred_region
    _
  $region5: #{_lambda_.1} parent=0 // pred_fallthru
    _
  // Predicated region
  $region6: #{_lambda_.1} parent=0 // pred_check
    _
  $region7: #{_lambda_.1} parent=0 // pred_check_branch
    %14 = sbr.rel (0) target = $region9
  $region8: #{_lambda_.1} parent=0 // pred_region
    _
  $region9: #{_lambda_.1} parent=0 // pred_fallthru
    _
  // Predicated region
  $region10: #{_lambda_.1} parent=0 // pred_check
    _
  $region11: #{_lambda_.1} parent=0 // pred_check_branch
    %16 = sbr.rel (0) target = $region13
  $region12: #{_lambda_.1} parent=0 // pred_region
    _
  $region13: #{_lambda_.1} parent=0 // pred_fallthru
    _
  // Predicated region
  $region14: #{_lambda_.1} parent=0 // pred_check
    _
  $region15: #{_lambda_.1} parent=0 // pred_check_branch
    %18 = sbr.rel (0) target = $region17
  $region16: #{_lambda_.1} parent=0 // pred_region
    _
  $region17: #{_lambda_.1} parent=0 // pred_fallthru
    _
  // Predicated region
  $region18: #{_lambda_.1} parent=0 // pred_check
    _
  $region19: #{_lambda_.1} parent=0 // pred_check_branch
    %20 = sbr.rel (0) target = $region21
  $region20: #{_lambda_.1} parent=0 // pred_region
    _
  $region21: #{_lambda_.1} parent=0 // pred_fallthru
    _
  // Predicated region
  $region22: #{_lambda_.1} parent=0 // pred_check
    _
  $region23: #{_lambda_.1} parent=0 // pred_check_branch
    %22 = sbr.rel (0) target = $region25
  $region24: #{_lambda_.1} parent=0 // pred_region
    _
  $region25: #{_lambda_.1} parent=0 // pred_fallthru
    _
  %v24 = vld [vmem:[%s5] sm:$0x1]
  %v25 = vld [vmem:[%s5 + $0x1] sm:$0x1]
  %s26 = scalar_lea.vmem %s5, 2
  %v27 = vld [vmem:[%s26] ss:$4 sm:$0xf]
  %s28 = scalar_lea.vmem %s5, 3
  %v29 = vld [vmem:[%s28] ss:$4 sm:$0xf]
  %v30 = vld [vmem:[%s0] sm:$0xf]
  %v31 = vld [vmem:[%s0 + $0x4] sm:$0xf]
  %v32 = vld [vmem:[%s0 + $0x8] sm:$0xf]
  %v33 = vld [vmem:[%s0 + $0xc] sm:$0xf]
  %v34 = vld [vmem:[%s0 + $0x10] sm:$0xf]
  %v35 = vld [vmem:[%s0 + $0x14] sm:$0xf]
  %v36 = vld [vmem:[%s0 + $0x18] sm:$0xf]
  %v37 = vld [vmem:[%s0 + $0x1c] sm:$0xf]
  %v38 = vld [vmem:[%s0 + $0x20] sm:$0xf]
  %v39 = vld [vmem:[%s0 + $0x24] sm:$0xf]
  %v40 = vld [vmem:[%s0 + $0x28] sm:$0xf]
  %v41 = vld [vmem:[%s0 + $0x2c] sm:$0xf]
  %v42 = vld [vmem:[%s0 + $0x30] sm:$0xf]
  %v43 = vld [vmem:[%s0 + $0x34] sm:$0xf]
  %v44 = vld [vmem:[%s0 + $0x38] sm:$0xf]
  %v45 = vld [vmem:[%s0 + $0x3c] sm:$0xf]
  %v46 = vld [vmem:[%s0 + $0x40] sm:$0xf]
  %v47 = vld [vmem:[%s0 + $0x44] sm:$0xf]
  %v48 = vld [vmem:[%s0 + $0x48] sm:$0xf]
  %v49 = vld [vmem:[%s0 + $0x4c] sm:$0xf]
  %v50 = vld [vmem:[%s0 + $0x50] sm:$0xf]
  %v51 = vld [vmem:[%s0 + $0x54] sm:$0xf]
  %v52 = vld [vmem:[%s0 + $0x58] sm:$0xf]
  %v53 = vld [vmem:[%s0 + $0x5c] sm:$0xf]
  %v54 = vld [vmem:[%s0 + $0x60] sm:$0xf]
  %v55 = vld [vmem:[%s0 + $0x64] sm:$0xf]
  %v56 = vld [vmem:[%s1] sm:$0xf]
  %v57 = vld [vmem:[%s1 + $0x4] sm:$0xf]
  %v58 = vlaneseq
  %v59 = vshrl.u32 %v58, 7
  %v60 = vsub.s32 0, %v59
  %v61 = vrot.slane %v24, %v60
  %v88 = vunpack.c.l.b16 %v30
  %v89 = vunpack.c.l.b16 %v31
  %v90 = vunpack.c.l.b16 %v32
  %v91 = vunpack.c.l.b16 %v33
  %v92 = vunpack.c.l.b16 %v34
  %v93 = vunpack.c.l.b16 %v35
  %v94 = vunpack.c.l.b16 %v36
  %v95 = vunpack.c.l.b16 %v37
  %v96 = vunpack.c.l.b16 %v38
  %v97 = vunpack.c.l.b16 %v39
  %v98 = vunpack.c.l.b16 %v40
  %v99 = vunpack.c.l.b16 %v41
  %v100 = vunpack.c.l.b16 %v42
  %v101 = vunpack.c.l.b16 %v43
  %v102 = vunpack.c.l.b16 %v44
  %v103 = vunpack.c.l.b16 %v45
  %v104 = vunpack.c.l.b16 %v46
  %v105 = vunpack.c.l.b16 %v47
  %v106 = vunpack.c.l.b16 %v48
  %v107 = vunpack.c.l.b16 %v49
  %v108 = vunpack.c.l.b16 %v50
  %v109 = vunpack.c.l.b16 %v51
  %v110 = vunpack.c.l.b16 %v52
  %v111 = vunpack.c.l.b16 %v53
  %v112 = vunpack.c.l.b16 %v54
  %v113 = vunpack.c.l.b16 %v55
  %v114 = vpack.c.b16 %v89, %v88
  %v115 = vpack.c.b16 %v91, %v90
  %v116 = vpack.c.b16 %v93, %v92
  %v117 = vpack.c.b16 %v95, %v94
  %v118 = vpack.c.b16 %v97, %v96
  %v119 = vpack.c.b16 %v99, %v98
  %v120 = vpack.c.b16 %v101, %v100
  %v121 = vpack.c.b16 %v103, %v102
  %v122 = vpack.c.b16 %v105, %v104
  %v123 = vpack.c.b16 %v107, %v106
  %v124 = vpack.c.b16 %v109, %v108
  %v125 = vpack.c.b16 %v111, %v110
  %v126 = vpack.c.b16 %v113, %v112
  %v129 = vunpack.c.l.b16 %v56
  %v130 = vunpack.c.l.b16 %v57
  %v131 = vpack.c.b16 %v130, %v129
  %vm133 = vcmask 130048
  %v135 = vsel %vm133, %v114, 0
  %v138 = vsel %vm133, %v115, 0
  %v141 = vsel %vm133, %v116, 0
  %v144 = vsel %vm133, %v117, 0
  %v147 = vsel %vm133, %v118, 0
  %v150 = vsel %vm133, %v119, 0
  %v153 = vsel %vm133, %v120, 0
  %v156 = vsel %vm133, %v121, 0
  %v159 = vsel %vm133, %v122, 0
  %v162 = vsel %vm133, %v123, 0
  %v165 = vsel %vm133, %v124, 0
  %v168 = vsel %vm133, %v125, 0
  %v171 = vsel %vm133, %v126, 0
  %173 = vmatprep.subr.bf16.mxu0 0
  %174 = vmatpush1.bf16.msra.mxu0 %v131
  %175 = vmatprep.subr.bf16.mxu0 0
  %176 = vmatpush1.bf16.msra.mxu0 0
  %177 = vmatprep.subr.bf16.mxu0 0
  %178 = vmatpush1.bf16.msra.mxu0 0
  %179 = vmatprep.subr.bf16.mxu0 0
  %180 = vmatpush1.bf16.msra.mxu0 0
  %181 = vmatprep.subr.bf16.mxu0 0
  %182 = vmatpush1.bf16.msra.mxu0 0
  %183 = vmatprep.subr.bf16.mxu0 0
  %184 = vmatpush1.bf16.msra.mxu0 0
  %185 = vmatprep.subr.bf16.mxu0 0
  %186 = vmatpush1.bf16.msra.mxu0 0
  %187 = vmatprep.subr.bf16.mxu0 0
  %188 = vmatpush1.bf16.msra.mxu0 0
  %189 = vmatprep.subr.bf16.mxu0 0
  %190 = vmatpush1.bf16.msra.mxu0 0
  %191 = vmatprep.subr.bf16.mxu0 0
  %192 = vmatpush1.bf16.msra.mxu0 0
  %193 = vmatprep.subr.bf16.mxu0 0
  %194 = vmatpush1.bf16.msra.mxu0 0
  %195 = vmatprep.subr.bf16.mxu0 0
  %196 = vmatpush1.bf16.msra.mxu0 0
  %197 = vmatprep.subr.bf16.mxu0 0
  %198 = vmatpush1.bf16.msra.mxu0 0
  %199 = vmatprep.subr.bf16.mxu0 0
  %200 = vmatpush1.bf16.msra.mxu0 0
  %201 = vmatprep.subr.bf16.mxu0 0
  %202 = vmatpush1.bf16.msra.mxu0 0
  %203 = vmatprep.subr.bf16.mxu0 0
  %204 = vmatpush1.bf16.msra.mxu0 0
  %205 = vmatprep.mubr.bf16.mxu0 0
  %206 = vmatmul.mubr.bf16.gmra.mrb[0].mxu0 %v135
  %v207 = vpop.f32.mrb[0].mxu0
  %v208 = vadd.f32 %v61, %v207
  %v209 = vpop.f32.mrb[0].mxu0
  %v210 = vpop.f32.mrb[0].mxu0
  %v211 = vadd.f32 %v61, %v210
  %v212 = vpop.f32.mrb[0].mxu0
  %213 = vmatprep.mubr.bf16.mxu0 0
  %214 = vmatmul.mubr.bf16.gmra.mrb[0].mxu0 %v138
  %v215 = vpop.f32.mrb[0].mxu0
  %v216 = vadd.f32 %v61, %v215
  %v217 = vpop.f32.mrb[0].mxu0
  %v218 = vpop.f32.mrb[0].mxu0
  %v219 = vadd.f32 %v61, %v218
  %v220 = vpop.f32.mrb[0].mxu0
  %221 = vmatprep.mubr.bf16.mxu0 0
  %222 = vmatmul.mubr.bf16.gmra.mrb[0].mxu0 %v141
  %v223 = vpop.f32.mrb[0].mxu0
  %v224 = vadd.f32 %v61, %v223
  %v225 = vpop.f32.mrb[0].mxu0
  %v226 = vpop.f32.mrb[0].mxu0
  %v227 = vadd.f32 %v61, %v226
  %v228 = vpop.f32.mrb[0].mxu0
  %229 = vmatprep.mubr.bf16.mxu0 0
  %230 = vmatmul.mubr.bf16.gmra.mrb[0].mxu0 %v144
  %v231 = vpop.f32.mrb[0].mxu0
  %v232 = vadd.f32 %v61, %v231
  %v233 = vpop.f32.mrb[0].mxu0
  %v234 = vpop.f32.mrb[0].mxu0
  %v235 = vadd.f32 %v61, %v234
  %v236 = vpop.f32.mrb[0].mxu0
  %237 = vmatprep.mubr.bf16.mxu0 0
  %238 = vmatmul.mubr.bf16.gmra.mrb[0].mxu0 %v147
  %v239 = vpop.f32.mrb[0].mxu0
  %v240 = vadd.f32 %v61, %v239
  %v241 = vpop.f32.mrb[0].mxu0
  %v242 = vpop.f32.mrb[0].mxu0
  %v243 = vadd.f32 %v61, %v242
  %v244 = vpop.f32.mrb[0].mxu0
  %245 = vmatprep.mubr.bf16.mxu0 0
  %246 = vmatmul.mubr.bf16.gmra.mrb[0].mxu0 %v150
  %v247 = vpop.f32.mrb[0].mxu0
  %v248 = vadd.f32 %v61, %v247
  %v249 = vpop.f32.mrb[0].mxu0
  %v250 = vpop.f32.mrb[0].mxu0
  %v251 = vadd.f32 %v61, %v250
  %v252 = vpop.f32.mrb[0].mxu0
  %253 = vmatprep.mubr.bf16.mxu0 0
  %254 = vmatmul.mubr.bf16.gmra.mrb[0].mxu0 %v153
  %v255 = vpop.f32.mrb[0].mxu0
  %v256 = vadd.f32 %v61, %v255
  %v257 = vpop.f32.mrb[0].mxu0
  %v258 = vpop.f32.mrb[0].mxu0
  %v259 = vadd.f32 %v61, %v258
  %v260 = vpop.f32.mrb[0].mxu0
  %261 = vmatprep.mubr.bf16.mxu0 0
  %262 = vmatmul.mubr.bf16.gmra.mrb[0].mxu0 %v156
  %v263 = vpop.f32.mrb[0].mxu0
  %v264 = vadd.f32 %v61, %v263
  %v265 = vpop.f32.mrb[0].mxu0
  %v266 = vpop.f32.mrb[0].mxu0
  %v267 = vadd.f32 %v61, %v266
  %v268 = vpop.f32.mrb[0].mxu0
  %269 = vmatprep.mubr.bf16.mxu0 0
  %270 = vmatmul.mubr.bf16.gmra.mrb[0].mxu0 %v159
  %v271 = vpop.f32.mrb[0].mxu0
  %v272 = vadd.f32 %v61, %v271
  %v273 = vpop.f32.mrb[0].mxu0
  %v274 = vpop.f32.mrb[0].mxu0
  %v275 = vadd.f32 %v61, %v274
  %v276 = vpop.f32.mrb[0].mxu0
  %277 = vmatprep.mubr.bf16.mxu0 0
  %278 = vmatmul.mubr.bf16.gmra.mrb[0].mxu0 %v162
  %v279 = vpop.f32.mrb[0].mxu0
  %v280 = vadd.f32 %v61, %v279
  %v281 = vpop.f32.mrb[0].mxu0
  %v282 = vpop.f32.mrb[0].mxu0
  %v283 = vadd.f32 %v61, %v282
  %v284 = vpop.f32.mrb[0].mxu0
  %285 = vmatprep.mubr.bf16.mxu0 0
  %286 = vmatmul.mubr.bf16.gmra.mrb[0].mxu0 %v165
  %v287 = vpop.f32.mrb[0].mxu0
  %v288 = vadd.f32 %v61, %v287
  %v289 = vpop.f32.mrb[0].mxu0
  %v290 = vpop.f32.mrb[0].mxu0
  %v291 = vadd.f32 %v61, %v290
  %v292 = vpop.f32.mrb[0].mxu0
  %293 = vmatprep.mubr.bf16.mxu0 0
  %294 = vmatmul.mubr.bf16.gmra.mrb[0].mxu0 %v168
  %v295 = vpop.f32.mrb[0].mxu0
  %v296 = vadd.f32 %v61, %v295
  %v297 = vpop.f32.mrb[0].mxu0
  %v298 = vpop.f32.mrb[0].mxu0
  %v299 = vadd.f32 %v61, %v298
  %v300 = vpop.f32.mrb[0].mxu0
  %301 = vmatprep.mubr.bf16.mxu0 0
  %302 = vmatmul.mubr.bf16.gmra.mrb[0].mxu0 %v171
  %v303 = vpop.f32.mrb[0].mxu0
  %v304 = vadd.f32 %v61, %v303
  %v305 = vpop.f32.mrb[0].mxu0
  %v306 = vpop.f32.mrb[0].mxu0
  %v307 = vadd.f32 %v61, %v306
  %v308 = vpop.f32.mrb[0].mxu0
  %309 = vdwg.mxu0
  %v310 = vmax.f32 %v208, 0.0
  %v311 = vmax.f32 %v211, 0.0
  %v312 = vmax.f32 %v216, 0.0
  %v313 = vmax.f32 %v219, 0.0
  %v314 = vmax.f32 %v224, 0.0
  %v315 = vmax.f32 %v227, 0.0
  %v316 = vmax.f32 %v232, 0.0
  %v317 = vmax.f32 %v235, 0.0
  %v318 = vmax.f32 %v240, 0.0
  %v319 = vmax.f32 %v243, 0.0
  %v320 = vmax.f32 %v248, 0.0
  %v321 = vmax.f32 %v251, 0.0
  %v322 = vmax.f32 %v256, 0.0
  %v323 = vmax.f32 %v259, 0.0
  %v324 = vmax.f32 %v264, 0.0
  %v325 = vmax.f32 %v267, 0.0
  %v326 = vmax.f32 %v272, 0.0
  %v327 = vmax.f32 %v275, 0.0
  %v328 = vmax.f32 %v280, 0.0
  %v329 = vmax.f32 %v283, 0.0
  %v330 = vmax.f32 %v288, 0.0
  %v331 = vmax.f32 %v291, 0.0
  %v332 = vmax.f32 %v296, 0.0
  %v333 = vmax.f32 %v299, 0.0
  %v334 = vmax.f32 %v304, 0.0
  %v335 = vmax.f32 %v307, 0.0
  %v336 = vpack.c.bf16 %v311, %v310
  %v337 = vpack.c.bf16 %v313, %v312
  %v338 = vpack.c.bf16 %v315, %v314
  %v339 = vpack.c.bf16 %v317, %v316
  %v340 = vpack.c.bf16 %v319, %v318
  %v341 = vpack.c.bf16 %v321, %v320
  %v342 = vpack.c.bf16 %v323, %v322
  %v343 = vpack.c.bf16 %v325, %v324
  %v344 = vpack.c.bf16 %v327, %v326
  %v345 = vpack.c.bf16 %v329, %v328
  %v346 = vpack.c.bf16 %v331, %v330
  %v347 = vpack.c.bf16 %v333, %v332
  %v348 = vpack.c.bf16 %v335, %v334
  %v349 = vld [vmem:[%s2] sm:$0xf]
  %v350 = vld [vmem:[%s2 + $0x4] sm:$0xf]
  %v351 = vld [vmem:[%s2 + $0x8] sm:$0xf]
  %v352 = vld [vmem:[%s2 + $0xc] sm:$0xf]
  %v353 = vld [vmem:[%s2 + $0x10] sm:$0xf]
  %v354 = vld [vmem:[%s2 + $0x14] sm:$0xf]
  %v355 = vld [vmem:[%s2 + $0x18] sm:$0xf]
  %v356 = vld [vmem:[%s2 + $0x1c] sm:$0xf]
  %v357 = vld [vmem:[%s2 + $0x20] sm:$0xf]
  %v358 = vld [vmem:[%s2 + $0x24] sm:$0xf]
  %v359 = vld [vmem:[%s2 + $0x28] sm:$0xf]
  %v360 = vld [vmem:[%s2 + $0x2c] sm:$0xf]
  %v361 = vld [vmem:[%s2 + $0x30] sm:$0xf]
  %v362 = vld [vmem:[%s2 + $0x34] sm:$0xf]
  %v363 = vld [vmem:[%s2 + $0x38] sm:$0xf]
  %v364 = vld [vmem:[%s2 + $0x3c] sm:$0xf]
  %v365 = vlaneseq
  %v366 = vshrl.u32 %v365, 7
  %v367 = vsub.s32 0, %v366
  %v368 = vrot.slane %v25, %v367
  %v385 = vunpack.c.l.b16 %v349
  %v386 = vunpack.c.l.b16 %v350
  %v387 = vunpack.c.l.b16 %v351
  %v388 = vunpack.c.l.b16 %v352
  %v389 = vunpack.c.l.b16 %v353
  %v390 = vunpack.c.l.b16 %v354
  %v391 = vunpack.c.l.b16 %v355
  %v392 = vunpack.c.l.b16 %v356
  %v393 = vunpack.c.l.b16 %v357
  %v394 = vunpack.c.l.b16 %v358
  %v395 = vunpack.c.l.b16 %v359
  %v396 = vunpack.c.l.b16 %v360
  %v397 = vunpack.c.l.b16 %v361
  %v398 = vunpack.c.l.b16 %v362
  %v399 = vunpack.c.l.b16 %v363
  %v400 = vunpack.c.l.b16 %v364
  %v401 = vpack.c.b16 %v386, %v385
  %v402 = vpack.c.b16 %v388, %v387
  %v403 = vpack.c.b16 %v390, %v389
  %v404 = vpack.c.b16 %v392, %v391
  %v405 = vpack.c.b16 %v394, %v393
  %v406 = vpack.c.b16 %v396, %v395
  %v407 = vpack.c.b16 %v398, %v397
  %v408 = vpack.c.b16 %v400, %v399
  %417 = vmatprep.subr.bf16.mxu0 0
  %418 = vmatpush1.bf16.msra.mxu0 %v401
  %419 = vmatprep.subr.bf16.mxu0 0
  %420 = vmatpush1.bf16.msra.mxu0 %v402
  %421 = vmatprep.subr.bf16.mxu0 0
  %422 = vmatpush1.bf16.msra.mxu0 %v403
  %423 = vmatprep.subr.bf16.mxu0 0
  %424 = vmatpush1.bf16.msra.mxu0 %v404
  %425 = vmatprep.subr.bf16.mxu0 0
  %426 = vmatpush1.bf16.msra.mxu0 %v405
  %427 = vmatprep.subr.bf16.mxu0 0
  %428 = vmatpush1.bf16.msra.mxu0 %v406
  %429 = vmatprep.subr.bf16.mxu0 0
  %430 = vmatpush1.bf16.msra.mxu0 %v407
  %431 = vmatprep.subr.bf16.mxu0 0
  %432 = vmatpush1.bf16.msra.mxu0 %v408
  %433 = vmatprep.subr.bf16.mxu0 0
  %434 = vmatpush1.bf16.msra.mxu0 0
  %435 = vmatprep.subr.bf16.mxu0 0
  %436 = vmatpush1.bf16.msra.mxu0 0
  %437 = vmatprep.subr.bf16.mxu0 0
  %438 = vmatpush1.bf16.msra.mxu0 0
  %439 = vmatprep.subr.bf16.mxu0 0
  %440 = vmatpush1.bf16.msra.mxu0 0
  %441 = vmatprep.subr.bf16.mxu0 0
  %442 = vmatpush1.bf16.msra.mxu0 0
  %443 = vmatprep.subr.bf16.mxu0 0
  %444 = vmatpush1.bf16.msra.mxu0 0
  %445 = vmatprep.subr.bf16.mxu0 0
  %446 = vmatpush1.bf16.msra.mxu0 0
  %447 = vmatprep.subr.bf16.mxu0 0
  %448 = vmatpush1.bf16.msra.mxu0 0
  %449 = vmatprep.mubr.bf16.mxu0 0
  %450 = vmatmul.mubr.bf16.gmra.mrb[0].mxu0 %v336
  %v451 = vpop.f32.mrb[0].mxu0
  %v452 = vadd.f32 %v368, %v451
  %v453 = vpop.f32.mrb[0].mxu0
  %v454 = vpop.f32.mrb[0].mxu0
  %v455 = vadd.f32 %v368, %v454
  %v456 = vpop.f32.mrb[0].mxu0
  %457 = vmatprep.mubr.bf16.mxu0 0
  %458 = vmatmul.mubr.bf16.gmra.mrb[0].mxu0 %v337
  %v459 = vpop.f32.mrb[0].mxu0
  %v460 = vadd.f32 %v368, %v459
  %v461 = vpop.f32.mrb[0].mxu0
  %v462 = vpop.f32.mrb[0].mxu0
  %v463 = vadd.f32 %v368, %v462
  %v464 = vpop.f32.mrb[0].mxu0
  %465 = vmatprep.mubr.bf16.mxu0 0
  %466 = vmatmul.mubr.bf16.gmra.mrb[0].mxu0 %v338
  %v467 = vpop.f32.mrb[0].mxu0
  %v468 = vadd.f32 %v368, %v467
  %v469 = vpop.f32.mrb[0].mxu0
  %v470 = vpop.f32.mrb[0].mxu0
  %v471 = vadd.f32 %v368, %v470
  %v472 = vpop.f32.mrb[0].mxu0
  %473 = vmatprep.mubr.bf16.mxu0 0
  %474 = vmatmul.mubr.bf16.gmra.mrb[0].mxu0 %v339
  %v475 = vpop.f32.mrb[0].mxu0
  %v476 = vadd.f32 %v368, %v475
  %v477 = vpop.f32.mrb[0].mxu0
  %v478 = vpop.f32.mrb[0].mxu0
  %v479 = vadd.f32 %v368, %v478
  %v480 = vpop.f32.mrb[0].mxu0
  %481 = vmatprep.mubr.bf16.mxu0 0
  %482 = vmatmul.mubr.bf16.gmra.mrb[0].mxu0 %v340
  %v483 = vpop.f32.mrb[0].mxu0
  %v484 = vadd.f32 %v368, %v483
  %v485 = vpop.f32.mrb[0].mxu0
  %v486 = vpop.f32.mrb[0].mxu0
  %v487 = vadd.f32 %v368, %v486
  %v488 = vpop.f32.mrb[0].mxu0
  %489 = vmatprep.mubr.bf16.mxu0 0
  %490 = vmatmul.mubr.bf16.gmra.mrb[0].mxu0 %v341
  %v491 = vpop.f32.mrb[0].mxu0
  %v492 = vadd.f32 %v368, %v491
  %v493 = vpop.f32.mrb[0].mxu0
  %v494 = vpop.f32.mrb[0].mxu0
  %v495 = vadd.f32 %v368, %v494
  %v496 = vpop.f32.mrb[0].mxu0
  %497 = vmatprep.mubr.bf16.mxu0 0
  %498 = vmatmul.mubr.bf16.gmra.mrb[0].mxu0 %v342
  %v499 = vpop.f32.mrb[0].mxu0
  %v500 = vadd.f32 %v368, %v499
  %v501 = vpop.f32.mrb[0].mxu0
  %v502 = vpop.f32.mrb[0].mxu0
  %v503 = vadd.f32 %v368, %v502
  %v504 = vpop.f32.mrb[0].mxu0
  %505 = vmatprep.mubr.bf16.mxu0 0
  %506 = vmatmul.mubr.bf16.gmra.mrb[0].mxu0 %v343
  %v507 = vpop.f32.mrb[0].mxu0
  %v508 = vadd.f32 %v368, %v507
  %v509 = vpop.f32.mrb[0].mxu0
  %v510 = vpop.f32.mrb[0].mxu0
  %v511 = vadd.f32 %v368, %v510
  %v512 = vpop.f32.mrb[0].mxu0
  %513 = vmatprep.mubr.bf16.mxu0 0
  %514 = vmatmul.mubr.bf16.gmra.mrb[0].mxu0 %v344
  %v515 = vpop.f32.mrb[0].mxu0
  %v516 = vadd.f32 %v368, %v515
  %v517 = vpop.f32.mrb[0].mxu0
  %v518 = vpop.f32.mrb[0].mxu0
  %v519 = vadd.f32 %v368, %v518
  %v520 = vpop.f32.mrb[0].mxu0
  %521 = vmatprep.mubr.bf16.mxu0 0
  %522 = vmatmul.mubr.bf16.gmra.mrb[0].mxu0 %v345
  %v523 = vpop.f32.mrb[0].mxu0
  %v524 = vadd.f32 %v368, %v523
  %v525 = vpop.f32.mrb[0].mxu0
  %v526 = vpop.f32.mrb[0].mxu0
  %v527 = vadd.f32 %v368, %v526
  %v528 = vpop.f32.mrb[0].mxu0
  %529 = vmatprep.mubr.bf16.mxu0 0
  %530 = vmatmul.mubr.bf16.gmra.mrb[0].mxu0 %v346
  %v531 = vpop.f32.mrb[0].mxu0
  %v532 = vadd.f32 %v368, %v531
  %v533 = vpop.f32.mrb[0].mxu0
  %v534 = vpop.f32.mrb[0].mxu0
  %v535 = vadd.f32 %v368, %v534
  %v536 = vpop.f32.mrb[0].mxu0
  %537 = vmatprep.mubr.bf16.mxu0 0
  %538 = vmatmul.mubr.bf16.gmra.mrb[0].mxu0 %v347
  %v539 = vpop.f32.mrb[0].mxu0
  %v540 = vadd.f32 %v368, %v539
  %v541 = vpop.f32.mrb[0].mxu0
  %v542 = vpop.f32.mrb[0].mxu0
  %v543 = vadd.f32 %v368, %v542
  %v544 = vpop.f32.mrb[0].mxu0
  %545 = vmatprep.mubr.bf16.mxu0 0
  %546 = vmatmul.mubr.bf16.gmra.mrb[0].mxu0 %v348
  %v547 = vpop.f32.mrb[0].mxu0
  %v548 = vadd.f32 %v368, %v547
  %v549 = vpop.f32.mrb[0].mxu0
  %v550 = vpop.f32.mrb[0].mxu0
  %v551 = vadd.f32 %v368, %v550
  %v552 = vpop.f32.mrb[0].mxu0
  %553 = vdwg.mxu0
  %v554 = vadd.f32 %v452, 3.0
  %v555 = vadd.f32 %v455, 3.0
  %v556 = vadd.f32 %v460, 3.0
  %v557 = vadd.f32 %v463, 3.0
  %v558 = vadd.f32 %v468, 3.0
  %v559 = vadd.f32 %v471, 3.0
  %v560 = vadd.f32 %v476, 3.0
  %v561 = vadd.f32 %v479, 3.0
  %v562 = vadd.f32 %v484, 3.0
  %v563 = vadd.f32 %v487, 3.0
  %v564 = vadd.f32 %v492, 3.0
  %v565 = vadd.f32 %v495, 3.0
  %v566 = vadd.f32 %v500, 3.0
  %v567 = vadd.f32 %v503, 3.0
  %v568 = vadd.f32 %v508, 3.0
  %v569 = vadd.f32 %v511, 3.0
  %v570 = vadd.f32 %v516, 3.0
  %v571 = vadd.f32 %v519, 3.0
  %v572 = vadd.f32 %v524, 3.0
  %v573 = vadd.f32 %v527, 3.0
  %v574 = vadd.f32 %v532, 3.0
  %v575 = vadd.f32 %v535, 3.0
  %v576 = vadd.f32 %v540, 3.0
  %v577 = vadd.f32 %v543, 3.0
  %v578 = vadd.f32 %v548, 3.0
  %v579 = vadd.f32 %v551, 3.0
  %v580 = vmax.f32 %v554, 0.0
  %v581 = vmax.f32 %v555, 0.0
  %v582 = vmax.f32 %v556, 0.0
  %v583 = vmax.f32 %v557, 0.0
  %v584 = vmax.f32 %v558, 0.0
  %v585 = vmax.f32 %v559, 0.0
  %v586 = vmax.f32 %v560, 0.0
  %v587 = vmax.f32 %v561, 0.0
  %v588 = vmax.f32 %v562, 0.0
  %v589 = vmax.f32 %v563, 0.0
  %v590 = vmax.f32 %v564, 0.0
  %v591 = vmax.f32 %v565, 0.0
  %v592 = vmax.f32 %v566, 0.0
  %v593 = vmax.f32 %v567, 0.0
  %v594 = vmax.f32 %v568, 0.0
  %v595 = vmax.f32 %v569, 0.0
  %v596 = vmax.f32 %v570, 0.0
  %v597 = vmax.f32 %v571, 0.0
  %v598 = vmax.f32 %v572, 0.0
  %v599 = vmax.f32 %v573, 0.0
  %v600 = vmax.f32 %v574, 0.0
  %v601 = vmax.f32 %v575, 0.0
  %v602 = vmax.f32 %v576, 0.0
  %v603 = vmax.f32 %v577, 0.0
  %v604 = vmax.f32 %v578, 0.0
  %v605 = vmax.f32 %v579, 0.0
  %v606 = vmin.f32 %v580, 6.0
  %v607 = vmin.f32 %v581, 6.0
  %v608 = vmin.f32 %v582, 6.0
  %v609 = vmin.f32 %v583, 6.0
  %v610 = vmin.f32 %v584, 6.0
  %v611 = vmin.f32 %v585, 6.0
  %v612 = vmin.f32 %v586, 6.0
  %v613 = vmin.f32 %v587, 6.0
  %v614 = vmin.f32 %v588, 6.0
  %v615 = vmin.f32 %v589, 6.0
  %v616 = vmin.f32 %v590, 6.0
  %v617 = vmin.f32 %v591, 6.0
  %v618 = vmin.f32 %v592, 6.0
  %v619 = vmin.f32 %v593, 6.0
  %v620 = vmin.f32 %v594, 6.0
  %v621 = vmin.f32 %v595, 6.0
  %v622 = vmin.f32 %v596, 6.0
  %v623 = vmin.f32 %v597, 6.0
  %v624 = vmin.f32 %v598, 6.0
  %v625 = vmin.f32 %v599, 6.0
  %v626 = vmin.f32 %v600, 6.0
  %v627 = vmin.f32 %v601, 6.0
  %v628 = vmin.f32 %v602, 6.0
  %v629 = vmin.f32 %v603, 6.0
  %v630 = vmin.f32 %v604, 6.0
  %v631 = vmin.f32 %v605, 6.0
  %v632 = vmul.f32 %v606, 0.16666667
  %v633 = vmul.f32 %v607, 0.16666667
  %v634 = vmul.f32 %v608, 0.16666667
  %v635 = vmul.f32 %v609, 0.16666667
  %v636 = vmul.f32 %v610, 0.16666667
  %v637 = vmul.f32 %v611, 0.16666667
  %v638 = vmul.f32 %v612, 0.16666667
  %v639 = vmul.f32 %v613, 0.16666667
  %v640 = vmul.f32 %v614, 0.16666667
  %v641 = vmul.f32 %v615, 0.16666667
  %v642 = vmul.f32 %v616, 0.16666667
  %v643 = vmul.f32 %v617, 0.16666667
  %v644 = vmul.f32 %v618, 0.16666667
  %v645 = vmul.f32 %v619, 0.16666667
  %v646 = vmul.f32 %v620, 0.16666667
  %v647 = vmul.f32 %v621, 0.16666667
  %v648 = vmul.f32 %v622, 0.16666667
  %v649 = vmul.f32 %v623, 0.16666667
  %v650 = vmul.f32 %v624, 0.16666667
  %v651 = vmul.f32 %v625, 0.16666667
  %v652 = vmul.f32 %v626, 0.16666667
  %v653 = vmul.f32 %v627, 0.16666667
  %v654 = vmul.f32 %v628, 0.16666667
  %v655 = vmul.f32 %v629, 0.16666667
  %v656 = vmul.f32 %v630, 0.16666667
  %v657 = vmul.f32 %v631, 0.16666667
  %v658 = vmul.f32 %v632, %v452
  %v659 = vmul.f32 %v633, %v455
  %v660 = vmul.f32 %v634, %v460
  %v661 = vmul.f32 %v635, %v463
  %v662 = vmul.f32 %v636, %v468
  %v663 = vmul.f32 %v637, %v471
  %v664 = vmul.f32 %v638, %v476
  %v665 = vmul.f32 %v639, %v479
  %v666 = vmul.f32 %v640, %v484
  %v667 = vmul.f32 %v641, %v487
  %v668 = vmul.f32 %v642, %v492
  %v669 = vmul.f32 %v643, %v495
  %v670 = vmul.f32 %v644, %v500
  %v671 = vmul.f32 %v645, %v503
  %v672 = vmul.f32 %v646, %v508
  %v673 = vmul.f32 %v647, %v511
  %v674 = vmul.f32 %v648, %v516
  %v675 = vmul.f32 %v649, %v519
  %v676 = vmul.f32 %v650, %v524
  %v677 = vmul.f32 %v651, %v527
  %v678 = vmul.f32 %v652, %v532
  %v679 = vmul.f32 %v653, %v535
  %v680 = vmul.f32 %v654, %v540
  %v681 = vmul.f32 %v655, %v543
  %v682 = vmul.f32 %v656, %v548
  %v683 = vmul.f32 %v657, %v551
  %v684 = vpack.c.bf16 %v659, %v658
  %v685 = vpack.c.bf16 %v661, %v660
  %v686 = vpack.c.bf16 %v663, %v662
  %v687 = vpack.c.bf16 %v665, %v664
  %v688 = vpack.c.bf16 %v667, %v666
  %v689 = vpack.c.bf16 %v669, %v668
  %v690 = vpack.c.bf16 %v671, %v670
  %v691 = vpack.c.bf16 %v673, %v672
  %v692 = vpack.c.bf16 %v675, %v674
  %v693 = vpack.c.bf16 %v677, %v676
  %v694 = vpack.c.bf16 %v679, %v678
  %v695 = vpack.c.bf16 %v681, %v680
  %v696 = vpack.c.bf16 %v683, %v682
  %v697 = vld [vmem:[%s3] sm:$0xff]
  %v698 = vld [vmem:[%s3 + $0x8] sm:$0xff]
  %v699 = vld [vmem:[%s3 + $0x10] sm:$0xff]
  %v700 = vld [vmem:[%s3 + $0x18] sm:$0xff]
  %v701 = vld [vmem:[%s3 + $0x20] sm:$0xff]
  %v702 = vld [vmem:[%s3 + $0x28] sm:$0xff]
  %v703 = vld [vmem:[%s3 + $0x30] sm:$0xff]
  %v704 = vld [vmem:[%s3 + $0x38] sm:$0xff]
  %v705 = vld [vmem:[%s3 + $0x40] sm:$0xff]
  %v706 = vld [vmem:[%s3 + $0x48] sm:$0xff]
  %v707 = vld [vmem:[%s3 + $0x50] sm:$0xff]
  %v708 = vld [vmem:[%s3 + $0x58] sm:$0xff]
  %v709 = vld [vmem:[%s3 + $0x60] sm:$0xff]
  %v710 = vld [vmem:[%s3 + $0x68] sm:$0xff]
  %v711 = vld [vmem:[%s3 + $0x70] sm:$0xff]
  %v712 = vld [vmem:[%s3 + $0x78] sm:$0xff]
  %v713 = vld [vmem:[%s3 + $0x80] sm:$0xff]
  %v714 = vld [vmem:[%s3 + $0x88] sm:$0xff]
  %v715 = vld [vmem:[%s3 + $0x90] sm:$0xff]
  %v716 = vld [vmem:[%s3 + $0x98] sm:$0xff]
  %v717 = vld [vmem:[%s3 + $0xa0] sm:$0xff]
  %v718 = vld [vmem:[%s3 + $0xa8] sm:$0xff]
  %v719 = vld [vmem:[%s3 + $0xb0] sm:$0xff]
  %v720 = vld [vmem:[%s3 + $0xb8] sm:$0xff]
  %v721 = vld [vmem:[%s3 + $0xc0] sm:$0xff]
  %v722 = vld [vmem:[%s3 + $0xc8] sm:$0xff]
  %v723 = vld [vmem:[%s3 + $0xd0] sm:$0xff]
  %v724 = vld [vmem:[%s3 + $0xd8] sm:$0xff]
  %v725 = vld [vmem:[%s3 + $0xe0] sm:$0xff]
  %v726 = vld [vmem:[%s3 + $0xe8] sm:$0xff]
  %v727 = vld [vmem:[%s3 + $0xf0] sm:$0xff]
  %v728 = vld [vmem:[%s3 + $0xf8] sm:$0xff]
  %v730 = vlaneseq
  %v731 = vshrl.u32 %v730, 7
  %v732 = vsub.s32 0, %v731
  %v733 = vrot.slane %v27, %v732
  %v734 = vlaneseq
  %v735 = vshrl.u32 %v734, 7
  %v736 = vsub.s32 1, %v735
  %v737 = vrot.slane %v27, %v736
  %v738 = vlaneseq
  %v739 = vshrl.u32 %v738, 7
  %v740 = vsub.s32 2, %v739
  %v741 = vrot.slane %v27, %v740
  %v742 = vlaneseq
  %v743 = vshrl.u32 %v742, 7
  %v744 = vsub.s32 3, %v743
  %v745 = vrot.slane %v27, %v744
  %v782 = vunpack.c.l.b16 %v697
  %v783 = vunpack.c.h.b16 %v697
  %v784 = vunpack.c.l.b16 %v698
  %v785 = vunpack.c.h.b16 %v698
  %v786 = vunpack.c.l.b16 %v699
  %v787 = vunpack.c.h.b16 %v699
  %v788 = vunpack.c.l.b16 %v700
  %v789 = vunpack.c.h.b16 %v700
  %v790 = vunpack.c.l.b16 %v701
  %v791 = vunpack.c.h.b16 %v701
  %v792 = vunpack.c.l.b16 %v702
  %v793 = vunpack.c.h.b16 %v702
  %v794 = vunpack.c.l.b16 %v703
  %v795 = vunpack.c.h.b16 %v703
  %v796 = vunpack.c.l.b16 %v704
  %v797 = vunpack.c.h.b16 %v704
  %v798 = vunpack.c.l.b16 %v705
  %v799 = vunpack.c.h.b16 %v705
  %v800 = vunpack.c.l.b16 %v706
  %v801 = vunpack.c.h.b16 %v706
  %v802 = vunpack.c.l.b16 %v707
  %v803 = vunpack.c.h.b16 %v707
  %v804 = vunpack.c.l.b16 %v708
  %v805 = vunpack.c.h.b16 %v708
  %v806 = vunpack.c.l.b16 %v709
  %v807 = vunpack.c.h.b16 %v709
  %v808 = vunpack.c.l.b16 %v710
  %v809 = vunpack.c.h.b16 %v710
  %v810 = vunpack.c.l.b16 %v711
  %v811 = vunpack.c.h.b16 %v711
  %v812 = vunpack.c.l.b16 %v712
  %v813 = vunpack.c.h.b16 %v712
  %v814 = vunpack.c.l.b16 %v713
  %v815 = vunpack.c.h.b16 %v713
  %v816 = vunpack.c.l.b16 %v714
  %v817 = vunpack.c.h.b16 %v714
  %v818 = vunpack.c.l.b16 %v715
  %v819 = vunpack.c.h.b16 %v715
  %v820 = vunpack.c.l.b16 %v716
  %v821 = vunpack.c.h.b16 %v716
  %v822 = vunpack.c.l.b16 %v717
  %v823 = vunpack.c.h.b16 %v717
  %v824 = vunpack.c.l.b16 %v718
  %v825 = vunpack.c.h.b16 %v718
  %v826 = vunpack.c.l.b16 %v719
  %v827 = vunpack.c.h.b16 %v719
  %v828 = vunpack.c.l.b16 %v720
  %v829 = vunpack.c.h.b16 %v720
  %v830 = vunpack.c.l.b16 %v721
  %v831 = vunpack.c.h.b16 %v721
  %v832 = vunpack.c.l.b16 %v722
  %v833 = vunpack.c.h.b16 %v722
  %v834 = vunpack.c.l.b16 %v723
  %v835 = vunpack.c.h.b16 %v723
  %v836 = vunpack.c.l.b16 %v724
  %v837 = vunpack.c.h.b16 %v724
  %v838 = vunpack.c.l.b16 %v725
  %v839 = vunpack.c.h.b16 %v725
  %v840 = vunpack.c.l.b16 %v726
  %v841 = vunpack.c.h.b16 %v726
  %v842 = vunpack.c.l.b16 %v727
  %v843 = vunpack.c.h.b16 %v727
  %v844 = vunpack.c.l.b16 %v728
  %v845 = vunpack.c.h.b16 %v728
  %v846 = vpack.c.b16 %v786, %v782
  %v847 = vpack.c.b16 %v787, %v783
  %v848 = vpack.c.b16 %v788, %v784
  %v849 = vpack.c.b16 %v789, %v785
  %v850 = vpack.c.b16 %v794, %v790
  %v851 = vpack.c.b16 %v795, %v791
  %v852 = vpack.c.b16 %v796, %v792
  %v853 = vpack.c.b16 %v797, %v793
  %v854 = vpack.c.b16 %v802, %v798
  %v855 = vpack.c.b16 %v803, %v799
  %v856 = vpack.c.b16 %v804, %v800
  %v857 = vpack.c.b16 %v805, %v801
  %v858 = vpack.c.b16 %v810, %v806
  %v859 = vpack.c.b16 %v811, %v807
  %v860 = vpack.c.b16 %v812, %v808
  %v861 = vpack.c.b16 %v813, %v809
  %v862 = vpack.c.b16 %v818, %v814
  %v863 = vpack.c.b16 %v819, %v815
  %v864 = vpack.c.b16 %v820, %v816
  %v865 = vpack.c.b16 %v821, %v817
  %v866 = vpack.c.b16 %v826, %v822
  %v867 = vpack.c.b16 %v827, %v823
  %v868 = vpack.c.b16 %v828, %v824
  %v869 = vpack.c.b16 %v829, %v825
  %v870 = vpack.c.b16 %v834, %v830
  %v871 = vpack.c.b16 %v835, %v831
  %v872 = vpack.c.b16 %v836, %v832
  %v873 = vpack.c.b16 %v837, %v833
  %v874 = vpack.c.b16 %v842, %v838
  %v875 = vpack.c.b16 %v843, %v839
  %v876 = vpack.c.b16 %v844, %v840
  %v877 = vpack.c.b16 %v845, %v841
  %910 = vmatprep.subr.bf16.mxu0 %v847
  %911 = vmatpush1.bf16.msra.mxu0 %v846
  %912 = vmatprep.subr.bf16.mxu0 %v851
  %913 = vmatpush1.bf16.msra.mxu0 %v850
  %914 = vmatprep.subr.bf16.mxu0 %v855
  %915 = vmatpush1.bf16.msra.mxu0 %v854
  %916 = vmatprep.subr.bf16.mxu0 %v859
  %917 = vmatpush1.bf16.msra.mxu0 %v858
  %918 = vmatprep.subr.bf16.mxu0 %v863
  %919 = vmatpush1.bf16.msra.mxu0 %v862
  %920 = vmatprep.subr.bf16.mxu0 %v867
  %921 = vmatpush1.bf16.msra.mxu0 %v866
  %922 = vmatprep.subr.bf16.mxu0 %v871
  %923 = vmatpush1.bf16.msra.mxu0 %v870
  %924 = vmatprep.subr.bf16.mxu0 %v875
  %925 = vmatpush1.bf16.msra.mxu0 %v874
  %926 = vmatprep.subr.bf16.mxu0 0
  %927 = vmatpush1.bf16.msra.mxu0 0
  %928 = vmatprep.subr.bf16.mxu0 0
  %929 = vmatpush1.bf16.msra.mxu0 0
  %930 = vmatprep.subr.bf16.mxu0 0
  %931 = vmatpush1.bf16.msra.mxu0 0
  %932 = vmatprep.subr.bf16.mxu0 0
  %933 = vmatpush1.bf16.msra.mxu0 0
  %934 = vmatprep.subr.bf16.mxu0 0
  %935 = vmatpush1.bf16.msra.mxu0 0
  %936 = vmatprep.subr.bf16.mxu0 0
  %937 = vmatpush1.bf16.msra.mxu0 0
  %938 = vmatprep.subr.bf16.mxu0 0
  %939 = vmatpush1.bf16.msra.mxu0 0
  %940 = vmatprep.subr.bf16.mxu0 0
  %941 = vmatpush1.bf16.msra.mxu0 0
  %942 = vmatprep.mubr.bf16.mxu0 0
  %943 = vmatmul.mubr.bf16.gmra.mrb[0].mxu0 %v684
  %v944 = vpop.f32.mrb[0].mxu0
  %v945 = vadd.f32 %v733, %v944
  %v946 = vpop.f32.mrb[0].mxu0
  %v947 = vadd.f32 %v737, %v946
  %v948 = vpop.f32.mrb[0].mxu0
  %v949 = vadd.f32 %v733, %v948
  %v950 = vpop.f32.mrb[0].mxu0
  %v951 = vadd.f32 %v737, %v950
  %952 = vmatprep.mubr.bf16.mxu0 0
  %953 = vmatmul.mubr.bf16.gmra.mrb[0].mxu0 %v685
  %v954 = vpop.f32.mrb[0].mxu0
  %v955 = vadd.f32 %v733, %v954
  %v956 = vpop.f32.mrb[0].mxu0
  %v957 = vadd.f32 %v737, %v956
  %v958 = vpop.f32.mrb[0].mxu0
  %v959 = vadd.f32 %v733, %v958
  %v960 = vpop.f32.mrb[0].mxu0
  %v961 = vadd.f32 %v737, %v960
  %962 = vmatprep.mubr.bf16.mxu0 0
  %963 = vmatmul.mubr.bf16.gmra.mrb[0].mxu0 %v686
  %v964 = vpop.f32.mrb[0].mxu0
  %v965 = vadd.f32 %v733, %v964
  %v966 = vpop.f32.mrb[0].mxu0
  %v967 = vadd.f32 %v737, %v966
  %v968 = vpop.f32.mrb[0].mxu0
  %v969 = vadd.f32 %v733, %v968
  %v970 = vpop.f32.mrb[0].mxu0
  %v971 = vadd.f32 %v737, %v970
  %972 = vmatprep.mubr.bf16.mxu0 0
  %973 = vmatmul.mubr.bf16.gmra.mrb[0].mxu0 %v687
  %v974 = vpop.f32.mrb[0].mxu0
  %v975 = vadd.f32 %v733, %v974
  %v976 = vpop.f32.mrb[0].mxu0
  %v977 = vadd.f32 %v737, %v976
  %v978 = vpop.f32.mrb[0].mxu0
  %v979 = vadd.f32 %v733, %v978
  %v980 = vpop.f32.mrb[0].mxu0
  %v981 = vadd.f32 %v737, %v980
  %982 = vmatprep.mubr.bf16.mxu0 0
  %983 = vmatmul.mubr.bf16.gmra.mrb[0].mxu0 %v688
  %v984 = vpop.f32.mrb[0].mxu0
  %v985 = vadd.f32 %v733, %v984
  %v986 = vpop.f32.mrb[0].mxu0
  %v987 = vadd.f32 %v737, %v986
  %v988 = vpop.f32.mrb[0].mxu0
  %v989 = vadd.f32 %v733, %v988
  %v990 = vpop.f32.mrb[0].mxu0
  %v991 = vadd.f32 %v737, %v990
  %992 = vmatprep.mubr.bf16.mxu0 0
  %993 = vmatmul.mubr.bf16.gmra.mrb[0].mxu0 %v689
  %v994 = vpop.f32.mrb[0].mxu0
  %v995 = vadd.f32 %v733, %v994
  %v996 = vpop.f32.mrb[0].mxu0
  %v997 = vadd.f32 %v737, %v996
  %v998 = vpop.f32.mrb[0].mxu0
  %v999 = vadd.f32 %v733, %v998
  %v1000 = vpop.f32.mrb[0].mxu0
  %v1001 = vadd.f32 %v737, %v1000
  %1002 = vmatprep.mubr.bf16.mxu0 0
  %1003 = vmatmul.mubr.bf16.gmra.mrb[0].mxu0 %v690
  %v1004 = vpop.f32.mrb[0].mxu0
  %v1005 = vadd.f32 %v733, %v1004
  %v1006 = vpop.f32.mrb[0].mxu0
  %v1007 = vadd.f32 %v737, %v1006
  %v1008 = vpop.f32.mrb[0].mxu0
  %v1009 = vadd.f32 %v733, %v1008
  %v1010 = vpop.f32.mrb[0].mxu0
  %v1011 = vadd.f32 %v737, %v1010
  %1012 = vmatprep.mubr.bf16.mxu0 0
  %1013 = vmatmul.mubr.bf16.gmra.mrb[0].mxu0 %v691
  %v1014 = vpop.f32.mrb[0].mxu0
  %v1015 = vadd.f32 %v733, %v1014
  %v1016 = vpop.f32.mrb[0].mxu0
  %v1017 = vadd.f32 %v737, %v1016
  %v1018 = vpop.f32.mrb[0].mxu0
  %v1019 = vadd.f32 %v733, %v1018
  %v1020 = vpop.f32.mrb[0].mxu0
  %v1021 = vadd.f32 %v737, %v1020
  %1022 = vmatprep.mubr.bf16.mxu0 0
  %1023 = vmatmul.mubr.bf16.gmra.mrb[0].mxu0 %v692
  %v1024 = vpop.f32.mrb[0].mxu0
  %v1025 = vadd.f32 %v733, %v1024
  %v1026 = vpop.f32.mrb[0].mxu0
  %v1027 = vadd.f32 %v737, %v1026
  %v1028 = vpop.f32.mrb[0].mxu0
  %v1029 = vadd.f32 %v733, %v1028
  %v1030 = vpop.f32.mrb[0].mxu0
  %v1031 = vadd.f32 %v737, %v1030
  %1032 = vmatprep.mubr.bf16.mxu0 0
  %1033 = vmatmul.mubr.bf16.gmra.mrb[0].mxu0 %v693
  %v1034 = vpop.f32.mrb[0].mxu0
  %v1035 = vadd.f32 %v733, %v1034
  %v1036 = vpop.f32.mrb[0].mxu0
  %v1037 = vadd.f32 %v737, %v1036
  %v1038 = vpop.f32.mrb[0].mxu0
  %v1039 = vadd.f32 %v733, %v1038
  %v1040 = vpop.f32.mrb[0].mxu0
  %v1041 = vadd.f32 %v737, %v1040
  %1042 = vmatprep.mubr.bf16.mxu0 0
  %1043 = vmatmul.mubr.bf16.gmra.mrb[0].mxu0 %v694
  %v1044 = vpop.f32.mrb[0].mxu0
  %v1045 = vadd.f32 %v733, %v1044
  %v1046 = vpop.f32.mrb[0].mxu0
  %v1047 = vadd.f32 %v737, %v1046
  %v1048 = vpop.f32.mrb[0].mxu0
  %v1049 = vadd.f32 %v733, %v1048
  %v1050 = vpop.f32.mrb[0].mxu0
  %v1051 = vadd.f32 %v737, %v1050
  %1052 = vmatprep.mubr.bf16.mxu0 0
  %1053 = vmatmul.mubr.bf16.gmra.mrb[0].mxu0 %v695
  %v1054 = vpop.f32.mrb[0].mxu0
  %v1055 = vadd.f32 %v733, %v1054
  %v1056 = vpop.f32.mrb[0].mxu0
  %v1057 = vadd.f32 %v737, %v1056
  %v1058 = vpop.f32.mrb[0].mxu0
  %v1059 = vadd.f32 %v733, %v1058
  %v1060 = vpop.f32.mrb[0].mxu0
  %v1061 = vadd.f32 %v737, %v1060
  %1062 = vmatprep.mubr.bf16.mxu0 0
  %1063 = vmatmul.mubr.bf16.gmra.mrb[0].mxu0 %v696
  %v1064 = vpop.f32.mrb[0].mxu0
  %v1065 = vadd.f32 %v733, %v1064
  %v1066 = vpop.f32.mrb[0].mxu0
  %v1067 = vadd.f32 %v737, %v1066
  %v1068 = vpop.f32.mrb[0].mxu0
  %v1069 = vadd.f32 %v733, %v1068
  %v1070 = vpop.f32.mrb[0].mxu0
  %v1071 = vadd.f32 %v737, %v1070
  %1072 = vdwg.mxu0
  %1073 = vmatprep.subr.bf16.mxu0 %v849
  %1074 = vmatpush1.bf16.msra.mxu0 %v848
  %1075 = vmatprep.subr.bf16.mxu0 %v853
  %1076 = vmatpush1.bf16.msra.mxu0 %v852
  %1077 = vmatprep.subr.bf16.mxu0 %v857
  %1078 = vmatpush1.bf16.msra.mxu0 %v856
  %1079 = vmatprep.subr.bf16.mxu0 %v861
  %1080 = vmatpush1.bf16.msra.mxu0 %v860
  %1081 = vmatprep.subr.bf16.mxu0 %v865
  %1082 = vmatpush1.bf16.msra.mxu0 %v864
  %1083 = vmatprep.subr.bf16.mxu0 %v869
  %1084 = vmatpush1.bf16.msra.mxu0 %v868
  %1085 = vmatprep.subr.bf16.mxu0 %v873
  %1086 = vmatpush1.bf16.msra.mxu0 %v872
  %1087 = vmatprep.subr.bf16.mxu0 %v877
  %1088 = vmatpush1.bf16.msra.mxu0 %v876
  %1089 = vmatprep.subr.bf16.mxu0 0
  %1090 = vmatpush1.bf16.msra.mxu0 0
  %1091 = vmatprep.subr.bf16.mxu0 0
  %1092 = vmatpush1.bf16.msra.mxu0 0
  %1093 = vmatprep.subr.bf16.mxu0 0
  %1094 = vmatpush1.bf16.msra.mxu0 0
  %1095 = vmatprep.subr.bf16.mxu0 0
  %1096 = vmatpush1.bf16.msra.mxu0 0
  %1097 = vmatprep.subr.bf16.mxu0 0
  %1098 = vmatpush1.bf16.msra.mxu0 0
  %1099 = vmatprep.subr.bf16.mxu0 0
  %1100 = vmatpush1.bf16.msra.mxu0 0
  %1101 = vmatprep.subr.bf16.mxu0 0
  %1102 = vmatpush1.bf16.msra.mxu0 0
  %1103 = vmatprep.subr.bf16.mxu0 0
  %1104 = vmatpush1.bf16.msra.mxu0 0
  %1105 = vmatprep.mubr.bf16.mxu0 0
  %1106 = vmatmul.mubr.bf16.gmra.mrb[0].mxu0 %v684
  %v1107 = vpop.f32.mrb[0].mxu0
  %v1108 = vadd.f32 %v741, %v1107
  %v1109 = vpop.f32.mrb[0].mxu0
  %v1110 = vadd.f32 %v745, %v1109
  %v1111 = vpop.f32.mrb[0].mxu0
  %v1112 = vadd.f32 %v741, %v1111
  %v1113 = vpop.f32.mrb[0].mxu0
  %v1114 = vadd.f32 %v745, %v1113
  %1115 = vmatprep.mubr.bf16.mxu0 0
  %1116 = vmatmul.mubr.bf16.gmra.mrb[0].mxu0 %v685
  %v1117 = vpop.f32.mrb[0].mxu0
  %v1118 = vadd.f32 %v741, %v1117
  %v1119 = vpop.f32.mrb[0].mxu0
  %v1120 = vadd.f32 %v745, %v1119
  %v1121 = vpop.f32.mrb[0].mxu0
  %v1122 = vadd.f32 %v741, %v1121
  %v1123 = vpop.f32.mrb[0].mxu0
  %v1124 = vadd.f32 %v745, %v1123
  %1125 = vmatprep.mubr.bf16.mxu0 0
  %1126 = vmatmul.mubr.bf16.gmra.mrb[0].mxu0 %v686
  %v1127 = vpop.f32.mrb[0].mxu0
  %v1128 = vadd.f32 %v741, %v1127
  %v1129 = vpop.f32.mrb[0].mxu0
  %v1130 = vadd.f32 %v745, %v1129
  %v1131 = vpop.f32.mrb[0].mxu0
  %v1132 = vadd.f32 %v741, %v1131
  %v1133 = vpop.f32.mrb[0].mxu0
  %v1134 = vadd.f32 %v745, %v1133
  %1135 = vmatprep.mubr.bf16.mxu0 0
  %1136 = vmatmul.mubr.bf16.gmra.mrb[0].mxu0 %v687
  %v1137 = vpop.f32.mrb[0].mxu0
  %v1138 = vadd.f32 %v741, %v1137
  %v1139 = vpop.f32.mrb[0].mxu0
  %v1140 = vadd.f32 %v745, %v1139
  %v1141 = vpop.f32.mrb[0].mxu0
  %v1142 = vadd.f32 %v741, %v1141
  %v1143 = vpop.f32.mrb[0].mxu0
  %v1144 = vadd.f32 %v745, %v1143
  %1145 = vmatprep.mubr.bf16.mxu0 0
  %1146 = vmatmul.mubr.bf16.gmra.mrb[0].mxu0 %v688
  %v1147 = vpop.f32.mrb[0].mxu0
  %v1148 = vadd.f32 %v741, %v1147
  %v1149 = vpop.f32.mrb[0].mxu0
  %v1150 = vadd.f32 %v745, %v1149
  %v1151 = vpop.f32.mrb[0].mxu0
  %v1152 = vadd.f32 %v741, %v1151
  %v1153 = vpop.f32.mrb[0].mxu0
  %v1154 = vadd.f32 %v745, %v1153
  %1155 = vmatprep.mubr.bf16.mxu0 0
  %1156 = vmatmul.mubr.bf16.gmra.mrb[0].mxu0 %v689
  %v1157 = vpop.f32.mrb[0].mxu0
  %v1158 = vadd.f32 %v741, %v1157
  %v1159 = vpop.f32.mrb[0].mxu0
  %v1160 = vadd.f32 %v745, %v1159
  %v1161 = vpop.f32.mrb[0].mxu0
  %v1162 = vadd.f32 %v741, %v1161
  %v1163 = vpop.f32.mrb[0].mxu0
  %v1164 = vadd.f32 %v745, %v1163
  %1165 = vmatprep.mubr.bf16.mxu0 0
  %1166 = vmatmul.mubr.bf16.gmra.mrb[0].mxu0 %v690
  %v1167 = vpop.f32.mrb[0].mxu0
  %v1168 = vadd.f32 %v741, %v1167
  %v1169 = vpop.f32.mrb[0].mxu0
  %v1170 = vadd.f32 %v745, %v1169
  %v1171 = vpop.f32.mrb[0].mxu0
  %v1172 = vadd.f32 %v741, %v1171
  %v1173 = vpop.f32.mrb[0].mxu0
  %v1174 = vadd.f32 %v745, %v1173
  %1175 = vmatprep.mubr.bf16.mxu0 0
  %1176 = vmatmul.mubr.bf16.gmra.mrb[0].mxu0 %v691
  %v1177 = vpop.f32.mrb[0].mxu0
  %v1178 = vadd.f32 %v741, %v1177
  %v1179 = vpop.f32.mrb[0].mxu0
  %v1180 = vadd.f32 %v745, %v1179
  %v1181 = vpop.f32.mrb[0].mxu0
  %v1182 = vadd.f32 %v741, %v1181
  %v1183 = vpop.f32.mrb[0].mxu0
  %v1184 = vadd.f32 %v745, %v1183
  %1185 = vmatprep.mubr.bf16.mxu0 0
  %1186 = vmatmul.mubr.bf16.gmra.mrb[0].mxu0 %v692
  %v1187 = vpop.f32.mrb[0].mxu0
  %v1188 = vadd.f32 %v741, %v1187
  %v1189 = vpop.f32.mrb[0].mxu0
  %v1190 = vadd.f32 %v745, %v1189
  %v1191 = vpop.f32.mrb[0].mxu0
  %v1192 = vadd.f32 %v741, %v1191
  %v1193 = vpop.f32.mrb[0].mxu0
  %v1194 = vadd.f32 %v745, %v1193
  %1195 = vmatprep.mubr.bf16.mxu0 0
  %1196 = vmatmul.mubr.bf16.gmra.mrb[0].mxu0 %v693
  %v1197 = vpop.f32.mrb[0].mxu0
  %v1198 = vadd.f32 %v741, %v1197
  %v1199 = vpop.f32.mrb[0].mxu0
  %v1200 = vadd.f32 %v745, %v1199
  %v1201 = vpop.f32.mrb[0].mxu0
  %v1202 = vadd.f32 %v741, %v1201
  %v1203 = vpop.f32.mrb[0].mxu0
  %v1204 = vadd.f32 %v745, %v1203
  %1205 = vmatprep.mubr.bf16.mxu0 0
  %1206 = vmatmul.mubr.bf16.gmra.mrb[0].mxu0 %v694
  %v1207 = vpop.f32.mrb[0].mxu0
  %v1208 = vadd.f32 %v741, %v1207
  %v1209 = vpop.f32.mrb[0].mxu0
  %v1210 = vadd.f32 %v745, %v1209
  %v1211 = vpop.f32.mrb[0].mxu0
  %v1212 = vadd.f32 %v741, %v1211
  %v1213 = vpop.f32.mrb[0].mxu0
  %v1214 = vadd.f32 %v745, %v1213
  %1215 = vmatprep.mubr.bf16.mxu0 0
  %1216 = vmatmul.mubr.bf16.gmra.mrb[0].mxu0 %v695
  %v1217 = vpop.f32.mrb[0].mxu0
  %v1218 = vadd.f32 %v741, %v1217
  %v1219 = vpop.f32.mrb[0].mxu0
  %v1220 = vadd.f32 %v745, %v1219
  %v1221 = vpop.f32.mrb[0].mxu0
  %v1222 = vadd.f32 %v741, %v1221
  %v1223 = vpop.f32.mrb[0].mxu0
  %v1224 = vadd.f32 %v745, %v1223
  %1225 = vmatprep.mubr.bf16.mxu0 0
  %1226 = vmatmul.mubr.bf16.gmra.mrb[0].mxu0 %v696
  %v1227 = vpop.f32.mrb[0].mxu0
  %v1228 = vadd.f32 %v741, %v1227
  %v1229 = vpop.f32.mrb[0].mxu0
  %v1230 = vadd.f32 %v745, %v1229
  %v1231 = vpop.f32.mrb[0].mxu0
  %v1232 = vadd.f32 %v741, %v1231
  %v1233 = vpop.f32.mrb[0].mxu0
  %v1234 = vadd.f32 %v745, %v1233
  %1235 = vdwg.mxu0
  %v1236 = vadd.f32 %v945, 3.0
  %v1237 = vadd.f32 %v947, 3.0
  %v1238 = vadd.f32 %v1108, 3.0
  %v1239 = vadd.f32 %v1110, 3.0
  %v1240 = vadd.f32 %v949, 3.0
  %v1241 = vadd.f32 %v951, 3.0
  %v1242 = vadd.f32 %v1112, 3.0
  %v1243 = vadd.f32 %v1114, 3.0
  %v1244 = vadd.f32 %v955, 3.0
  %v1245 = vadd.f32 %v957, 3.0
  %v1246 = vadd.f32 %v1118, 3.0
  %v1247 = vadd.f32 %v1120, 3.0
  %v1248 = vadd.f32 %v959, 3.0
  %v1249 = vadd.f32 %v961, 3.0
  %v1250 = vadd.f32 %v1122, 3.0
  %v1251 = vadd.f32 %v1124, 3.0
  %v1252 = vadd.f32 %v965, 3.0
  %v1253 = vadd.f32 %v967, 3.0
  %v1254 = vadd.f32 %v1128, 3.0
  %v1255 = vadd.f32 %v1130, 3.0
  %v1256 = vadd.f32 %v969, 3.0
  %v1257 = vadd.f32 %v971, 3.0
  %v1258 = vadd.f32 %v1132, 3.0
  %v1259 = vadd.f32 %v1134, 3.0
  %v1260 = vadd.f32 %v975, 3.0
  %v1261 = vadd.f32 %v977, 3.0
  %v1262 = vadd.f32 %v1138, 3.0
  %v1263 = vadd.f32 %v1140, 3.0
  %v1264 = vadd.f32 %v979, 3.0
  %v1265 = vadd.f32 %v981, 3.0
  %v1266 = vadd.f32 %v1142, 3.0
  %v1267 = vadd.f32 %v1144, 3.0
  %v1268 = vadd.f32 %v985, 3.0
  %v1269 = vadd.f32 %v987, 3.0
  %v1270 = vadd.f32 %v1148, 3.0
  %v1271 = vadd.f32 %v1150, 3.0
  %v1272 = vadd.f32 %v989, 3.0
  %v1273 = vadd.f32 %v991, 3.0
  %v1274 = vadd.f32 %v1152, 3.0
  %v1275 = vadd.f32 %v1154, 3.0
  %v1276 = vadd.f32 %v995, 3.0
  %v1277 = vadd.f32 %v997, 3.0
  %v1278 = vadd.f32 %v1158, 3.0
  %v1279 = vadd.f32 %v1160, 3.0
  %v1280 = vadd.f32 %v999, 3.0
  %v1281 = vadd.f32 %v1001, 3.0
  %v1282 = vadd.f32 %v1162, 3.0
  %v1283 = vadd.f32 %v1164, 3.0
  %v1284 = vadd.f32 %v1005, 3.0
  %v1285 = vadd.f32 %v1007, 3.0
  %v1286 = vadd.f32 %v1168, 3.0
  %v1287 = vadd.f32 %v1170, 3.0
  %v1288 = vadd.f32 %v1009, 3.0
  %v1289 = vadd.f32 %v1011, 3.0
  %v1290 = vadd.f32 %v1172, 3.0
  %v1291 = vadd.f32 %v1174, 3.0
  %v1292 = vadd.f32 %v1015, 3.0
  %v1293 = vadd.f32 %v1017, 3.0
  %v1294 = vadd.f32 %v1178, 3.0
  %v1295 = vadd.f32 %v1180, 3.0
  %v1296 = vadd.f32 %v1019, 3.0
  %v1297 = vadd.f32 %v1021, 3.0
  %v1298 = vadd.f32 %v1182, 3.0
  %v1299 = vadd.f32 %v1184, 3.0
  %v1300 = vadd.f32 %v1025, 3.0
  %v1301 = vadd.f32 %v1027, 3.0
  %v1302 = vadd.f32 %v1188, 3.0
  %v1303 = vadd.f32 %v1190, 3.0
  %v1304 = vadd.f32 %v1029, 3.0
  %v1305 = vadd.f32 %v1031, 3.0
  %v1306 = vadd.f32 %v1192, 3.0
  %v1307 = vadd.f32 %v1194, 3.0
  %v1308 = vadd.f32 %v1035, 3.0
  %v1309 = vadd.f32 %v1037, 3.0
  %v1310 = vadd.f32 %v1198, 3.0
  %v1311 = vadd.f32 %v1200, 3.0
  %v1312 = vadd.f32 %v1039, 3.0
  %v1313 = vadd.f32 %v1041, 3.0
  %v1314 = vadd.f32 %v1202, 3.0
  %v1315 = vadd.f32 %v1204, 3.0
  %v1316 = vadd.f32 %v1045, 3.0
  %v1317 = vadd.f32 %v1047, 3.0
  %v1318 = vadd.f32 %v1208, 3.0
  %v1319 = vadd.f32 %v1210, 3.0
  %v1320 = vadd.f32 %v1049, 3.0
  %v1321 = vadd.f32 %v1051, 3.0
  %v1322 = vadd.f32 %v1212, 3.0
  %v1323 = vadd.f32 %v1214, 3.0
  %v1324 = vadd.f32 %v1055, 3.0
  %v1325 = vadd.f32 %v1057, 3.0
  %v1326 = vadd.f32 %v1218, 3.0
  %v1327 = vadd.f32 %v1220, 3.0
  %v1328 = vadd.f32 %v1059, 3.0
  %v1329 = vadd.f32 %v1061, 3.0
  %v1330 = vadd.f32 %v1222, 3.0
  %v1331 = vadd.f32 %v1224, 3.0
  %v1332 = vadd.f32 %v1065, 3.0
  %v1333 = vadd.f32 %v1067, 3.0
  %v1334 = vadd.f32 %v1228, 3.0
  %v1335 = vadd.f32 %v1230, 3.0
  %v1336 = vadd.f32 %v1069, 3.0
  %v1337 = vadd.f32 %v1071, 3.0
  %v1338 = vadd.f32 %v1232, 3.0
  %v1339 = vadd.f32 %v1234, 3.0
  %v1340 = vmax.f32 %v1236, 0.0
  %v1341 = vmax.f32 %v1237, 0.0
  %v1342 = vmax.f32 %v1238, 0.0
  %v1343 = vmax.f32 %v1239, 0.0
  %v1344 = vmax.f32 %v1240, 0.0
  %v1345 = vmax.f32 %v1241, 0.0
  %v1346 = vmax.f32 %v1242, 0.0
  %v1347 = vmax.f32 %v1243, 0.0
  %v1348 = vmax.f32 %v1244, 0.0
  %v1349 = vmax.f32 %v1245, 0.0
  %v1350 = vmax.f32 %v1246, 0.0
  %v1351 = vmax.f32 %v1247, 0.0
  %v1352 = vmax.f32 %v1248, 0.0
  %v1353 = vmax.f32 %v1249, 0.0
  %v1354 = vmax.f32 %v1250, 0.0
  %v1355 = vmax.f32 %v1251, 0.0
  %v1356 = vmax.f32 %v1252, 0.0
  %v1357 = vmax.f32 %v1253, 0.0
  %v1358 = vmax.f32 %v1254, 0.0
  %v1359 = vmax.f32 %v1255, 0.0
  %v1360 = vmax.f32 %v1256, 0.0
  %v1361 = vmax.f32 %v1257, 0.0
  %v1362 = vmax.f32 %v1258, 0.0
  %v1363 = vmax.f32 %v1259, 0.0
  %v1364 = vmax.f32 %v1260, 0.0
  %v1365 = vmax.f32 %v1261, 0.0
  %v1366 = vmax.f32 %v1262, 0.0
  %v1367 = vmax.f32 %v1263, 0.0
  %v1368 = vmax.f32 %v1264, 0.0
  %v1369 = vmax.f32 %v1265, 0.0
  %v1370 = vmax.f32 %v1266, 0.0
  %v1371 = vmax.f32 %v1267, 0.0
  %v1372 = vmax.f32 %v1268, 0.0
  %v1373 = vmax.f32 %v1269, 0.0
  %v1374 = vmax.f32 %v1270, 0.0
  %v1375 = vmax.f32 %v1271, 0.0
  %v1376 = vmax.f32 %v1272, 0.0
  %v1377 = vmax.f32 %v1273, 0.0
  %v1378 = vmax.f32 %v1274, 0.0
  %v1379 = vmax.f32 %v1275, 0.0
  %v1380 = vmax.f32 %v1276, 0.0
  %v1381 = vmax.f32 %v1277, 0.0
  %v1382 = vmax.f32 %v1278, 0.0
  %v1383 = vmax.f32 %v1279, 0.0
  %v1384 = vmax.f32 %v1280, 0.0
  %v1385 = vmax.f32 %v1281, 0.0
  %v1386 = vmax.f32 %v1282, 0.0
  %v1387 = vmax.f32 %v1283, 0.0
  %v1388 = vmax.f32 %v1284, 0.0
  %v1389 = vmax.f32 %v1285, 0.0
  %v1390 = vmax.f32 %v1286, 0.0
  %v1391 = vmax.f32 %v1287, 0.0
  %v1392 = vmax.f32 %v1288, 0.0
  %v1393 = vmax.f32 %v1289, 0.0
  %v1394 = vmax.f32 %v1290, 0.0
  %v1395 = vmax.f32 %v1291, 0.0
  %v1396 = vmax.f32 %v1292, 0.0
  %v1397 = vmax.f32 %v1293, 0.0
  %v1398 = vmax.f32 %v1294, 0.0
  %v1399 = vmax.f32 %v1295, 0.0
  %v1400 = vmax.f32 %v1296, 0.0
  %v1401 = vmax.f32 %v1297, 0.0
  %v1402 = vmax.f32 %v1298, 0.0
  %v1403 = vmax.f32 %v1299, 0.0
  %v1404 = vmax.f32 %v1300, 0.0
  %v1405 = vmax.f32 %v1301, 0.0
  %v1406 = vmax.f32 %v1302, 0.0
  %v1407 = vmax.f32 %v1303, 0.0
  %v1408 = vmax.f32 %v1304, 0.0
  %v1409 = vmax.f32 %v1305, 0.0
  %v1410 = vmax.f32 %v1306, 0.0
  %v1411 = vmax.f32 %v1307, 0.0
  %v1412 = vmax.f32 %v1308, 0.0
  %v1413 = vmax.f32 %v1309, 0.0
  %v1414 = vmax.f32 %v1310, 0.0
  %v1415 = vmax.f32 %v1311, 0.0
  %v1416 = vmax.f32 %v1312, 0.0
  %v1417 = vmax.f32 %v1313, 0.0
  %v1418 = vmax.f32 %v1314, 0.0
  %v1419 = vmax.f32 %v1315, 0.0
  %v1420 = vmax.f32 %v1316, 0.0
  %v1421 = vmax.f32 %v1317, 0.0
  %v1422 = vmax.f32 %v1318, 0.0
  %v1423 = vmax.f32 %v1319, 0.0
  %v1424 = vmax.f32 %v1320, 0.0
  %v1425 = vmax.f32 %v1321, 0.0
  %v1426 = vmax.f32 %v1322, 0.0
  %v1427 = vmax.f32 %v1323, 0.0
  %v1428 = vmax.f32 %v1324, 0.0
  %v1429 = vmax.f32 %v1325, 0.0
  %v1430 = vmax.f32 %v1326, 0.0
  %v1431 = vmax.f32 %v1327, 0.0
  %v1432 = vmax.f32 %v1328, 0.0
  %v1433 = vmax.f32 %v1329, 0.0
  %v1434 = vmax.f32 %v1330, 0.0
  %v1435 = vmax.f32 %v1331, 0.0
  %v1436 = vmax.f32 %v1332, 0.0
  %v1437 = vmax.f32 %v1333, 0.0
  %v1438 = vmax.f32 %v1334, 0.0
  %v1439 = vmax.f32 %v1335, 0.0
  %v1440 = vmax.f32 %v1336, 0.0
  %v1441 = vmax.f32 %v1337, 0.0
  %v1442 = vmax.f32 %v1338, 0.0
  %v1443 = vmax.f32 %v1339, 0.0
  %v1444 = vmin.f32 %v1340, 6.0
  %v1445 = vmin.f32 %v1341, 6.0
  %v1446 = vmin.f32 %v1342, 6.0
  %v1447 = vmin.f32 %v1343, 6.0
  %v1448 = vmin.f32 %v1344, 6.0
  %v1449 = vmin.f32 %v1345, 6.0
  %v1450 = vmin.f32 %v1346, 6.0
  %v1451 = vmin.f32 %v1347, 6.0
  %v1452 = vmin.f32 %v1348, 6.0
  %v1453 = vmin.f32 %v1349, 6.0
  %v1454 = vmin.f32 %v1350, 6.0
  %v1455 = vmin.f32 %v1351, 6.0
  %v1456 = vmin.f32 %v1352, 6.0
  %v1457 = vmin.f32 %v1353, 6.0
  %v1458 = vmin.f32 %v1354, 6.0
  %v1459 = vmin.f32 %v1355, 6.0
  %v1460 = vmin.f32 %v1356, 6.0
  %v1461 = vmin.f32 %v1357, 6.0
  %v1462 = vmin.f32 %v1358, 6.0
  %v1463 = vmin.f32 %v1359, 6.0
  %v1464 = vmin.f32 %v1360, 6.0
  %v1465 = vmin.f32 %v1361, 6.0
  %v1466 = vmin.f32 %v1362, 6.0
  %v1467 = vmin.f32 %v1363, 6.0
  %v1468 = vmin.f32 %v1364, 6.0
  %v1469 = vmin.f32 %v1365, 6.0
  %v1470 = vmin.f32 %v1366, 6.0
  %v1471 = vmin.f32 %v1367, 6.0
  %v1472 = vmin.f32 %v1368, 6.0
  %v1473 = vmin.f32 %v1369, 6.0
  %v1474 = vmin.f32 %v1370, 6.0
  %v1475 = vmin.f32 %v1371, 6.0
  %v1476 = vmin.f32 %v1372, 6.0
  %v1477 = vmin.f32 %v1373, 6.0
  %v1478 = vmin.f32 %v1374, 6.0
  %v1479 = vmin.f32 %v1375, 6.0
  %v1480 = vmin.f32 %v1376, 6.0
  %v1481 = vmin.f32 %v1377, 6.0
  %v1482 = vmin.f32 %v1378, 6.0
  %v1483 = vmin.f32 %v1379, 6.0
  %v1484 = vmin.f32 %v1380, 6.0
  %v1485 = vmin.f32 %v1381, 6.0
  %v1486 = vmin.f32 %v1382, 6.0
  %v1487 = vmin.f32 %v1383, 6.0
  %v1488 = vmin.f32 %v1384, 6.0
  %v1489 = vmin.f32 %v1385, 6.0
  %v1490 = vmin.f32 %v1386, 6.0
  %v1491 = vmin.f32 %v1387, 6.0
  %v1492 = vmin.f32 %v1388, 6.0
  %v1493 = vmin.f32 %v1389, 6.0
  %v1494 = vmin.f32 %v1390, 6.0
  %v1495 = vmin.f32 %v1391, 6.0
  %v1496 = vmin.f32 %v1392, 6.0
  %v1497 = vmin.f32 %v1393, 6.0
  %v1498 = vmin.f32 %v1394, 6.0
  %v1499 = vmin.f32 %v1395, 6.0
  %v1500 = vmin.f32 %v1396, 6.0
  %v1501 = vmin.f32 %v1397, 6.0
  %v1502 = vmin.f32 %v1398, 6.0
  %v1503 = vmin.f32 %v1399, 6.0
  %v1504 = vmin.f32 %v1400, 6.0
  %v1505 = vmin.f32 %v1401, 6.0
  %v1506 = vmin.f32 %v1402, 6.0
  %v1507 = vmin.f32 %v1403, 6.0
  %v1508 = vmin.f32 %v1404, 6.0
  %v1509 = vmin.f32 %v1405, 6.0
  %v1510 = vmin.f32 %v1406, 6.0
  %v1511 = vmin.f32 %v1407, 6.0
  %v1512 = vmin.f32 %v1408, 6.0
  %v1513 = vmin.f32 %v1409, 6.0
  %v1514 = vmin.f32 %v1410, 6.0
  %v1515 = vmin.f32 %v1411, 6.0
  %v1516 = vmin.f32 %v1412, 6.0
  %v1517 = vmin.f32 %v1413, 6.0
  %v1518 = vmin.f32 %v1414, 6.0
  %v1519 = vmin.f32 %v1415, 6.0
  %v1520 = vmin.f32 %v1416, 6.0
  %v1521 = vmin.f32 %v1417, 6.0
  %v1522 = vmin.f32 %v1418, 6.0
  %v1523 = vmin.f32 %v1419, 6.0
  %v1524 = vmin.f32 %v1420, 6.0
  %v1525 = vmin.f32 %v1421, 6.0
  %v1526 = vmin.f32 %v1422, 6.0
  %v1527 = vmin.f32 %v1423, 6.0
  %v1528 = vmin.f32 %v1424, 6.0
  %v1529 = vmin.f32 %v1425, 6.0
  %v1530 = vmin.f32 %v1426, 6.0
  %v1531 = vmin.f32 %v1427, 6.0
  %v1532 = vmin.f32 %v1428, 6.0
  %v1533 = vmin.f32 %v1429, 6.0
  %v1534 = vmin.f32 %v1430, 6.0
  %v1535 = vmin.f32 %v1431, 6.0
  %v1536 = vmin.f32 %v1432, 6.0
  %v1537 = vmin.f32 %v1433, 6.0
  %v1538 = vmin.f32 %v1434, 6.0
  %v1539 = vmin.f32 %v1435, 6.0
  %v1540 = vmin.f32 %v1436, 6.0
  %v1541 = vmin.f32 %v1437, 6.0
  %v1542 = vmin.f32 %v1438, 6.0
  %v1543 = vmin.f32 %v1439, 6.0
  %v1544 = vmin.f32 %v1440, 6.0
  %v1545 = vmin.f32 %v1441, 6.0
  %v1546 = vmin.f32 %v1442, 6.0
  %v1547 = vmin.f32 %v1443, 6.0
  %v1548 = vmul.f32 %v1444, 0.16666667
  %v1549 = vmul.f32 %v1445, 0.16666667
  %v1550 = vmul.f32 %v1446, 0.16666667
  %v1551 = vmul.f32 %v1447, 0.16666667
  %v1552 = vmul.f32 %v1448, 0.16666667
  %v1553 = vmul.f32 %v1449, 0.16666667
  %v1554 = vmul.f32 %v1450, 0.16666667
  %v1555 = vmul.f32 %v1451, 0.16666667
  %v1556 = vmul.f32 %v1452, 0.16666667
  %v1557 = vmul.f32 %v1453, 0.16666667
  %v1558 = vmul.f32 %v1454, 0.16666667
  %v1559 = vmul.f32 %v1455, 0.16666667
  %v1560 = vmul.f32 %v1456, 0.16666667
  %v1561 = vmul.f32 %v1457, 0.16666667
  %v1562 = vmul.f32 %v1458, 0.16666667
  %v1563 = vmul.f32 %v1459, 0.16666667
  %v1564 = vmul.f32 %v1460, 0.16666667
  %v1565 = vmul.f32 %v1461, 0.16666667
  %v1566 = vmul.f32 %v1462, 0.16666667
  %v1567 = vmul.f32 %v1463, 0.16666667
  %v1568 = vmul.f32 %v1464, 0.16666667
  %v1569 = vmul.f32 %v1465, 0.16666667
  %v1570 = vmul.f32 %v1466, 0.16666667
  %v1571 = vmul.f32 %v1467, 0.16666667
  %v1572 = vmul.f32 %v1468, 0.16666667
  %v1573 = vmul.f32 %v1469, 0.16666667
  %v1574 = vmul.f32 %v1470, 0.16666667
  %v1575 = vmul.f32 %v1471, 0.16666667
  %v1576 = vmul.f32 %v1472, 0.16666667
  %v1577 = vmul.f32 %v1473, 0.16666667
  %v1578 = vmul.f32 %v1474, 0.16666667
  %v1579 = vmul.f32 %v1475, 0.16666667
  %v1580 = vmul.f32 %v1476, 0.16666667
  %v1581 = vmul.f32 %v1477, 0.16666667
  %v1582 = vmul.f32 %v1478, 0.16666667
  %v1583 = vmul.f32 %v1479, 0.16666667
  %v1584 = vmul.f32 %v1480, 0.16666667
  %v1585 = vmul.f32 %v1481, 0.16666667
  %v1586 = vmul.f32 %v1482, 0.16666667
  %v1587 = vmul.f32 %v1483, 0.16666667
  %v1588 = vmul.f32 %v1484, 0.16666667
  %v1589 = vmul.f32 %v1485, 0.16666667
  %v1590 = vmul.f32 %v1486, 0.16666667
  %v1591 = vmul.f32 %v1487, 0.16666667
  %v1592 = vmul.f32 %v1488, 0.16666667
  %v1593 = vmul.f32 %v1489, 0.16666667
  %v1594 = vmul.f32 %v1490, 0.16666667
  %v1595 = vmul.f32 %v1491, 0.16666667
  %v1596 = vmul.f32 %v1492, 0.16666667
  %v1597 = vmul.f32 %v1493, 0.16666667
  %v1598 = vmul.f32 %v1494, 0.16666667
  %v1599 = vmul.f32 %v1495, 0.16666667
  %v1600 = vmul.f32 %v1496, 0.16666667
  %v1601 = vmul.f32 %v1497, 0.16666667
  %v1602 = vmul.f32 %v1498, 0.16666667
  %v1603 = vmul.f32 %v1499, 0.16666667
  %v1604 = vmul.f32 %v1500, 0.16666667
  %v1605 = vmul.f32 %v1501, 0.16666667
  %v1606 = vmul.f32 %v1502, 0.16666667
  %v1607 = vmul.f32 %v1503, 0.16666667
  %v1608 = vmul.f32 %v1504, 0.16666667
  %v1609 = vmul.f32 %v1505, 0.16666667
  %v1610 = vmul.f32 %v1506, 0.16666667
  %v1611 = vmul.f32 %v1507, 0.16666667
  %v1612 = vmul.f32 %v1508, 0.16666667
  %v1613 = vmul.f32 %v1509, 0.16666667
  %v1614 = vmul.f32 %v1510, 0.16666667
  %v1615 = vmul.f32 %v1511, 0.16666667
  %v1616 = vmul.f32 %v1512, 0.16666667
  %v1617 = vmul.f32 %v1513, 0.16666667
  %v1618 = vmul.f32 %v1514, 0.16666667
  %v1619 = vmul.f32 %v1515, 0.16666667
  %v1620 = vmul.f32 %v1516, 0.16666667
  %v1621 = vmul.f32 %v1517, 0.16666667
  %v1622 = vmul.f32 %v1518, 0.16666667
  %v1623 = vmul.f32 %v1519, 0.16666667
  %v1624 = vmul.f32 %v1520, 0.16666667
  %v1625 = vmul.f32 %v1521, 0.16666667
  %v1626 = vmul.f32 %v1522, 0.16666667
  %v1627 = vmul.f32 %v1523, 0.16666667
  %v1628 = vmul.f32 %v1524, 0.16666667
  %v1629 = vmul.f32 %v1525, 0.16666667
  %v1630 = vmul.f32 %v1526, 0.16666667
  %v1631 = vmul.f32 %v1527, 0.16666667
  %v1632 = vmul.f32 %v1528, 0.16666667
  %v1633 = vmul.f32 %v1529, 0.16666667
  %v1634 = vmul.f32 %v1530, 0.16666667
  %v1635 = vmul.f32 %v1531, 0.16666667
  %v1636 = vmul.f32 %v1532, 0.16666667
  %v1637 = vmul.f32 %v1533, 0.16666667
  %v1638 = vmul.f32 %v1534, 0.16666667
  %v1639 = vmul.f32 %v1535, 0.16666667
  %v1640 = vmul.f32 %v1536, 0.16666667
  %v1641 = vmul.f32 %v1537, 0.16666667
  %v1642 = vmul.f32 %v1538, 0.16666667
  %v1643 = vmul.f32 %v1539, 0.16666667
  %v1644 = vmul.f32 %v1540, 0.16666667
  %v1645 = vmul.f32 %v1541, 0.16666667
  %v1646 = vmul.f32 %v1542, 0.16666667
  %v1647 = vmul.f32 %v1543, 0.16666667
  %v1648 = vmul.f32 %v1544, 0.16666667
  %v1649 = vmul.f32 %v1545, 0.16666667
  %v1650 = vmul.f32 %v1546, 0.16666667
  %v1651 = vmul.f32 %v1547, 0.16666667
  %v1652 = vmul.f32 %v1548, %v945
  %v1653 = vmul.f32 %v1549, %v947
  %v1654 = vmul.f32 %v1550, %v1108
  %v1655 = vmul.f32 %v1551, %v1110
  %v1656 = vmul.f32 %v1552, %v949
  %v1657 = vmul.f32 %v1553, %v951
  %v1658 = vmul.f32 %v1554, %v1112
  %v1659 = vmul.f32 %v1555, %v1114
  %v1660 = vmul.f32 %v1556, %v955
  %v1661 = vmul.f32 %v1557, %v957
  %v1662 = vmul.f32 %v1558, %v1118
  %v1663 = vmul.f32 %v1559, %v1120
  %v1664 = vmul.f32 %v1560, %v959
  %v1665 = vmul.f32 %v1561, %v961
  %v1666 = vmul.f32 %v1562, %v1122
  %v1667 = vmul.f32 %v1563, %v1124
  %v1668 = vmul.f32 %v1564, %v965
  %v1669 = vmul.f32 %v1565, %v967
  %v1670 = vmul.f32 %v1566, %v1128
  %v1671 = vmul.f32 %v1567, %v1130
  %v1672 = vmul.f32 %v1568, %v969
  %v1673 = vmul.f32 %v1569, %v971
  %v1674 = vmul.f32 %v1570, %v1132
  %v1675 = vmul.f32 %v1571, %v1134
  %v1676 = vmul.f32 %v1572, %v975
  %v1677 = vmul.f32 %v1573, %v977
  %v1678 = vmul.f32 %v1574, %v1138
  %v1679 = vmul.f32 %v1575, %v1140
  %v1680 = vmul.f32 %v1576, %v979
  %v1681 = vmul.f32 %v1577, %v981
  %v1682 = vmul.f32 %v1578, %v1142
  %v1683 = vmul.f32 %v1579, %v1144
  %v1684 = vmul.f32 %v1580, %v985
  %v1685 = vmul.f32 %v1581, %v987
  %v1686 = vmul.f32 %v1582, %v1148
  %v1687 = vmul.f32 %v1583, %v1150
  %v1688 = vmul.f32 %v1584, %v989
  %v1689 = vmul.f32 %v1585, %v991
  %v1690 = vmul.f32 %v1586, %v1152
  %v1691 = vmul.f32 %v1587, %v1154
  %v1692 = vmul.f32 %v1588, %v995
  %v1693 = vmul.f32 %v1589, %v997
  %v1694 = vmul.f32 %v1590, %v1158
  %v1695 = vmul.f32 %v1591, %v1160
  %v1696 = vmul.f32 %v1592, %v999
  %v1697 = vmul.f32 %v1593, %v1001
  %v1698 = vmul.f32 %v1594, %v1162
  %v1699 = vmul.f32 %v1595, %v1164
  %v1700 = vmul.f32 %v1596, %v1005
  %v1701 = vmul.f32 %v1597, %v1007
  %v1702 = vmul.f32 %v1598, %v1168
  %v1703 = vmul.f32 %v1599, %v1170
  %v1704 = vmul.f32 %v1600, %v1009
  %v1705 = vmul.f32 %v1601, %v1011
  %v1706 = vmul.f32 %v1602, %v1172
  %v1707 = vmul.f32 %v1603, %v1174
  %v1708 = vmul.f32 %v1604, %v1015
  %v1709 = vmul.f32 %v1605, %v1017
  %v1710 = vmul.f32 %v1606, %v1178
  %v1711 = vmul.f32 %v1607, %v1180
  %v1712 = vmul.f32 %v1608, %v1019
  %v1713 = vmul.f32 %v1609, %v1021
  %v1714 = vmul.f32 %v1610, %v1182
  %v1715 = vmul.f32 %v1611, %v1184
  %v1716 = vmul.f32 %v1612, %v1025
  %v1717 = vmul.f32 %v1613, %v1027
  %v1718 = vmul.f32 %v1614, %v1188
  %v1719 = vmul.f32 %v1615, %v1190
  %v1720 = vmul.f32 %v1616, %v1029
  %v1721 = vmul.f32 %v1617, %v1031
  %v1722 = vmul.f32 %v1618, %v1192
  %v1723 = vmul.f32 %v1619, %v1194
  %v1724 = vmul.f32 %v1620, %v1035
  %v1725 = vmul.f32 %v1621, %v1037
  %v1726 = vmul.f32 %v1622, %v1198
  %v1727 = vmul.f32 %v1623, %v1200
  %v1728 = vmul.f32 %v1624, %v1039
  %v1729 = vmul.f32 %v1625, %v1041
  %v1730 = vmul.f32 %v1626, %v1202
  %v1731 = vmul.f32 %v1627, %v1204
  %v1732 = vmul.f32 %v1628, %v1045
  %v1733 = vmul.f32 %v1629, %v1047
  %v1734 = vmul.f32 %v1630, %v1208
  %v1735 = vmul.f32 %v1631, %v1210
  %v1736 = vmul.f32 %v1632, %v1049
  %v1737 = vmul.f32 %v1633, %v1051
  %v1738 = vmul.f32 %v1634, %v1212
  %v1739 = vmul.f32 %v1635, %v1214
  %v1740 = vmul.f32 %v1636, %v1055
  %v1741 = vmul.f32 %v1637, %v1057
  %v1742 = vmul.f32 %v1638, %v1218
  %v1743 = vmul.f32 %v1639, %v1220
  %v1744 = vmul.f32 %v1640, %v1059
  %v1745 = vmul.f32 %v1641, %v1061
  %v1746 = vmul.f32 %v1642, %v1222
  %v1747 = vmul.f32 %v1643, %v1224
  %v1748 = vmul.f32 %v1644, %v1065
  %v1749 = vmul.f32 %v1645, %v1067
  %v1750 = vmul.f32 %v1646, %v1228
  %v1751 = vmul.f32 %v1647, %v1230
  %v1752 = vmul.f32 %v1648, %v1069
  %v1753 = vmul.f32 %v1649, %v1071
  %v1754 = vmul.f32 %v1650, %v1232
  %v1755 = vmul.f32 %v1651, %v1234
  %v1756 = vpack.c.bf16 %v1656, %v1652
  %v1757 = vpack.c.bf16 %v1657, %v1653
  %v1758 = vpack.c.bf16 %v1658, %v1654
  %v1759 = vpack.c.bf16 %v1659, %v1655
  %v1760 = vpack.c.bf16 %v1664, %v1660
  %v1761 = vpack.c.bf16 %v1665, %v1661
  %v1762 = vpack.c.bf16 %v1666, %v1662
  %v1763 = vpack.c.bf16 %v1667, %v1663
  %v1764 = vpack.c.bf16 %v1672, %v1668
  %v1765 = vpack.c.bf16 %v1673, %v1669
  %v1766 = vpack.c.bf16 %v1674, %v1670
  %v1767 = vpack.c.bf16 %v1675, %v1671
  %v1768 = vpack.c.bf16 %v1680, %v1676
  %v1769 = vpack.c.bf16 %v1681, %v1677
  %v1770 = vpack.c.bf16 %v1682, %v1678
  %v1771 = vpack.c.bf16 %v1683, %v1679
  %v1772 = vpack.c.bf16 %v1688, %v1684
  %v1773 = vpack.c.bf16 %v1689, %v1685
  %v1774 = vpack.c.bf16 %v1690, %v1686
  %v1775 = vpack.c.bf16 %v1691, %v1687
  %v1776 = vpack.c.bf16 %v1696, %v1692
  %v1777 = vpack.c.bf16 %v1697, %v1693
  %v1778 = vpack.c.bf16 %v1698, %v1694
  %v1779 = vpack.c.bf16 %v1699, %v1695
  %v1780 = vpack.c.bf16 %v1704, %v1700
  %v1781 = vpack.c.bf16 %v1705, %v1701
  %v1782 = vpack.c.bf16 %v1706, %v1702
  %v1783 = vpack.c.bf16 %v1707, %v1703
  %v1784 = vpack.c.bf16 %v1712, %v1708
  %v1785 = vpack.c.bf16 %v1713, %v1709
  %v1786 = vpack.c.bf16 %v1714, %v1710
  %v1787 = vpack.c.bf16 %v1715, %v1711
  %v1788 = vpack.c.bf16 %v1720, %v1716
  %v1789 = vpack.c.bf16 %v1721, %v1717
  %v1790 = vpack.c.bf16 %v1722, %v1718
  %v1791 = vpack.c.bf16 %v1723, %v1719
  %v1792 = vpack.c.bf16 %v1728, %v1724
  %v1793 = vpack.c.bf16 %v1729, %v1725
  %v1794 = vpack.c.bf16 %v1730, %v1726
  %v1795 = vpack.c.bf16 %v1731, %v1727
  %v1796 = vpack.c.bf16 %v1736, %v1732
  %v1797 = vpack.c.bf16 %v1737, %v1733
  %v1798 = vpack.c.bf16 %v1738, %v1734
  %v1799 = vpack.c.bf16 %v1739, %v1735
  %v1800 = vpack.c.bf16 %v1744, %v1740
  %v1801 = vpack.c.bf16 %v1745, %v1741
  %v1802 = vpack.c.bf16 %v1746, %v1742
  %v1803 = vpack.c.bf16 %v1747, %v1743
  %v1804 = vpack.c.bf16 %v1752, %v1748
  %v1805 = vpack.c.bf16 %v1753, %v1749
  %v1806 = vpack.c.bf16 %v1754, %v1750
  %v1807 = vpack.c.bf16 %v1755, %v1751
  %v1808 = vld [vmem:[%s4] sm:$0xff]
  %v1809 = vld [vmem:[%s4 + $0x8] sm:$0xff]
  %v1810 = vld [vmem:[%s4 + $0x10] sm:$0xff]
  %v1811 = vld [vmem:[%s4 + $0x18] sm:$0xff]
  %v1812 = vld [vmem:[%s4 + $0x20] sm:$0xff]
  %v1813 = vld [vmem:[%s4 + $0x28] sm:$0xff]
  %v1814 = vld [vmem:[%s4 + $0x30] sm:$0xff]
  %v1815 = vld [vmem:[%s4 + $0x38] sm:$0xff]
  %v1816 = vld [vmem:[%s4 + $0x40] sm:$0xff]
  %v1817 = vld [vmem:[%s4 + $0x48] sm:$0xff]
  %v1818 = vld [vmem:[%s4 + $0x50] sm:$0xff]
  %v1819 = vld [vmem:[%s4 + $0x58] sm:$0xff]
  %v1820 = vld [vmem:[%s4 + $0x60] sm:$0xff]
  %v1821 = vld [vmem:[%s4 + $0x68] sm:$0xff]
  %v1822 = vld [vmem:[%s4 + $0x70] sm:$0xff]
  %v1823 = vld [vmem:[%s4 + $0x78] sm:$0xff]
  %v1824 = vld [vmem:[%s4 + $0x80] sm:$0xff]
  %v1825 = vld [vmem:[%s4 + $0x88] sm:$0xff]
  %v1826 = vld [vmem:[%s4 + $0x90] sm:$0xff]
  %v1827 = vld [vmem:[%s4 + $0x98] sm:$0xff]
  %v1828 = vld [vmem:[%s4 + $0xa0] sm:$0xff]
  %v1829 = vld [vmem:[%s4 + $0xa8] sm:$0xff]
  %v1830 = vld [vmem:[%s4 + $0xb0] sm:$0xff]
  %v1831 = vld [vmem:[%s4 + $0xb8] sm:$0xff]
  %v1832 = vld [vmem:[%s4 + $0xc0] sm:$0xff]
  %v1833 = vld [vmem:[%s4 + $0xc8] sm:$0xff]
  %v1834 = vld [vmem:[%s4 + $0xd0] sm:$0xff]
  %v1835 = vld [vmem:[%s4 + $0xd8] sm:$0xff]
  %v1836 = vld [vmem:[%s4 + $0xe0] sm:$0xff]
  %v1837 = vld [vmem:[%s4 + $0xe8] sm:$0xff]
  %v1838 = vld [vmem:[%s4 + $0xf0] sm:$0xff]
  %v1839 = vld [vmem:[%s4 + $0xf8] sm:$0xff]
  %v1840 = vld [vmem:[%s4 + $0x100] sm:$0xff]
  %v1841 = vld [vmem:[%s4 + $0x108] sm:$0xff]
  %v1842 = vld [vmem:[%s4 + $0x110] sm:$0xff]
  %v1843 = vld [vmem:[%s4 + $0x118] sm:$0xff]
  %v1844 = vld [vmem:[%s4 + $0x120] sm:$0xff]
  %v1845 = vld [vmem:[%s4 + $0x128] sm:$0xff]
  %v1846 = vld [vmem:[%s4 + $0x130] sm:$0xff]
  %v1847 = vld [vmem:[%s4 + $0x138] sm:$0xff]
  %v1848 = vld [vmem:[%s4 + $0x140] sm:$0xff]
  %v1849 = vld [vmem:[%s4 + $0x148] sm:$0xff]
  %v1850 = vld [vmem:[%s4 + $0x150] sm:$0xff]
  %v1851 = vld [vmem:[%s4 + $0x158] sm:$0xff]
  %v1852 = vld [vmem:[%s4 + $0x160] sm:$0xff]
  %v1853 = vld [vmem:[%s4 + $0x168] sm:$0xff]
  %v1854 = vld [vmem:[%s4 + $0x170] sm:$0xff]
  %v1855 = vld [vmem:[%s4 + $0x178] sm:$0xff]
  %v1856 = vld [vmem:[%s4 + $0x180] sm:$0xff]
  %v1857 = vld [vmem:[%s4 + $0x188] sm:$0xff]
  %v1858 = vld [vmem:[%s4 + $0x190] sm:$0xff]
  %v1859 = vld [vmem:[%s4 + $0x198] sm:$0xff]
  %v1860 = vld [vmem:[%s4 + $0x1a0] sm:$0xff]
  %v1861 = vld [vmem:[%s4 + $0x1a8] sm:$0xff]
  %v1862 = vld [vmem:[%s4 + $0x1b0] sm:$0xff]
  %v1863 = vld [vmem:[%s4 + $0x1b8] sm:$0xff]
  %v1864 = vld [vmem:[%s4 + $0x1c0] sm:$0xff]
  %v1865 = vld [vmem:[%s4 + $0x1c8] sm:$0xff]
  %v1866 = vld [vmem:[%s4 + $0x1d0] sm:$0xff]
  %v1867 = vld [vmem:[%s4 + $0x1d8] sm:$0xff]
  %v1868 = vld [vmem:[%s4 + $0x1e0] sm:$0xff]
  %v1869 = vld [vmem:[%s4 + $0x1e8] sm:$0xff]
  %v1870 = vld [vmem:[%s4 + $0x1f0] sm:$0xff]
  %v1871 = vld [vmem:[%s4 + $0x1f8] sm:$0xff]
  %v1872 = vld [vmem:[%s4 + $0x200] sm:$0xff]
  %v1873 = vld [vmem:[%s4 + $0x208] sm:$0xff]
  %v1874 = vld [vmem:[%s4 + $0x210] sm:$0xff]
  %v1875 = vld [vmem:[%s4 + $0x218] sm:$0xff]
  %v1876 = vld [vmem:[%s4 + $0x220] sm:$0xff]
  %v1877 = vld [vmem:[%s4 + $0x228] sm:$0xff]
  %v1878 = vld [vmem:[%s4 + $0x230] sm:$0xff]
  %v1879 = vld [vmem:[%s4 + $0x238] sm:$0xff]
  %v1880 = vld [vmem:[%s4 + $0x240] sm:$0xff]
  %v1881 = vld [vmem:[%s4 + $0x248] sm:$0xff]
  %v1882 = vld [vmem:[%s4 + $0x250] sm:$0xff]
  %v1883 = vld [vmem:[%s4 + $0x258] sm:$0xff]
  %v1884 = vld [vmem:[%s4 + $0x260] sm:$0xff]
  %v1885 = vld [vmem:[%s4 + $0x268] sm:$0xff]
  %v1886 = vld [vmem:[%s4 + $0x270] sm:$0xff]
  %v1887 = vld [vmem:[%s4 + $0x278] sm:$0xff]
  %v1888 = vld [vmem:[%s4 + $0x280] sm:$0xff]
  %v1889 = vld [vmem:[%s4 + $0x288] sm:$0xff]
  %v1890 = vld [vmem:[%s4 + $0x290] sm:$0xff]
  %v1891 = vld [vmem:[%s4 + $0x298] sm:$0xff]
  %v1892 = vld [vmem:[%s4 + $0x2a0] sm:$0xff]
  %v1893 = vld [vmem:[%s4 + $0x2a8] sm:$0xff]
  %v1894 = vld [vmem:[%s4 + $0x2b0] sm:$0xff]
  %v1895 = vld [vmem:[%s4 + $0x2b8] sm:$0xff]
  %v1896 = vld [vmem:[%s4 + $0x2c0] sm:$0xff]
  %v1897 = vld [vmem:[%s4 + $0x2c8] sm:$0xff]
  %v1898 = vld [vmem:[%s4 + $0x2d0] sm:$0xff]
  %v1899 = vld [vmem:[%s4 + $0x2d8] sm:$0xff]
  %v1900 = vld [vmem:[%s4 + $0x2e0] sm:$0xff]
  %v1901 = vld [vmem:[%s4 + $0x2e8] sm:$0xff]
  %v1902 = vld [vmem:[%s4 + $0x2f0] sm:$0xff]
  %v1903 = vld [vmem:[%s4 + $0x2f8] sm:$0xff]
  %v1904 = vld [vmem:[%s4 + $0x300] sm:$0xff]
  %v1905 = vld [vmem:[%s4 + $0x308] sm:$0xff]
  %v1906 = vld [vmem:[%s4 + $0x310] sm:$0xff]
  %v1907 = vld [vmem:[%s4 + $0x318] sm:$0xff]
  %v1908 = vld [vmem:[%s4 + $0x320] sm:$0xff]
  %v1909 = vld [vmem:[%s4 + $0x328] sm:$0xff]
  %v1910 = vld [vmem:[%s4 + $0x330] sm:$0xff]
  %v1911 = vld [vmem:[%s4 + $0x338] sm:$0xff]
  %v1912 = vld [vmem:[%s4 + $0x340] sm:$0xff]
  %v1913 = vld [vmem:[%s4 + $0x348] sm:$0xff]
  %v1914 = vld [vmem:[%s4 + $0x350] sm:$0xff]
  %v1915 = vld [vmem:[%s4 + $0x358] sm:$0xff]
  %v1916 = vld [vmem:[%s4 + $0x360] sm:$0xff]
  %v1917 = vld [vmem:[%s4 + $0x368] sm:$0xff]
  %v1918 = vld [vmem:[%s4 + $0x370] sm:$0xff]
  %v1919 = vld [vmem:[%s4 + $0x378] sm:$0xff]
  %v1920 = vld [vmem:[%s4 + $0x380] sm:$0xff]
  %v1921 = vld [vmem:[%s4 + $0x388] sm:$0xff]
  %v1922 = vld [vmem:[%s4 + $0x390] sm:$0xff]
  %v1923 = vld [vmem:[%s4 + $0x398] sm:$0xff]
  %v1924 = vld [vmem:[%s4 + $0x3a0] sm:$0xff]
  %v1925 = vld [vmem:[%s4 + $0x3a8] sm:$0xff]
  %v1926 = vld [vmem:[%s4 + $0x3b0] sm:$0xff]
  %v1927 = vld [vmem:[%s4 + $0x3b8] sm:$0xff]
  %v1928 = vld [vmem:[%s4 + $0x3c0] sm:$0xff]
  %v1929 = vld [vmem:[%s4 + $0x3c8] sm:$0xff]
  %v1930 = vld [vmem:[%s4 + $0x3d0] sm:$0xff]
  %v1931 = vld [vmem:[%s4 + $0x3d8] sm:$0xff]
  %v1932 = vld [vmem:[%s4 + $0x3e0] sm:$0xff]
  %v1933 = vld [vmem:[%s4 + $0x3e8] sm:$0xff]
  %v1934 = vld [vmem:[%s4 + $0x3f0] sm:$0xff]
  %v1935 = vld [vmem:[%s4 + $0x3f8] sm:$0xff]
  %v1937 = vlaneseq
  %v1938 = vshrl.u32 %v1937, 7
  %v1939 = vsub.s32 0, %v1938
  %v1940 = vrot.slane %v29, %v1939
  %v1941 = vlaneseq
  %v1942 = vshrl.u32 %v1941, 7
  %v1943 = vsub.s32 1, %v1942
  %v1944 = vrot.slane %v29, %v1943
  %v1945 = vlaneseq
  %v1946 = vshrl.u32 %v1945, 7
  %v1947 = vsub.s32 2, %v1946
  %v1948 = vrot.slane %v29, %v1947
  %v1949 = vlaneseq
  %v1950 = vshrl.u32 %v1949, 7
  %v1951 = vsub.s32 3, %v1950
  %v1952 = vrot.slane %v29, %v1951
  %v2085 = vunpack.c.l.b16 %v1808
  %v2086 = vunpack.c.h.b16 %v1808
  %v2087 = vunpack.c.l.b16 %v1809
  %v2088 = vunpack.c.h.b16 %v1809
  %v2089 = vunpack.c.l.b16 %v1810
  %v2090 = vunpack.c.h.b16 %v1810
  %v2091 = vunpack.c.l.b16 %v1811
  %v2092 = vunpack.c.h.b16 %v1811
  %v2093 = vunpack.c.l.b16 %v1812
  %v2094 = vunpack.c.h.b16 %v1812
  %v2095 = vunpack.c.l.b16 %v1813
  %v2096 = vunpack.c.h.b16 %v1813
  %v2097 = vunpack.c.l.b16 %v1814
  %v2098 = vunpack.c.h.b16 %v1814
  %v2099 = vunpack.c.l.b16 %v1815
  %v2100 = vunpack.c.h.b16 %v1815
  %v2101 = vunpack.c.l.b16 %v1816
  %v2102 = vunpack.c.h.b16 %v1816
  %v2103 = vunpack.c.l.b16 %v1817
  %v2104 = vunpack.c.h.b16 %v1817
  %v2105 = vunpack.c.l.b16 %v1818
  %v2106 = vunpack.c.h.b16 %v1818
  %v2107 = vunpack.c.l.b16 %v1819
  %v2108 = vunpack.c.h.b16 %v1819
  %v2109 = vunpack.c.l.b16 %v1820
  %v2110 = vunpack.c.h.b16 %v1820
  %v2111 = vunpack.c.l.b16 %v1821
  %v2112 = vunpack.c.h.b16 %v1821
  %v2113 = vunpack.c.l.b16 %v1822
  %v2114 = vunpack.c.h.b16 %v1822
  %v2115 = vunpack.c.l.b16 %v1823
  %v2116 = vunpack.c.h.b16 %v1823
  %v2117 = vunpack.c.l.b16 %v1824
  %v2118 = vunpack.c.h.b16 %v1824
  %v2119 = vunpack.c.l.b16 %v1825
  %v2120 = vunpack.c.h.b16 %v1825
  %v2121 = vunpack.c.l.b16 %v1826
  %v2122 = vunpack.c.h.b16 %v1826
  %v2123 = vunpack.c.l.b16 %v1827
  %v2124 = vunpack.c.h.b16 %v1827
  %v2125 = vunpack.c.l.b16 %v1828
  %v2126 = vunpack.c.h.b16 %v1828
  %v2127 = vunpack.c.l.b16 %v1829
  %v2128 = vunpack.c.h.b16 %v1829
  %v2129 = vunpack.c.l.b16 %v1830
  %v2130 = vunpack.c.h.b16 %v1830
  %v2131 = vunpack.c.l.b16 %v1831
  %v2132 = vunpack.c.h.b16 %v1831
  %v2133 = vunpack.c.l.b16 %v1832
  %v2134 = vunpack.c.h.b16 %v1832
  %v2135 = vunpack.c.l.b16 %v1833
  %v2136 = vunpack.c.h.b16 %v1833
  %v2137 = vunpack.c.l.b16 %v1834
  %v2138 = vunpack.c.h.b16 %v1834
  %v2139 = vunpack.c.l.b16 %v1835
  %v2140 = vunpack.c.h.b16 %v1835
  %v2141 = vunpack.c.l.b16 %v1836
  %v2142 = vunpack.c.h.b16 %v1836
  %v2143 = vunpack.c.l.b16 %v1837
  %v2144 = vunpack.c.h.b16 %v1837
  %v2145 = vunpack.c.l.b16 %v1838
  %v2146 = vunpack.c.h.b16 %v1838
  %v2147 = vunpack.c.l.b16 %v1839
  %v2148 = vunpack.c.h.b16 %v1839
  %v2149 = vunpack.c.l.b16 %v1840
  %v2150 = vunpack.c.h.b16 %v1840
  %v2151 = vunpack.c.l.b16 %v1841
  %v2152 = vunpack.c.h.b16 %v1841
  %v2153 = vunpack.c.l.b16 %v1842
  %v2154 = vunpack.c.h.b16 %v1842
  %v2155 = vunpack.c.l.b16 %v1843
  %v2156 = vunpack.c.h.b16 %v1843
  %v2157 = vunpack.c.l.b16 %v1844
  %v2158 = vunpack.c.h.b16 %v1844
  %v2159 = vunpack.c.l.b16 %v1845
  %v2160 = vunpack.c.h.b16 %v1845
  %v2161 = vunpack.c.l.b16 %v1846
  %v2162 = vunpack.c.h.b16 %v1846
  %v2163 = vunpack.c.l.b16 %v1847
  %v2164 = vunpack.c.h.b16 %v1847
  %v2165 = vunpack.c.l.b16 %v1848
  %v2166 = vunpack.c.h.b16 %v1848
  %v2167 = vunpack.c.l.b16 %v1849
  %v2168 = vunpack.c.h.b16 %v1849
  %v2169 = vunpack.c.l.b16 %v1850
  %v2170 = vunpack.c.h.b16 %v1850
  %v2171 = vunpack.c.l.b16 %v1851
  %v2172 = vunpack.c.h.b16 %v1851
  %v2173 = vunpack.c.l.b16 %v1852
  %v2174 = vunpack.c.h.b16 %v1852
  %v2175 = vunpack.c.l.b16 %v1853
  %v2176 = vunpack.c.h.b16 %v1853
  %v2177 = vunpack.c.l.b16 %v1854
  %v2178 = vunpack.c.h.b16 %v1854
  %v2179 = vunpack.c.l.b16 %v1855
  %v2180 = vunpack.c.h.b16 %v1855
  %v2181 = vunpack.c.l.b16 %v1856
  %v2182 = vunpack.c.h.b16 %v1856
  %v2183 = vunpack.c.l.b16 %v1857
  %v2184 = vunpack.c.h.b16 %v1857
  %v2185 = vunpack.c.l.b16 %v1858
  %v2186 = vunpack.c.h.b16 %v1858
  %v2187 = vunpack.c.l.b16 %v1859
  %v2188 = vunpack.c.h.b16 %v1859
  %v2189 = vunpack.c.l.b16 %v1860
  %v2190 = vunpack.c.h.b16 %v1860
  %v2191 = vunpack.c.l.b16 %v1861
  %v2192 = vunpack.c.h.b16 %v1861
  %v2193 = vunpack.c.l.b16 %v1862
  %v2194 = vunpack.c.h.b16 %v1862
  %v2195 = vunpack.c.l.b16 %v1863
  %v2196 = vunpack.c.h.b16 %v1863
  %v2197 = vunpack.c.l.b16 %v1864
  %v2198 = vunpack.c.h.b16 %v1864
  %v2199 = vunpack.c.l.b16 %v1865
  %v2200 = vunpack.c.h.b16 %v1865
  %v2201 = vunpack.c.l.b16 %v1866
  %v2202 = vunpack.c.h.b16 %v1866
  %v2203 = vunpack.c.l.b16 %v1867
  %v2204 = vunpack.c.h.b16 %v1867
  %v2205 = vunpack.c.l.b16 %v1868
  %v2206 = vunpack.c.h.b16 %v1868
  %v2207 = vunpack.c.l.b16 %v1869
  %v2208 = vunpack.c.h.b16 %v1869
  %v2209 = vunpack.c.l.b16 %v1870
  %v2210 = vunpack.c.h.b16 %v1870
  %v2211 = vunpack.c.l.b16 %v1871
  %v2212 = vunpack.c.h.b16 %v1871
  %v2213 = vunpack.c.l.b16 %v1872
  %v2214 = vunpack.c.h.b16 %v1872
  %v2215 = vunpack.c.l.b16 %v1873
  %v2216 = vunpack.c.h.b16 %v1873
  %v2217 = vunpack.c.l.b16 %v1874
  %v2218 = vunpack.c.h.b16 %v1874
  %v2219 = vunpack.c.l.b16 %v1875
  %v2220 = vunpack.c.h.b16 %v1875
  %v2221 = vunpack.c.l.b16 %v1876
  %v2222 = vunpack.c.h.b16 %v1876
  %v2223 = vunpack.c.l.b16 %v1877
  %v2224 = vunpack.c.h.b16 %v1877
  %v2225 = vunpack.c.l.b16 %v1878
  %v2226 = vunpack.c.h.b16 %v1878
  %v2227 = vunpack.c.l.b16 %v1879
  %v2228 = vunpack.c.h.b16 %v1879
  %v2229 = vunpack.c.l.b16 %v1880
  %v2230 = vunpack.c.h.b16 %v1880
  %v2231 = vunpack.c.l.b16 %v1881
  %v2232 = vunpack.c.h.b16 %v1881
  %v2233 = vunpack.c.l.b16 %v1882
  %v2234 = vunpack.c.h.b16 %v1882
  %v2235 = vunpack.c.l.b16 %v1883
  %v2236 = vunpack.c.h.b16 %v1883
  %v2237 = vunpack.c.l.b16 %v1884
  %v2238 = vunpack.c.h.b16 %v1884
  %v2239 = vunpack.c.l.b16 %v1885
  %v2240 = vunpack.c.h.b16 %v1885
  %v2241 = vunpack.c.l.b16 %v1886
  %v2242 = vunpack.c.h.b16 %v1886
  %v2243 = vunpack.c.l.b16 %v1887
  %v2244 = vunpack.c.h.b16 %v1887
  %v2245 = vunpack.c.l.b16 %v1888
  %v2246 = vunpack.c.h.b16 %v1888
  %v2247 = vunpack.c.l.b16 %v1889
  %v2248 = vunpack.c.h.b16 %v1889
  %v2249 = vunpack.c.l.b16 %v1890
  %v2250 = vunpack.c.h.b16 %v1890
  %v2251 = vunpack.c.l.b16 %v1891
  %v2252 = vunpack.c.h.b16 %v1891
  %v2253 = vunpack.c.l.b16 %v1892
  %v2254 = vunpack.c.h.b16 %v1892
  %v2255 = vunpack.c.l.b16 %v1893
  %v2256 = vunpack.c.h.b16 %v1893
  %v2257 = vunpack.c.l.b16 %v1894
  %v2258 = vunpack.c.h.b16 %v1894
  %v2259 = vunpack.c.l.b16 %v1895
  %v2260 = vunpack.c.h.b16 %v1895
  %v2261 = vunpack.c.l.b16 %v1896
  %v2262 = vunpack.c.h.b16 %v1896
  %v2263 = vunpack.c.l.b16 %v1897
  %v2264 = vunpack.c.h.b16 %v1897
  %v2265 = vunpack.c.l.b16 %v1898
  %v2266 = vunpack.c.h.b16 %v1898
  %v2267 = vunpack.c.l.b16 %v1899
  %v2268 = vunpack.c.h.b16 %v1899
  %v2269 = vunpack.c.l.b16 %v1900
  %v2270 = vunpack.c.h.b16 %v1900
  %v2271 = vunpack.c.l.b16 %v1901
  %v2272 = vunpack.c.h.b16 %v1901
  %v2273 = vunpack.c.l.b16 %v1902
  %v2274 = vunpack.c.h.b16 %v1902
  %v2275 = vunpack.c.l.b16 %v1903
  %v2276 = vunpack.c.h.b16 %v1903
  %v2277 = vunpack.c.l.b16 %v1904
  %v2278 = vunpack.c.h.b16 %v1904
  %v2279 = vunpack.c.l.b16 %v1905
  %v2280 = vunpack.c.h.b16 %v1905
  %v2281 = vunpack.c.l.b16 %v1906
  %v2282 = vunpack.c.h.b16 %v1906
  %v2283 = vunpack.c.l.b16 %v1907
  %v2284 = vunpack.c.h.b16 %v1907
  %v2285 = vunpack.c.l.b16 %v1908
  %v2286 = vunpack.c.h.b16 %v1908
  %v2287 = vunpack.c.l.b16 %v1909
  %v2288 = vunpack.c.h.b16 %v1909
  %v2289 = vunpack.c.l.b16 %v1910
  %v2290 = vunpack.c.h.b16 %v1910
  %v2291 = vunpack.c.l.b16 %v1911
  %v2292 = vunpack.c.h.b16 %v1911
  %v2293 = vunpack.c.l.b16 %v1912
  %v2294 = vunpack.c.h.b16 %v1912
  %v2295 = vunpack.c.l.b16 %v1913
  %v2296 = vunpack.c.h.b16 %v1913
  %v2297 = vunpack.c.l.b16 %v1914
  %v2298 = vunpack.c.h.b16 %v1914
  %v2299 = vunpack.c.l.b16 %v1915
  %v2300 = vunpack.c.h.b16 %v1915
  %v2301 = vunpack.c.l.b16 %v1916
  %v2302 = vunpack.c.h.b16 %v1916
  %v2303 = vunpack.c.l.b16 %v1917
  %v2304 = vunpack.c.h.b16 %v1917
  %v2305 = vunpack.c.l.b16 %v1918
  %v2306 = vunpack.c.h.b16 %v1918
  %v2307 = vunpack.c.l.b16 %v1919
  %v2308 = vunpack.c.h.b16 %v1919
  %v2309 = vunpack.c.l.b16 %v1920
  %v2310 = vunpack.c.h.b16 %v1920
  %v2311 = vunpack.c.l.b16 %v1921
  %v2312 = vunpack.c.h.b16 %v1921
  %v2313 = vunpack.c.l.b16 %v1922
  %v2314 = vunpack.c.h.b16 %v1922
  %v2315 = vunpack.c.l.b16 %v1923
  %v2316 = vunpack.c.h.b16 %v1923
  %v2317 = vunpack.c.l.b16 %v1924
  %v2318 = vunpack.c.h.b16 %v1924
  %v2319 = vunpack.c.l.b16 %v1925
  %v2320 = vunpack.c.h.b16 %v1925
  %v2321 = vunpack.c.l.b16 %v1926
  %v2322 = vunpack.c.h.b16 %v1926
  %v2323 = vunpack.c.l.b16 %v1927
  %v2324 = vunpack.c.h.b16 %v1927
  %v2325 = vunpack.c.l.b16 %v1928
  %v2326 = vunpack.c.h.b16 %v1928
  %v2327 = vunpack.c.l.b16 %v1929
  %v2328 = vunpack.c.h.b16 %v1929
  %v2329 = vunpack.c.l.b16 %v1930
  %v2330 = vunpack.c.h.b16 %v1930
  %v2331 = vunpack.c.l.b16 %v1931
  %v2332 = vunpack.c.h.b16 %v1931
  %v2333 = vunpack.c.l.b16 %v1932
  %v2334 = vunpack.c.h.b16 %v1932
  %v2335 = vunpack.c.l.b16 %v1933
  %v2336 = vunpack.c.h.b16 %v1933
  %v2337 = vunpack.c.l.b16 %v1934
  %v2338 = vunpack.c.h.b16 %v1934
  %v2339 = vunpack.c.l.b16 %v1935
  %v2340 = vunpack.c.h.b16 %v1935
  %v2341 = vpack.c.b16 %v2089, %v2085
  %v2342 = vpack.c.b16 %v2090, %v2086
  %v2343 = vpack.c.b16 %v2091, %v2087
  %v2344 = vpack.c.b16 %v2092, %v2088
  %v2345 = vpack.c.b16 %v2097, %v2093
  %v2346 = vpack.c.b16 %v2098, %v2094
  %v2347 = vpack.c.b16 %v2099, %v2095
  %v2348 = vpack.c.b16 %v2100, %v2096
  %v2349 = vpack.c.b16 %v2105, %v2101
  %v2350 = vpack.c.b16 %v2106, %v2102
  %v2351 = vpack.c.b16 %v2107, %v2103
  %v2352 = vpack.c.b16 %v2108, %v2104
  %v2353 = vpack.c.b16 %v2113, %v2109
  %v2354 = vpack.c.b16 %v2114, %v2110
  %v2355 = vpack.c.b16 %v2115, %v2111
  %v2356 = vpack.c.b16 %v2116, %v2112
  %v2357 = vpack.c.b16 %v2121, %v2117
  %v2358 = vpack.c.b16 %v2122, %v2118
  %v2359 = vpack.c.b16 %v2123, %v2119
  %v2360 = vpack.c.b16 %v2124, %v2120
  %v2361 = vpack.c.b16 %v2129, %v2125
  %v2362 = vpack.c.b16 %v2130, %v2126
  %v2363 = vpack.c.b16 %v2131, %v2127
  %v2364 = vpack.c.b16 %v2132, %v2128
  %v2365 = vpack.c.b16 %v2137, %v2133
  %v2366 = vpack.c.b16 %v2138, %v2134
  %v2367 = vpack.c.b16 %v2139, %v2135
  %v2368 = vpack.c.b16 %v2140, %v2136
  %v2369 = vpack.c.b16 %v2145, %v2141
  %v2370 = vpack.c.b16 %v2146, %v2142
  %v2371 = vpack.c.b16 %v2147, %v2143
  %v2372 = vpack.c.b16 %v2148, %v2144
  %v2373 = vpack.c.b16 %v2153, %v2149
  %v2374 = vpack.c.b16 %v2154, %v2150
  %v2375 = vpack.c.b16 %v2155, %v2151
  %v2376 = vpack.c.b16 %v2156, %v2152
  %v2377 = vpack.c.b16 %v2161, %v2157
  %v2378 = vpack.c.b16 %v2162, %v2158
  %v2379 = vpack.c.b16 %v2163, %v2159
  %v2380 = vpack.c.b16 %v2164, %v2160
  %v2381 = vpack.c.b16 %v2169, %v2165
  %v2382 = vpack.c.b16 %v2170, %v2166
  %v2383 = vpack.c.b16 %v2171, %v2167
  %v2384 = vpack.c.b16 %v2172, %v2168
  %v2385 = vpack.c.b16 %v2177, %v2173
  %v2386 = vpack.c.b16 %v2178, %v2174
  %v2387 = vpack.c.b16 %v2179, %v2175
  %v2388 = vpack.c.b16 %v2180, %v2176
  %v2389 = vpack.c.b16 %v2185, %v2181
  %v2390 = vpack.c.b16 %v2186, %v2182
  %v2391 = vpack.c.b16 %v2187, %v2183
  %v2392 = vpack.c.b16 %v2188, %v2184
  %v2393 = vpack.c.b16 %v2193, %v2189
  %v2394 = vpack.c.b16 %v2194, %v2190
  %v2395 = vpack.c.b16 %v2195, %v2191
  %v2396 = vpack.c.b16 %v2196, %v2192
  %v2397 = vpack.c.b16 %v2201, %v2197
  %v2398 = vpack.c.b16 %v2202, %v2198
  %v2399 = vpack.c.b16 %v2203, %v2199
  %v2400 = vpack.c.b16 %v2204, %v2200
  %v2401 = vpack.c.b16 %v2209, %v2205
  %v2402 = vpack.c.b16 %v2210, %v2206
  %v2403 = vpack.c.b16 %v2211, %v2207
  %v2404 = vpack.c.b16 %v2212, %v2208
  %v2405 = vpack.c.b16 %v2217, %v2213
  %v2406 = vpack.c.b16 %v2218, %v2214
  %v2407 = vpack.c.b16 %v2219, %v2215
  %v2408 = vpack.c.b16 %v2220, %v2216
  %v2409 = vpack.c.b16 %v2225, %v2221
  %v2410 = vpack.c.b16 %v2226, %v2222
  %v2411 = vpack.c.b16 %v2227, %v2223
  %v2412 = vpack.c.b16 %v2228, %v2224
  %v2413 = vpack.c.b16 %v2233, %v2229
  %v2414 = vpack.c.b16 %v2234, %v2230
  %v2415 = vpack.c.b16 %v2235, %v2231
  %v2416 = vpack.c.b16 %v2236, %v2232
  %v2417 = vpack.c.b16 %v2241, %v2237
  %v2418 = vpack.c.b16 %v2242, %v2238
  %v2419 = vpack.c.b16 %v2243, %v2239
  %v2420 = vpack.c.b16 %v2244, %v2240
  %v2421 = vpack.c.b16 %v2249, %v2245
  %v2422 = vpack.c.b16 %v2250, %v2246
  %v2423 = vpack.c.b16 %v2251, %v2247
  %v2424 = vpack.c.b16 %v2252, %v2248
  %v2425 = vpack.c.b16 %v2257, %v2253
  %v2426 = vpack.c.b16 %v2258, %v2254
  %v2427 = vpack.c.b16 %v2259, %v2255
  %v2428 = vpack.c.b16 %v2260, %v2256
  %v2429 = vpack.c.b16 %v2265, %v2261
  %v2430 = vpack.c.b16 %v2266, %v2262
  %v2431 = vpack.c.b16 %v2267, %v2263
  %v2432 = vpack.c.b16 %v2268, %v2264
  %v2433 = vpack.c.b16 %v2273, %v2269
  %v2434 = vpack.c.b16 %v2274, %v2270
  %v2435 = vpack.c.b16 %v2275, %v2271
  %v2436 = vpack.c.b16 %v2276, %v2272
  %v2437 = vpack.c.b16 %v2281, %v2277
  %v2438 = vpack.c.b16 %v2282, %v2278
  %v2439 = vpack.c.b16 %v2283, %v2279
  %v2440 = vpack.c.b16 %v2284, %v2280
  %v2441 = vpack.c.b16 %v2289, %v2285
  %v2442 = vpack.c.b16 %v2290, %v2286
  %v2443 = vpack.c.b16 %v2291, %v2287
  %v2444 = vpack.c.b16 %v2292, %v2288
  %v2445 = vpack.c.b16 %v2297, %v2293
  %v2446 = vpack.c.b16 %v2298, %v2294
  %v2447 = vpack.c.b16 %v2299, %v2295
  %v2448 = vpack.c.b16 %v2300, %v2296
  %v2449 = vpack.c.b16 %v2305, %v2301
  %v2450 = vpack.c.b16 %v2306, %v2302
  %v2451 = vpack.c.b16 %v2307, %v2303
  %v2452 = vpack.c.b16 %v2308, %v2304
  %v2453 = vpack.c.b16 %v2313, %v2309
  %v2454 = vpack.c.b16 %v2314, %v2310
  %v2455 = vpack.c.b16 %v2315, %v2311
  %v2456 = vpack.c.b16 %v2316, %v2312
  %v2457 = vpack.c.b16 %v2321, %v2317
  %v2458 = vpack.c.b16 %v2322, %v2318
  %v2459 = vpack.c.b16 %v2323, %v2319
  %v2460 = vpack.c.b16 %v2324, %v2320
  %v2461 = vpack.c.b16 %v2329, %v2325
  %v2462 = vpack.c.b16 %v2330, %v2326
  %v2463 = vpack.c.b16 %v2331, %v2327
  %v2464 = vpack.c.b16 %v2332, %v2328
  %v2465 = vpack.c.b16 %v2337, %v2333
  %v2466 = vpack.c.b16 %v2338, %v2334
  %v2467 = vpack.c.b16 %v2339, %v2335
  %v2468 = vpack.c.b16 %v2340, %v2336
  %2597 = vmatprep.subr.bf16.mxu0 %v2342
  %2598 = vmatpush1.bf16.msra.mxu0 %v2341
  %2599 = vmatprep.subr.bf16.mxu0 %v2346
  %2600 = vmatpush1.bf16.msra.mxu0 %v2345
  %2601 = vmatprep.subr.bf16.mxu0 %v2350
  %2602 = vmatpush1.bf16.msra.mxu0 %v2349
  %2603 = vmatprep.subr.bf16.mxu0 %v2354
  %2604 = vmatpush1.bf16.msra.mxu0 %v2353
  %2605 = vmatprep.subr.bf16.mxu0 %v2358
  %2606 = vmatpush1.bf16.msra.mxu0 %v2357
  %2607 = vmatprep.subr.bf16.mxu0 %v2362
  %2608 = vmatpush1.bf16.msra.mxu0 %v2361
  %2609 = vmatprep.subr.bf16.mxu0 %v2366
  %2610 = vmatpush1.bf16.msra.mxu0 %v2365
  %2611 = vmatprep.subr.bf16.mxu0 %v2370
  %2612 = vmatpush1.bf16.msra.mxu0 %v2369
  %2613 = vmatprep.subr.bf16.mxu0 %v2374
  %2614 = vmatpush1.bf16.msra.mxu0 %v2373
  %2615 = vmatprep.subr.bf16.mxu0 %v2378
  %2616 = vmatpush1.bf16.msra.mxu0 %v2377
  %2617 = vmatprep.subr.bf16.mxu0 %v2382
  %2618 = vmatpush1.bf16.msra.mxu0 %v2381
  %2619 = vmatprep.subr.bf16.mxu0 %v2386
  %2620 = vmatpush1.bf16.msra.mxu0 %v2385
  %2621 = vmatprep.subr.bf16.mxu0 %v2390
  %2622 = vmatpush1.bf16.msra.mxu0 %v2389
  %2623 = vmatprep.subr.bf16.mxu0 %v2394
  %2624 = vmatpush1.bf16.msra.mxu0 %v2393
  %2625 = vmatprep.subr.bf16.mxu0 %v2398
  %2626 = vmatpush1.bf16.msra.mxu0 %v2397
  %2627 = vmatprep.subr.bf16.mxu0 %v2402
  %2628 = vmatpush1.bf16.msra.mxu0 %v2401
  %2629 = vmatprep.mubr.bf16.mxu0 %v1757
  %2630 = vmatmul.mubr.bf16.gmra.mrb[0].mxu0 %v1756
  %v2631 = vpop.f32.mrb[0].mxu0
  %v2632 = vadd.f32 %v1940, %v2631
  %v2633 = vpop.f32.mrb[0].mxu0
  %v2634 = vadd.f32 %v1944, %v2633
  %v2635 = vpop.f32.mrb[0].mxu0
  %v2636 = vadd.f32 %v1940, %v2635
  %v2637 = vpop.f32.mrb[0].mxu0
  %v2638 = vadd.f32 %v1944, %v2637
  %2639 = vmatprep.mubr.bf16.mxu0 %v1761
  %2640 = vmatmul.mubr.bf16.gmra.mrb[0].mxu0 %v1760
  %v2641 = vpop.f32.mrb[0].mxu0
  %v2642 = vadd.f32 %v1940, %v2641
  %v2643 = vpop.f32.mrb[0].mxu0
  %v2644 = vadd.f32 %v1944, %v2643
  %v2645 = vpop.f32.mrb[0].mxu0
  %v2646 = vadd.f32 %v1940, %v2645
  %v2647 = vpop.f32.mrb[0].mxu0
  %v2648 = vadd.f32 %v1944, %v2647
  %2649 = vmatprep.mubr.bf16.mxu0 %v1765
  %2650 = vmatmul.mubr.bf16.gmra.mrb[0].mxu0 %v1764
  %v2651 = vpop.f32.mrb[0].mxu0
  %v2652 = vadd.f32 %v1940, %v2651
  %v2653 = vpop.f32.mrb[0].mxu0
  %v2654 = vadd.f32 %v1944, %v2653
  %v2655 = vpop.f32.mrb[0].mxu0
  %v2656 = vadd.f32 %v1940, %v2655
  %v2657 = vpop.f32.mrb[0].mxu0
  %v2658 = vadd.f32 %v1944, %v2657
  %2659 = vmatprep.mubr.bf16.mxu0 %v1769
  %2660 = vmatmul.mubr.bf16.gmra.mrb[0].mxu0 %v1768
  %v2661 = vpop.f32.mrb[0].mxu0
  %v2662 = vadd.f32 %v1940, %v2661
  %v2663 = vpop.f32.mrb[0].mxu0
  %v2664 = vadd.f32 %v1944, %v2663
  %v2665 = vpop.f32.mrb[0].mxu0
  %v2666 = vadd.f32 %v1940, %v2665
  %v2667 = vpop.f32.mrb[0].mxu0
  %v2668 = vadd.f32 %v1944, %v2667
  %2669 = vmatprep.mubr.bf16.mxu0 %v1773
  %2670 = vmatmul.mubr.bf16.gmra.mrb[0].mxu0 %v1772
  %v2671 = vpop.f32.mrb[0].mxu0
  %v2672 = vadd.f32 %v1940, %v2671
  %v2673 = vpop.f32.mrb[0].mxu0
  %v2674 = vadd.f32 %v1944, %v2673
  %v2675 = vpop.f32.mrb[0].mxu0
  %v2676 = vadd.f32 %v1940, %v2675
  %v2677 = vpop.f32.mrb[0].mxu0
  %v2678 = vadd.f32 %v1944, %v2677
  %2679 = vmatprep.mubr.bf16.mxu0 %v1777
  %2680 = vmatmul.mubr.bf16.gmra.mrb[0].mxu0 %v1776
  %v2681 = vpop.f32.mrb[0].mxu0
  %v2682 = vadd.f32 %v1940, %v2681
  %v2683 = vpop.f32.mrb[0].mxu0
  %v2684 = vadd.f32 %v1944, %v2683
  %v2685 = vpop.f32.mrb[0].mxu0
  %v2686 = vadd.f32 %v1940, %v2685
  %v2687 = vpop.f32.mrb[0].mxu0
  %v2688 = vadd.f32 %v1944, %v2687
  %2689 = vmatprep.mubr.bf16.mxu0 %v1781
  %2690 = vmatmul.mubr.bf16.gmra.mrb[0].mxu0 %v1780
  %v2691 = vpop.f32.mrb[0].mxu0
  %v2692 = vadd.f32 %v1940, %v2691
  %v2693 = vpop.f32.mrb[0].mxu0
  %v2694 = vadd.f32 %v1944, %v2693
  %v2695 = vpop.f32.mrb[0].mxu0
  %v2696 = vadd.f32 %v1940, %v2695
  %v2697 = vpop.f32.mrb[0].mxu0
  %v2698 = vadd.f32 %v1944, %v2697
  %2699 = vmatprep.mubr.bf16.mxu0 %v1785
  %2700 = vmatmul.mubr.bf16.gmra.mrb[0].mxu0 %v1784
  %v2701 = vpop.f32.mrb[0].mxu0
  %v2702 = vadd.f32 %v1940, %v2701
  %v2703 = vpop.f32.mrb[0].mxu0
  %v2704 = vadd.f32 %v1944, %v2703
  %v2705 = vpop.f32.mrb[0].mxu0
  %v2706 = vadd.f32 %v1940, %v2705
  %v2707 = vpop.f32.mrb[0].mxu0
  %v2708 = vadd.f32 %v1944, %v2707
  %2709 = vmatprep.mubr.bf16.mxu0 %v1789
  %2710 = vmatmul.mubr.bf16.gmra.mrb[0].mxu0 %v1788
  %v2711 = vpop.f32.mrb[0].mxu0
  %v2712 = vadd.f32 %v1940, %v2711
  %v2713 = vpop.f32.mrb[0].mxu0
  %v2714 = vadd.f32 %v1944, %v2713
  %v2715 = vpop.f32.mrb[0].mxu0
  %v2716 = vadd.f32 %v1940, %v2715
  %v2717 = vpop.f32.mrb[0].mxu0
  %v2718 = vadd.f32 %v1944, %v2717
  %2719 = vmatprep.mubr.bf16.mxu0 %v1793
  %2720 = vmatmul.mubr.bf16.gmra.mrb[0].mxu0 %v1792
  %v2721 = vpop.f32.mrb[0].mxu0
  %v2722 = vadd.f32 %v1940, %v2721
  %v2723 = vpop.f32.mrb[0].mxu0
  %v2724 = vadd.f32 %v1944, %v2723
  %v2725 = vpop.f32.mrb[0].mxu0
  %v2726 = vadd.f32 %v1940, %v2725
  %v2727 = vpop.f32.mrb[0].mxu0
  %v2728 = vadd.f32 %v1944, %v2727
  %2729 = vmatprep.mubr.bf16.mxu0 %v1797
  %2730 = vmatmul.mubr.bf16.gmra.mrb[0].mxu0 %v1796
  %v2731 = vpop.f32.mrb[0].mxu0
  %v2732 = vadd.f32 %v1940, %v2731
  %v2733 = vpop.f32.mrb[0].mxu0
  %v2734 = vadd.f32 %v1944, %v2733
  %v2735 = vpop.f32.mrb[0].mxu0
  %v2736 = vadd.f32 %v1940, %v2735
  %v2737 = vpop.f32.mrb[0].mxu0
  %v2738 = vadd.f32 %v1944, %v2737
  %2739 = vmatprep.mubr.bf16.mxu0 %v1801
  %2740 = vmatmul.mubr.bf16.gmra.mrb[0].mxu0 %v1800
  %v2741 = vpop.f32.mrb[0].mxu0
  %v2742 = vadd.f32 %v1940, %v2741
  %v2743 = vpop.f32.mrb[0].mxu0
  %v2744 = vadd.f32 %v1944, %v2743
  %v2745 = vpop.f32.mrb[0].mxu0
  %v2746 = vadd.f32 %v1940, %v2745
  %v2747 = vpop.f32.mrb[0].mxu0
  %v2748 = vadd.f32 %v1944, %v2747
  %2749 = vmatprep.mubr.bf16.mxu0 %v1805
  %2750 = vmatmul.mubr.bf16.gmra.mrb[0].mxu0 %v1804
  %v2751 = vpop.f32.mrb[0].mxu0
  %v2752 = vadd.f32 %v1940, %v2751
  %v2753 = vpop.f32.mrb[0].mxu0
  %v2754 = vadd.f32 %v1944, %v2753
  %v2755 = vpop.f32.mrb[0].mxu0
  %v2756 = vadd.f32 %v1940, %v2755
  %v2757 = vpop.f32.mrb[0].mxu0
  %v2758 = vadd.f32 %v1944, %v2757
  %2759 = vdwg.mxu0
  %2760 = vmatprep.subr.bf16.mxu0 %v2406
  %2761 = vmatpush1.bf16.msra.mxu0 %v2405
  %2762 = vmatprep.subr.bf16.mxu0 %v2410
  %2763 = vmatpush1.bf16.msra.mxu0 %v2409
  %2764 = vmatprep.subr.bf16.mxu0 %v2414
  %2765 = vmatpush1.bf16.msra.mxu0 %v2413
  %2766 = vmatprep.subr.bf16.mxu0 %v2418
  %2767 = vmatpush1.bf16.msra.mxu0 %v2417
  %2768 = vmatprep.subr.bf16.mxu0 %v2422
  %2769 = vmatpush1.bf16.msra.mxu0 %v2421
  %2770 = vmatprep.subr.bf16.mxu0 %v2426
  %2771 = vmatpush1.bf16.msra.mxu0 %v2425
  %2772 = vmatprep.subr.bf16.mxu0 %v2430
  %2773 = vmatpush1.bf16.msra.mxu0 %v2429
  %2774 = vmatprep.subr.bf16.mxu0 %v2434
  %2775 = vmatpush1.bf16.msra.mxu0 %v2433
  %2776 = vmatprep.subr.bf16.mxu0 %v2438
  %2777 = vmatpush1.bf16.msra.mxu0 %v2437
  %2778 = vmatprep.subr.bf16.mxu0 %v2442
  %2779 = vmatpush1.bf16.msra.mxu0 %v2441
  %2780 = vmatprep.subr.bf16.mxu0 %v2446
  %2781 = vmatpush1.bf16.msra.mxu0 %v2445
  %2782 = vmatprep.subr.bf16.mxu0 %v2450
  %2783 = vmatpush1.bf16.msra.mxu0 %v2449
  %2784 = vmatprep.subr.bf16.mxu0 %v2454
  %2785 = vmatpush1.bf16.msra.mxu0 %v2453
  %2786 = vmatprep.subr.bf16.mxu0 %v2458
  %2787 = vmatpush1.bf16.msra.mxu0 %v2457
  %2788 = vmatprep.subr.bf16.mxu0 %v2462
  %2789 = vmatpush1.bf16.msra.mxu0 %v2461
  %2790 = vmatprep.subr.bf16.mxu0 %v2466
  %2791 = vmatpush1.bf16.msra.mxu0 %v2465
  %2792 = vmatprep.mubr.bf16.mxu0 %v1759
  %2793 = vmatmul.mubr.bf16.gmra.mrb[0].mxu0 %v1758
  %v2794 = vpop.f32.mrb[0].mxu0
  %v2795 = vadd.f32 %v2632, %v2794
  %v2796 = vpop.f32.mrb[0].mxu0
  %v2797 = vadd.f32 %v2634, %v2796
  %v2798 = vpop.f32.mrb[0].mxu0
  %v2799 = vadd.f32 %v2636, %v2798
  %v2800 = vpop.f32.mrb[0].mxu0
  %v2801 = vadd.f32 %v2638, %v2800
  %2802 = vmatprep.mubr.bf16.mxu0 %v1763
  %2803 = vmatmul.mubr.bf16.gmra.mrb[0].mxu0 %v1762
  %v2804 = vpop.f32.mrb[0].mxu0
  %v2805 = vadd.f32 %v2642, %v2804
  %v2806 = vpop.f32.mrb[0].mxu0
  %v2807 = vadd.f32 %v2644, %v2806
  %v2808 = vpop.f32.mrb[0].mxu0
  %v2809 = vadd.f32 %v2646, %v2808
  %v2810 = vpop.f32.mrb[0].mxu0
  %v2811 = vadd.f32 %v2648, %v2810
  %2812 = vmatprep.mubr.bf16.mxu0 %v1767
  %2813 = vmatmul.mubr.bf16.gmra.mrb[0].mxu0 %v1766
  %v2814 = vpop.f32.mrb[0].mxu0
  %v2815 = vadd.f32 %v2652, %v2814
  %v2816 = vpop.f32.mrb[0].mxu0
  %v2817 = vadd.f32 %v2654, %v2816
  %v2818 = vpop.f32.mrb[0].mxu0
  %v2819 = vadd.f32 %v2656, %v2818
  %v2820 = vpop.f32.mrb[0].mxu0
  %v2821 = vadd.f32 %v2658, %v2820
  %2822 = vmatprep.mubr.bf16.mxu0 %v1771
  %2823 = vmatmul.mubr.bf16.gmra.mrb[0].mxu0 %v1770
  %v2824 = vpop.f32.mrb[0].mxu0
  %v2825 = vadd.f32 %v2662, %v2824
  %v2826 = vpop.f32.mrb[0].mxu0
  %v2827 = vadd.f32 %v2664, %v2826
  %v2828 = vpop.f32.mrb[0].mxu0
  %v2829 = vadd.f32 %v2666, %v2828
  %v2830 = vpop.f32.mrb[0].mxu0
  %v2831 = vadd.f32 %v2668, %v2830
  %2832 = vmatprep.mubr.bf16.mxu0 %v1775
  %2833 = vmatmul.mubr.bf16.gmra.mrb[0].mxu0 %v1774
  %v2834 = vpop.f32.mrb[0].mxu0
  %v2835 = vadd.f32 %v2672, %v2834
  %v2836 = vpop.f32.mrb[0].mxu0
  %v2837 = vadd.f32 %v2674, %v2836
  %v2838 = vpop.f32.mrb[0].mxu0
  %v2839 = vadd.f32 %v2676, %v2838
  %v2840 = vpop.f32.mrb[0].mxu0
  %v2841 = vadd.f32 %v2678, %v2840
  %2842 = vmatprep.mubr.bf16.mxu0 %v1779
  %2843 = vmatmul.mubr.bf16.gmra.mrb[0].mxu0 %v1778
  %v2844 = vpop.f32.mrb[0].mxu0
  %v2845 = vadd.f32 %v2682, %v2844
  %v2846 = vpop.f32.mrb[0].mxu0
  %v2847 = vadd.f32 %v2684, %v2846
  %v2848 = vpop.f32.mrb[0].mxu0
  %v2849 = vadd.f32 %v2686, %v2848
  %v2850 = vpop.f32.mrb[0].mxu0
  %v2851 = vadd.f32 %v2688, %v2850
  %2852 = vmatprep.mubr.bf16.mxu0 %v1783
  %2853 = vmatmul.mubr.bf16.gmra.mrb[0].mxu0 %v1782
  %v2854 = vpop.f32.mrb[0].mxu0
  %v2855 = vadd.f32 %v2692, %v2854
  %v2856 = vpop.f32.mrb[0].mxu0
  %v2857 = vadd.f32 %v2694, %v2856
  %v2858 = vpop.f32.mrb[0].mxu0
  %v2859 = vadd.f32 %v2696, %v2858
  %v2860 = vpop.f32.mrb[0].mxu0
  %v2861 = vadd.f32 %v2698, %v2860
  %2862 = vmatprep.mubr.bf16.mxu0 %v1787
  %2863 = vmatmul.mubr.bf16.gmra.mrb[0].mxu0 %v1786
  %v2864 = vpop.f32.mrb[0].mxu0
  %v2865 = vadd.f32 %v2702, %v2864
  %v2866 = vpop.f32.mrb[0].mxu0
  %v2867 = vadd.f32 %v2704, %v2866
  %v2868 = vpop.f32.mrb[0].mxu0
  %v2869 = vadd.f32 %v2706, %v2868
  %v2870 = vpop.f32.mrb[0].mxu0
  %v2871 = vadd.f32 %v2708, %v2870
  %2872 = vmatprep.mubr.bf16.mxu0 %v1791
  %2873 = vmatmul.mubr.bf16.gmra.mrb[0].mxu0 %v1790
  %v2874 = vpop.f32.mrb[0].mxu0
  %v2875 = vadd.f32 %v2712, %v2874
  %v2876 = vpop.f32.mrb[0].mxu0
  %v2877 = vadd.f32 %v2714, %v2876
  %v2878 = vpop.f32.mrb[0].mxu0
  %v2879 = vadd.f32 %v2716, %v2878
  %v2880 = vpop.f32.mrb[0].mxu0
  %v2881 = vadd.f32 %v2718, %v2880
  %2882 = vmatprep.mubr.bf16.mxu0 %v1795
  %2883 = vmatmul.mubr.bf16.gmra.mrb[0].mxu0 %v1794
  %v2884 = vpop.f32.mrb[0].mxu0
  %v2885 = vadd.f32 %v2722, %v2884
  %v2886 = vpop.f32.mrb[0].mxu0
  %v2887 = vadd.f32 %v2724, %v2886
  %v2888 = vpop.f32.mrb[0].mxu0
  %v2889 = vadd.f32 %v2726, %v2888
  %v2890 = vpop.f32.mrb[0].mxu0
  %v2891 = vadd.f32 %v2728, %v2890
  %2892 = vmatprep.mubr.bf16.mxu0 %v1799
  %2893 = vmatmul.mubr.bf16.gmra.mrb[0].mxu0 %v1798
  %v2894 = vpop.f32.mrb[0].mxu0
  %v2895 = vadd.f32 %v2732, %v2894
  %v2896 = vpop.f32.mrb[0].mxu0
  %v2897 = vadd.f32 %v2734, %v2896
  %v2898 = vpop.f32.mrb[0].mxu0
  %v2899 = vadd.f32 %v2736, %v2898
  %v2900 = vpop.f32.mrb[0].mxu0
  %v2901 = vadd.f32 %v2738, %v2900
  %2902 = vmatprep.mubr.bf16.mxu0 %v1803
  %2903 = vmatmul.mubr.bf16.gmra.mrb[0].mxu0 %v1802
  %v2904 = vpop.f32.mrb[0].mxu0
  %v2905 = vadd.f32 %v2742, %v2904
  %v2906 = vpop.f32.mrb[0].mxu0
  %v2907 = vadd.f32 %v2744, %v2906
  %v2908 = vpop.f32.mrb[0].mxu0
  %v2909 = vadd.f32 %v2746, %v2908
  %v2910 = vpop.f32.mrb[0].mxu0
  %v2911 = vadd.f32 %v2748, %v2910
  %2912 = vmatprep.mubr.bf16.mxu0 %v1807
  %2913 = vmatmul.mubr.bf16.gmra.mrb[0].mxu0 %v1806
  %v2914 = vpop.f32.mrb[0].mxu0
  %v2915 = vadd.f32 %v2752, %v2914
  %v2916 = vpop.f32.mrb[0].mxu0
  %v2917 = vadd.f32 %v2754, %v2916
  %v2918 = vpop.f32.mrb[0].mxu0
  %v2919 = vadd.f32 %v2756, %v2918
  %v2920 = vpop.f32.mrb[0].mxu0
  %v2921 = vadd.f32 %v2758, %v2920
  %2922 = vdwg.mxu0
  %2923 = vmatprep.subr.bf16.mxu0 %v2344
  %2924 = vmatpush1.bf16.msra.mxu0 %v2343
  %2925 = vmatprep.subr.bf16.mxu0 %v2348
  %2926 = vmatpush1.bf16.msra.mxu0 %v2347
  %2927 = vmatprep.subr.bf16.mxu0 %v2352
  %2928 = vmatpush1.bf16.msra.mxu0 %v2351
  %2929 = vmatprep.subr.bf16.mxu0 %v2356
  %2930 = vmatpush1.bf16.msra.mxu0 %v2355
  %2931 = vmatprep.subr.bf16.mxu0 %v2360
  %2932 = vmatpush1.bf16.msra.mxu0 %v2359
  %2933 = vmatprep.subr.bf16.mxu0 %v2364
  %2934 = vmatpush1.bf16.msra.mxu0 %v2363
  %2935 = vmatprep.subr.bf16.mxu0 %v2368
  %2936 = vmatpush1.bf16.msra.mxu0 %v2367
  %2937 = vmatprep.subr.bf16.mxu0 %v2372
  %2938 = vmatpush1.bf16.msra.mxu0 %v2371
  %2939 = vmatprep.subr.bf16.mxu0 %v2376
  %2940 = vmatpush1.bf16.msra.mxu0 %v2375
  %2941 = vmatprep.subr.bf16.mxu0 %v2380
  %2942 = vmatpush1.bf16.msra.mxu0 %v2379
  %2943 = vmatprep.subr.bf16.mxu0 %v2384
  %2944 = vmatpush1.bf16.msra.mxu0 %v2383
  %2945 = vmatprep.subr.bf16.mxu0 %v2388
  %2946 = vmatpush1.bf16.msra.mxu0 %v2387
  %2947 = vmatprep.subr.bf16.mxu0 %v2392
  %2948 = vmatpush1.bf16.msra.mxu0 %v2391
  %2949 = vmatprep.subr.bf16.mxu0 %v2396
  %2950 = vmatpush1.bf16.msra.mxu0 %v2395
  %2951 = vmatprep.subr.bf16.mxu0 %v2400
  %2952 = vmatpush1.bf16.msra.mxu0 %v2399
  %2953 = vmatprep.subr.bf16.mxu0 %v2404
  %2954 = vmatpush1.bf16.msra.mxu0 %v2403
  %2955 = vmatprep.mubr.bf16.mxu0 %v1757
  %2956 = vmatmul.mubr.bf16.gmra.mrb[0].mxu0 %v1756
  %v2957 = vpop.f32.mrb[0].mxu0
  %v2958 = vadd.f32 %v1948, %v2957
  %v2959 = vpop.f32.mrb[0].mxu0
  %v2960 = vadd.f32 %v1952, %v2959
  %v2961 = vpop.f32.mrb[0].mxu0
  %v2962 = vadd.f32 %v1948, %v2961
  %v2963 = vpop.f32.mrb[0].mxu0
  %v2964 = vadd.f32 %v1952, %v2963
  %2965 = vmatprep.mubr.bf16.mxu0 %v1761
  %2966 = vmatmul.mubr.bf16.gmra.mrb[0].mxu0 %v1760
  %v2967 = vpop.f32.mrb[0].mxu0
  %v2968 = vadd.f32 %v1948, %v2967
  %v2969 = vpop.f32.mrb[0].mxu0
  %v2970 = vadd.f32 %v1952, %v2969
  %v2971 = vpop.f32.mrb[0].mxu0
  %v2972 = vadd.f32 %v1948, %v2971
  %v2973 = vpop.f32.mrb[0].mxu0
  %v2974 = vadd.f32 %v1952, %v2973
  %2975 = vmatprep.mubr.bf16.mxu0 %v1765
  %2976 = vmatmul.mubr.bf16.gmra.mrb[0].mxu0 %v1764
  %v2977 = vpop.f32.mrb[0].mxu0
  %v2978 = vadd.f32 %v1948, %v2977
  %v2979 = vpop.f32.mrb[0].mxu0
  %v2980 = vadd.f32 %v1952, %v2979
  %v2981 = vpop.f32.mrb[0].mxu0
  %v2982 = vadd.f32 %v1948, %v2981
  %v2983 = vpop.f32.mrb[0].mxu0
  %v2984 = vadd.f32 %v1952, %v2983
  %2985 = vmatprep.mubr.bf16.mxu0 %v1769
  %2986 = vmatmul.mubr.bf16.gmra.mrb[0].mxu0 %v1768
  %v2987 = vpop.f32.mrb[0].mxu0
  %v2988 = vadd.f32 %v1948, %v2987
  %v2989 = vpop.f32.mrb[0].mxu0
  %v2990 = vadd.f32 %v1952, %v2989
  %v2991 = vpop.f32.mrb[0].mxu0
  %v2992 = vadd.f32 %v1948, %v2991
  %v2993 = vpop.f32.mrb[0].mxu0
  %v2994 = vadd.f32 %v1952, %v2993
  %2995 = vmatprep.mubr.bf16.mxu0 %v1773
  %2996 = vmatmul.mubr.bf16.gmra.mrb[0].mxu0 %v1772
  %v2997 = vpop.f32.mrb[0].mxu0
  %v2998 = vadd.f32 %v1948, %v2997
  %v2999 = vpop.f32.mrb[0].mxu0
  %v3000 = vadd.f32 %v1952, %v2999
  %v3001 = vpop.f32.mrb[0].mxu0
  %v3002 = vadd.f32 %v1948, %v3001
  %v3003 = vpop.f32.mrb[0].mxu0
  %v3004 = vadd.f32 %v1952, %v3003
  %3005 = vmatprep.mubr.bf16.mxu0 %v1777
  %3006 = vmatmul.mubr.bf16.gmra.mrb[0].mxu0 %v1776
  %v3007 = vpop.f32.mrb[0].mxu0
  %v3008 = vadd.f32 %v1948, %v3007
  %v3009 = vpop.f32.mrb[0].mxu0
  %v3010 = vadd.f32 %v1952, %v3009
  %v3011 = vpop.f32.mrb[0].mxu0
  %v3012 = vadd.f32 %v1948, %v3011
  %v3013 = vpop.f32.mrb[0].mxu0
  %v3014 = vadd.f32 %v1952, %v3013
  %3015 = vmatprep.mubr.bf16.mxu0 %v1781
  %3016 = vmatmul.mubr.bf16.gmra.mrb[0].mxu0 %v1780
  %v3017 = vpop.f32.mrb[0].mxu0
  %v3018 = vadd.f32 %v1948, %v3017
  %v3019 = vpop.f32.mrb[0].mxu0
  %v3020 = vadd.f32 %v1952, %v3019
  %v3021 = vpop.f32.mrb[0].mxu0
  %v3022 = vadd.f32 %v1948, %v3021
  %v3023 = vpop.f32.mrb[0].mxu0
  %v3024 = vadd.f32 %v1952, %v3023
  %3025 = vmatprep.mubr.bf16.mxu0 %v1785
  %3026 = vmatmul.mubr.bf16.gmra.mrb[0].mxu0 %v1784
  %v3027 = vpop.f32.mrb[0].mxu0
  %v3028 = vadd.f32 %v1948, %v3027
  %v3029 = vpop.f32.mrb[0].mxu0
  %v3030 = vadd.f32 %v1952, %v3029
  %v3031 = vpop.f32.mrb[0].mxu0
  %v3032 = vadd.f32 %v1948, %v3031
  %v3033 = vpop.f32.mrb[0].mxu0
  %v3034 = vadd.f32 %v1952, %v3033
  %3035 = vmatprep.mubr.bf16.mxu0 %v1789
  %3036 = vmatmul.mubr.bf16.gmra.mrb[0].mxu0 %v1788
  %v3037 = vpop.f32.mrb[0].mxu0
  %v3038 = vadd.f32 %v1948, %v3037
  %v3039 = vpop.f32.mrb[0].mxu0
  %v3040 = vadd.f32 %v1952, %v3039
  %v3041 = vpop.f32.mrb[0].mxu0
  %v3042 = vadd.f32 %v1948, %v3041
  %v3043 = vpop.f32.mrb[0].mxu0
  %v3044 = vadd.f32 %v1952, %v3043
  %3045 = vmatprep.mubr.bf16.mxu0 %v1793
  %3046 = vmatmul.mubr.bf16.gmra.mrb[0].mxu0 %v1792
  %v3047 = vpop.f32.mrb[0].mxu0
  %v3048 = vadd.f32 %v1948, %v3047
  %v3049 = vpop.f32.mrb[0].mxu0
  %v3050 = vadd.f32 %v1952, %v3049
  %v3051 = vpop.f32.mrb[0].mxu0
  %v3052 = vadd.f32 %v1948, %v3051
  %v3053 = vpop.f32.mrb[0].mxu0
  %v3054 = vadd.f32 %v1952, %v3053
  %3055 = vmatprep.mubr.bf16.mxu0 %v1797
  %3056 = vmatmul.mubr.bf16.gmra.mrb[0].mxu0 %v1796
  %v3057 = vpop.f32.mrb[0].mxu0
  %v3058 = vadd.f32 %v1948, %v3057
  %v3059 = vpop.f32.mrb[0].mxu0
  %v3060 = vadd.f32 %v1952, %v3059
  %v3061 = vpop.f32.mrb[0].mxu0
  %v3062 = vadd.f32 %v1948, %v3061
  %v3063 = vpop.f32.mrb[0].mxu0
  %v3064 = vadd.f32 %v1952, %v3063
  %3065 = vmatprep.mubr.bf16.mxu0 %v1801
  %3066 = vmatmul.mubr.bf16.gmra.mrb[0].mxu0 %v1800
  %v3067 = vpop.f32.mrb[0].mxu0
  %v3068 = vadd.f32 %v1948, %v3067
  %v3069 = vpop.f32.mrb[0].mxu0
  %v3070 = vadd.f32 %v1952, %v3069
  %v3071 = vpop.f32.mrb[0].mxu0
  %v3072 = vadd.f32 %v1948, %v3071
  %v3073 = vpop.f32.mrb[0].mxu0
  %v3074 = vadd.f32 %v1952, %v3073
  %3075 = vmatprep.mubr.bf16.mxu0 %v1805
  %3076 = vmatmul.mubr.bf16.gmra.mrb[0].mxu0 %v1804
  %v3077 = vpop.f32.mrb[0].mxu0
  %v3078 = vadd.f32 %v1948, %v3077
  %v3079 = vpop.f32.mrb[0].mxu0
  %v3080 = vadd.f32 %v1952, %v3079
  %v3081 = vpop.f32.mrb[0].mxu0
  %v3082 = vadd.f32 %v1948, %v3081
  %v3083 = vpop.f32.mrb[0].mxu0
  %v3084 = vadd.f32 %v1952, %v3083
  %3085 = vdwg.mxu0
  %3086 = vmatprep.subr.bf16.mxu0 %v2408
  %3087 = vmatpush1.bf16.msra.mxu0 %v2407
  %3088 = vmatprep.subr.bf16.mxu0 %v2412
  %3089 = vmatpush1.bf16.msra.mxu0 %v2411
  %3090 = vmatprep.subr.bf16.mxu0 %v2416
  %3091 = vmatpush1.bf16.msra.mxu0 %v2415
  %3092 = vmatprep.subr.bf16.mxu0 %v2420
  %3093 = vmatpush1.bf16.msra.mxu0 %v2419
  %3094 = vmatprep.subr.bf16.mxu0 %v2424
  %3095 = vmatpush1.bf16.msra.mxu0 %v2423
  %3096 = vmatprep.subr.bf16.mxu0 %v2428
  %3097 = vmatpush1.bf16.msra.mxu0 %v2427
  %3098 = vmatprep.subr.bf16.mxu0 %v2432
  %3099 = vmatpush1.bf16.msra.mxu0 %v2431
  %3100 = vmatprep.subr.bf16.mxu0 %v2436
  %3101 = vmatpush1.bf16.msra.mxu0 %v2435
  %3102 = vmatprep.subr.bf16.mxu0 %v2440
  %3103 = vmatpush1.bf16.msra.mxu0 %v2439
  %3104 = vmatprep.subr.bf16.mxu0 %v2444
  %3105 = vmatpush1.bf16.msra.mxu0 %v2443
  %3106 = vmatprep.subr.bf16.mxu0 %v2448
  %3107 = vmatpush1.bf16.msra.mxu0 %v2447
  %3108 = vmatprep.subr.bf16.mxu0 %v2452
  %3109 = vmatpush1.bf16.msra.mxu0 %v2451
  %3110 = vmatprep.subr.bf16.mxu0 %v2456
  %3111 = vmatpush1.bf16.msra.mxu0 %v2455
  %3112 = vmatprep.subr.bf16.mxu0 %v2460
  %3113 = vmatpush1.bf16.msra.mxu0 %v2459
  %3114 = vmatprep.subr.bf16.mxu0 %v2464
  %3115 = vmatpush1.bf16.msra.mxu0 %v2463
  %3116 = vmatprep.subr.bf16.mxu0 %v2468
  %3117 = vmatpush1.bf16.msra.mxu0 %v2467
  %3118 = vmatprep.mubr.bf16.mxu0 %v1759
  %3119 = vmatmul.mubr.bf16.gmra.mrb[0].mxu0 %v1758
  %v3120 = vpop.f32.mrb[0].mxu0
  %v3121 = vadd.f32 %v2958, %v3120
  %v3122 = vpop.f32.mrb[0].mxu0
  %v3123 = vadd.f32 %v2960, %v3122
  %v3124 = vpop.f32.mrb[0].mxu0
  %v3125 = vadd.f32 %v2962, %v3124
  %v3126 = vpop.f32.mrb[0].mxu0
  %v3127 = vadd.f32 %v2964, %v3126
  %3128 = vmatprep.mubr.bf16.mxu0 %v1763
  %3129 = vmatmul.mubr.bf16.gmra.mrb[0].mxu0 %v1762
  %v3130 = vpop.f32.mrb[0].mxu0
  %v3131 = vadd.f32 %v2968, %v3130
  %v3132 = vpop.f32.mrb[0].mxu0
  %v3133 = vadd.f32 %v2970, %v3132
  %v3134 = vpop.f32.mrb[0].mxu0
  %v3135 = vadd.f32 %v2972, %v3134
  %v3136 = vpop.f32.mrb[0].mxu0
  %v3137 = vadd.f32 %v2974, %v3136
  %3138 = vmatprep.mubr.bf16.mxu0 %v1767
  %3139 = vmatmul.mubr.bf16.gmra.mrb[0].mxu0 %v1766
  %v3140 = vpop.f32.mrb[0].mxu0
  %v3141 = vadd.f32 %v2978, %v3140
  %v3142 = vpop.f32.mrb[0].mxu0
  %v3143 = vadd.f32 %v2980, %v3142
  %v3144 = vpop.f32.mrb[0].mxu0
  %v3145 = vadd.f32 %v2982, %v3144
  %v3146 = vpop.f32.mrb[0].mxu0
  %v3147 = vadd.f32 %v2984, %v3146
  %3148 = vmatprep.mubr.bf16.mxu0 %v1771
  %3149 = vmatmul.mubr.bf16.gmra.mrb[0].mxu0 %v1770
  %v3150 = vpop.f32.mrb[0].mxu0
  %v3151 = vadd.f32 %v2988, %v3150
  %v3152 = vpop.f32.mrb[0].mxu0
  %v3153 = vadd.f32 %v2990, %v3152
  %v3154 = vpop.f32.mrb[0].mxu0
  %v3155 = vadd.f32 %v2992, %v3154
  %v3156 = vpop.f32.mrb[0].mxu0
  %v3157 = vadd.f32 %v2994, %v3156
  %3158 = vmatprep.mubr.bf16.mxu0 %v1775
  %3159 = vmatmul.mubr.bf16.gmra.mrb[0].mxu0 %v1774
  %v3160 = vpop.f32.mrb[0].mxu0
  %v3161 = vadd.f32 %v2998, %v3160
  %v3162 = vpop.f32.mrb[0].mxu0
  %v3163 = vadd.f32 %v3000, %v3162
  %v3164 = vpop.f32.mrb[0].mxu0
  %v3165 = vadd.f32 %v3002, %v3164
  %v3166 = vpop.f32.mrb[0].mxu0
  %v3167 = vadd.f32 %v3004, %v3166
  %3168 = vmatprep.mubr.bf16.mxu0 %v1779
  %3169 = vmatmul.mubr.bf16.gmra.mrb[0].mxu0 %v1778
  %v3170 = vpop.f32.mrb[0].mxu0
  %v3171 = vadd.f32 %v3008, %v3170
  %v3172 = vpop.f32.mrb[0].mxu0
  %v3173 = vadd.f32 %v3010, %v3172
  %v3174 = vpop.f32.mrb[0].mxu0
  %v3175 = vadd.f32 %v3012, %v3174
  %v3176 = vpop.f32.mrb[0].mxu0
  %v3177 = vadd.f32 %v3014, %v3176
  %3178 = vmatprep.mubr.bf16.mxu0 %v1783
  %3179 = vmatmul.mubr.bf16.gmra.mrb[0].mxu0 %v1782
  %v3180 = vpop.f32.mrb[0].mxu0
  %v3181 = vadd.f32 %v3018, %v3180
  %v3182 = vpop.f32.mrb[0].mxu0
  %v3183 = vadd.f32 %v3020, %v3182
  %v3184 = vpop.f32.mrb[0].mxu0
  %v3185 = vadd.f32 %v3022, %v3184
  %v3186 = vpop.f32.mrb[0].mxu0
  %v3187 = vadd.f32 %v3024, %v3186
  %3188 = vmatprep.mubr.bf16.mxu0 %v1787
  %3189 = vmatmul.mubr.bf16.gmra.mrb[0].mxu0 %v1786
  %v3190 = vpop.f32.mrb[0].mxu0
  %v3191 = vadd.f32 %v3028, %v3190
  %v3192 = vpop.f32.mrb[0].mxu0
  %v3193 = vadd.f32 %v3030, %v3192
  %v3194 = vpop.f32.mrb[0].mxu0
  %v3195 = vadd.f32 %v3032, %v3194
  %v3196 = vpop.f32.mrb[0].mxu0
  %v3197 = vadd.f32 %v3034, %v3196
  %3198 = vmatprep.mubr.bf16.mxu0 %v1791
  %3199 = vmatmul.mubr.bf16.gmra.mrb[0].mxu0 %v1790
  %v3200 = vpop.f32.mrb[0].mxu0
  %v3201 = vadd.f32 %v3038, %v3200
  %v3202 = vpop.f32.mrb[0].mxu0
  %v3203 = vadd.f32 %v3040, %v3202
  %v3204 = vpop.f32.mrb[0].mxu0
  %v3205 = vadd.f32 %v3042, %v3204
  %v3206 = vpop.f32.mrb[0].mxu0
  %v3207 = vadd.f32 %v3044, %v3206
  %3208 = vmatprep.mubr.bf16.mxu0 %v1795
  %3209 = vmatmul.mubr.bf16.gmra.mrb[0].mxu0 %v1794
  %v3210 = vpop.f32.mrb[0].mxu0
  %v3211 = vadd.f32 %v3048, %v3210
  %v3212 = vpop.f32.mrb[0].mxu0
  %v3213 = vadd.f32 %v3050, %v3212
  %v3214 = vpop.f32.mrb[0].mxu0
  %v3215 = vadd.f32 %v3052, %v3214
  %v3216 = vpop.f32.mrb[0].mxu0
  %v3217 = vadd.f32 %v3054, %v3216
  %3218 = vmatprep.mubr.bf16.mxu0 %v1799
  %3219 = vmatmul.mubr.bf16.gmra.mrb[0].mxu0 %v1798
  %v3220 = vpop.f32.mrb[0].mxu0
  %v3221 = vadd.f32 %v3058, %v3220
  %v3222 = vpop.f32.mrb[0].mxu0
  %v3223 = vadd.f32 %v3060, %v3222
  %v3224 = vpop.f32.mrb[0].mxu0
  %v3225 = vadd.f32 %v3062, %v3224
  %v3226 = vpop.f32.mrb[0].mxu0
  %v3227 = vadd.f32 %v3064, %v3226
  %3228 = vmatprep.mubr.bf16.mxu0 %v1803
  %3229 = vmatmul.mubr.bf16.gmra.mrb[0].mxu0 %v1802
  %v3230 = vpop.f32.mrb[0].mxu0
  %v3231 = vadd.f32 %v3068, %v3230
  %v3232 = vpop.f32.mrb[0].mxu0
  %v3233 = vadd.f32 %v3070, %v3232
  %v3234 = vpop.f32.mrb[0].mxu0
  %v3235 = vadd.f32 %v3072, %v3234
  %v3236 = vpop.f32.mrb[0].mxu0
  %v3237 = vadd.f32 %v3074, %v3236
  %3238 = vmatprep.mubr.bf16.mxu0 %v1807
  %3239 = vmatmul.mubr.bf16.gmra.mrb[0].mxu0 %v1806
  %v3240 = vpop.f32.mrb[0].mxu0
  %v3241 = vadd.f32 %v3078, %v3240
  %v3242 = vpop.f32.mrb[0].mxu0
  %v3243 = vadd.f32 %v3080, %v3242
  %v3244 = vpop.f32.mrb[0].mxu0
  %v3245 = vadd.f32 %v3082, %v3244
  %v3246 = vpop.f32.mrb[0].mxu0
  %v3247 = vadd.f32 %v3084, %v3246
  %3248 = vdwg.mxu0
  %3249 = vadd.xlane.f32.xlu0 %v2797
  %v3250 = vpop.xlane.xlu0 %3249
  %3251 = vadd.xlane.f32.xlu0 %v2801
  %v3252 = vpop.xlane.xlu0 %3251
  %3253 = vadd.xlane.f32.xlu0 %v2807
  %v3254 = vpop.xlane.xlu0 %3253
  %3255 = vadd.xlane.f32.xlu0 %v2811
  %v3256 = vpop.xlane.xlu0 %3255
  %3257 = vadd.xlane.f32.xlu0 %v2817
  %v3258 = vpop.xlane.xlu0 %3257
  %3259 = vadd.xlane.f32.xlu0 %v2821
  %v3260 = vpop.xlane.xlu0 %3259
  %3261 = vadd.xlane.f32.xlu0 %v2827
  %v3262 = vpop.xlane.xlu0 %3261
  %3263 = vadd.xlane.f32.xlu0 %v2831
  %v3264 = vpop.xlane.xlu0 %3263
  %3265 = vadd.xlane.f32.xlu0 %v2837
  %v3266 = vpop.xlane.xlu0 %3265
  %3267 = vadd.xlane.f32.xlu0 %v2841
  %v3268 = vpop.xlane.xlu0 %3267
  %3269 = vadd.xlane.f32.xlu0 %v2847
  %v3270 = vpop.xlane.xlu0 %3269
  %3271 = vadd.xlane.f32.xlu0 %v2851
  %v3272 = vpop.xlane.xlu0 %3271
  %3273 = vadd.xlane.f32.xlu0 %v2857
  %v3274 = vpop.xlane.xlu0 %3273
  %3275 = vadd.xlane.f32.xlu0 %v2861
  %v3276 = vpop.xlane.xlu0 %3275
  %3277 = vadd.xlane.f32.xlu0 %v2867
  %v3278 = vpop.xlane.xlu0 %3277
  %3279 = vadd.xlane.f32.xlu0 %v2871
  %v3280 = vpop.xlane.xlu0 %3279
  %3281 = vadd.xlane.f32.xlu0 %v2877
  %v3282 = vpop.xlane.xlu0 %3281
  %3283 = vadd.xlane.f32.xlu0 %v2881
  %v3284 = vpop.xlane.xlu0 %3283
  %3285 = vadd.xlane.f32.xlu0 %v2887
  %v3286 = vpop.xlane.xlu0 %3285
  %3287 = vadd.xlane.f32.xlu0 %v2891
  %v3288 = vpop.xlane.xlu0 %3287
  %3289 = vadd.xlane.f32.xlu0 %v2897
  %v3290 = vpop.xlane.xlu0 %3289
  %3291 = vadd.xlane.f32.xlu0 %v2901
  %v3292 = vpop.xlane.xlu0 %3291
  %3293 = vadd.xlane.f32.xlu0 %v2907
  %v3294 = vpop.xlane.xlu0 %3293
  %3295 = vadd.xlane.f32.xlu0 %v2911
  %v3296 = vpop.xlane.xlu0 %3295
  %3297 = vadd.xlane.f32.xlu0 %v2917
  %v3298 = vpop.xlane.xlu0 %3297
  %3299 = vadd.xlane.f32.xlu0 %v2921
  %v3300 = vpop.xlane.xlu0 %3299
  %v3301 = vmul.f32 %v3250, 0.125
  %v3302 = vmul.f32 %v3252, 0.125
  %v3303 = vmul.f32 %v3254, 0.125
  %v3304 = vmul.f32 %v3256, 0.125
  %v3305 = vmul.f32 %v3258, 0.125
  %v3306 = vmul.f32 %v3260, 0.125
  %v3307 = vmul.f32 %v3262, 0.125
  %v3308 = vmul.f32 %v3264, 0.125
  %v3309 = vmul.f32 %v3266, 0.125
  %v3310 = vmul.f32 %v3268, 0.125
  %v3311 = vmul.f32 %v3270, 0.125
  %v3312 = vmul.f32 %v3272, 0.125
  %v3313 = vmul.f32 %v3274, 0.125
  %v3314 = vmul.f32 %v3276, 0.125
  %v3315 = vmul.f32 %v3278, 0.125
  %v3316 = vmul.f32 %v3280, 0.125
  %v3317 = vmul.f32 %v3282, 0.125
  %v3318 = vmul.f32 %v3284, 0.125
  %v3319 = vmul.f32 %v3286, 0.125
  %v3320 = vmul.f32 %v3288, 0.125
  %v3321 = vmul.f32 %v3290, 0.125
  %v3322 = vmul.f32 %v3292, 0.125
  %v3323 = vmul.f32 %v3294, 0.125
  %v3324 = vmul.f32 %v3296, 0.125
  %v3325 = vmul.f32 %v3298, 0.125
  %v3326 = vmul.f32 %v3300, 0.125
  %v3327 = vadd.f32 %v2795, %v2797
  %v3328 = vadd.f32 %v2799, %v2801
  %v3329 = vadd.f32 %v2805, %v2807
  %v3330 = vadd.f32 %v2809, %v2811
  %v3331 = vadd.f32 %v2815, %v2817
  %v3332 = vadd.f32 %v2819, %v2821
  %v3333 = vadd.f32 %v2825, %v2827
  %v3334 = vadd.f32 %v2829, %v2831
  %v3335 = vadd.f32 %v2835, %v2837
  %v3336 = vadd.f32 %v2839, %v2841
  %v3337 = vadd.f32 %v2845, %v2847
  %v3338 = vadd.f32 %v2849, %v2851
  %v3339 = vadd.f32 %v2855, %v2857
  %v3340 = vadd.f32 %v2859, %v2861
  %v3341 = vadd.f32 %v2865, %v2867
  %v3342 = vadd.f32 %v2869, %v2871
  %v3343 = vadd.f32 %v2875, %v2877
  %v3344 = vadd.f32 %v2879, %v2881
  %v3345 = vadd.f32 %v2885, %v2887
  %v3346 = vadd.f32 %v2889, %v2891
  %v3347 = vadd.f32 %v2895, %v2897
  %v3348 = vadd.f32 %v2899, %v2901
  %v3349 = vadd.f32 %v2905, %v2907
  %v3350 = vadd.f32 %v2909, %v2911
  %v3351 = vadd.f32 %v2915, %v2917
  %v3352 = vadd.f32 %v2919, %v2921
  %v3353 = vsub.f32 %v3327, %v3301
  %v3354 = vsub.f32 %v3328, %v3302
  %v3355 = vsub.f32 %v3329, %v3303
  %v3356 = vsub.f32 %v3330, %v3304
  %v3357 = vsub.f32 %v3331, %v3305
  %v3358 = vsub.f32 %v3332, %v3306
  %v3359 = vsub.f32 %v3333, %v3307
  %v3360 = vsub.f32 %v3334, %v3308
  %v3361 = vsub.f32 %v3335, %v3309
  %v3362 = vsub.f32 %v3336, %v3310
  %v3363 = vsub.f32 %v3337, %v3311
  %v3364 = vsub.f32 %v3338, %v3312
  %v3365 = vsub.f32 %v3339, %v3313
  %v3366 = vsub.f32 %v3340, %v3314
  %v3367 = vsub.f32 %v3341, %v3315
  %v3368 = vsub.f32 %v3342, %v3316
  %v3369 = vsub.f32 %v3343, %v3317
  %v3370 = vsub.f32 %v3344, %v3318
  %v3371 = vsub.f32 %v3345, %v3319
  %v3372 = vsub.f32 %v3346, %v3320
  %v3373 = vsub.f32 %v3347, %v3321
  %v3374 = vsub.f32 %v3348, %v3322
  %v3375 = vsub.f32 %v3349, %v3323
  %v3376 = vsub.f32 %v3350, %v3324
  %v3377 = vsub.f32 %v3351, %v3325
  %v3378 = vsub.f32 %v3352, %v3326
  %3379 = vadd.xlane.f32.xlu0 %v3123
  %v3380 = vpop.xlane.xlu0 %3379
  %3381 = vadd.xlane.f32.xlu0 %v3127
  %v3382 = vpop.xlane.xlu0 %3381
  %3383 = vadd.xlane.f32.xlu0 %v3133
  %v3384 = vpop.xlane.xlu0 %3383
  %3385 = vadd.xlane.f32.xlu0 %v3137
  %v3386 = vpop.xlane.xlu0 %3385
  %3387 = vadd.xlane.f32.xlu0 %v3143
  %v3388 = vpop.xlane.xlu0 %3387
  %3389 = vadd.xlane.f32.xlu0 %v3147
  %v3390 = vpop.xlane.xlu0 %3389
  %3391 = vadd.xlane.f32.xlu0 %v3153
  %v3392 = vpop.xlane.xlu0 %3391
  %3393 = vadd.xlane.f32.xlu0 %v3157
  %v3394 = vpop.xlane.xlu0 %3393
  %3395 = vadd.xlane.f32.xlu0 %v3163
  %v3396 = vpop.xlane.xlu0 %3395
  %3397 = vadd.xlane.f32.xlu0 %v3167
  %v3398 = vpop.xlane.xlu0 %3397
  %3399 = vadd.xlane.f32.xlu0 %v3173
  %v3400 = vpop.xlane.xlu0 %3399
  %3401 = vadd.xlane.f32.xlu0 %v3177
  %v3402 = vpop.xlane.xlu0 %3401
  %3403 = vadd.xlane.f32.xlu0 %v3183
  %v3404 = vpop.xlane.xlu0 %3403
  %3405 = vadd.xlane.f32.xlu0 %v3187
  %v3406 = vpop.xlane.xlu0 %3405
  %3407 = vadd.xlane.f32.xlu0 %v3193
  %v3408 = vpop.xlane.xlu0 %3407
  %3409 = vadd.xlane.f32.xlu0 %v3197
  %v3410 = vpop.xlane.xlu0 %3409
  %3411 = vadd.xlane.f32.xlu0 %v3203
  %v3412 = vpop.xlane.xlu0 %3411
  %3413 = vadd.xlane.f32.xlu0 %v3207
  %v3414 = vpop.xlane.xlu0 %3413
  %3415 = vadd.xlane.f32.xlu0 %v3213
  %v3416 = vpop.xlane.xlu0 %3415
  %3417 = vadd.xlane.f32.xlu0 %v3217
  %v3418 = vpop.xlane.xlu0 %3417
  %3419 = vadd.xlane.f32.xlu0 %v3223
  %v3420 = vpop.xlane.xlu0 %3419
  %3421 = vadd.xlane.f32.xlu0 %v3227
  %v3422 = vpop.xlane.xlu0 %3421
  %3423 = vadd.xlane.f32.xlu0 %v3233
  %v3424 = vpop.xlane.xlu0 %3423
  %3425 = vadd.xlane.f32.xlu0 %v3237
  %v3426 = vpop.xlane.xlu0 %3425
  %3427 = vadd.xlane.f32.xlu0 %v3243
  %v3428 = vpop.xlane.xlu0 %3427
  %3429 = vadd.xlane.f32.xlu0 %v3247
  %v3430 = vpop.xlane.xlu0 %3429
  %v3431 = vmul.f32 %v3380, 0.125
  %v3432 = vmul.f32 %v3382, 0.125
  %v3433 = vmul.f32 %v3384, 0.125
  %v3434 = vmul.f32 %v3386, 0.125
  %v3435 = vmul.f32 %v3388, 0.125
  %v3436 = vmul.f32 %v3390, 0.125
  %v3437 = vmul.f32 %v3392, 0.125
  %v3438 = vmul.f32 %v3394, 0.125
  %v3439 = vmul.f32 %v3396, 0.125
  %v3440 = vmul.f32 %v3398, 0.125
  %v3441 = vmul.f32 %v3400, 0.125
  %v3442 = vmul.f32 %v3402, 0.125
  %v3443 = vmul.f32 %v3404, 0.125
  %v3444 = vmul.f32 %v3406, 0.125
  %v3445 = vmul.f32 %v3408, 0.125
  %v3446 = vmul.f32 %v3410, 0.125
  %v3447 = vmul.f32 %v3412, 0.125
  %v3448 = vmul.f32 %v3414, 0.125
  %v3449 = vmul.f32 %v3416, 0.125
  %v3450 = vmul.f32 %v3418, 0.125
  %v3451 = vmul.f32 %v3420, 0.125
  %v3452 = vmul.f32 %v3422, 0.125
  %v3453 = vmul.f32 %v3424, 0.125
  %v3454 = vmul.f32 %v3426, 0.125
  %v3455 = vmul.f32 %v3428, 0.125
  %v3456 = vmul.f32 %v3430, 0.125
  %v3457 = vadd.f32 %v3121, %v3123
  %v3458 = vadd.f32 %v3125, %v3127
  %v3459 = vadd.f32 %v3131, %v3133
  %v3460 = vadd.f32 %v3135, %v3137
  %v3461 = vadd.f32 %v3141, %v3143
  %v3462 = vadd.f32 %v3145, %v3147
  %v3463 = vadd.f32 %v3151, %v3153
  %v3464 = vadd.f32 %v3155, %v3157
  %v3465 = vadd.f32 %v3161, %v3163
  %v3466 = vadd.f32 %v3165, %v3167
  %v3467 = vadd.f32 %v3171, %v3173
  %v3468 = vadd.f32 %v3175, %v3177
  %v3469 = vadd.f32 %v3181, %v3183
  %v3470 = vadd.f32 %v3185, %v3187
  %v3471 = vadd.f32 %v3191, %v3193
  %v3472 = vadd.f32 %v3195, %v3197
  %v3473 = vadd.f32 %v3201, %v3203
  %v3474 = vadd.f32 %v3205, %v3207
  %v3475 = vadd.f32 %v3211, %v3213
  %v3476 = vadd.f32 %v3215, %v3217
  %v3477 = vadd.f32 %v3221, %v3223
  %v3478 = vadd.f32 %v3225, %v3227
  %v3479 = vadd.f32 %v3231, %v3233
  %v3480 = vadd.f32 %v3235, %v3237
  %v3481 = vadd.f32 %v3241, %v3243
  %v3482 = vadd.f32 %v3245, %v3247
  %v3483 = vsub.f32 %v3457, %v3431
  %v3484 = vsub.f32 %v3458, %v3432
  %v3485 = vsub.f32 %v3459, %v3433
  %v3486 = vsub.f32 %v3460, %v3434
  %v3487 = vsub.f32 %v3461, %v3435
  %v3488 = vsub.f32 %v3462, %v3436
  %v3489 = vsub.f32 %v3463, %v3437
  %v3490 = vsub.f32 %v3464, %v3438
  %v3491 = vsub.f32 %v3465, %v3439
  %v3492 = vsub.f32 %v3466, %v3440
  %v3493 = vsub.f32 %v3467, %v3441
  %v3494 = vsub.f32 %v3468, %v3442
  %v3495 = vsub.f32 %v3469, %v3443
  %v3496 = vsub.f32 %v3470, %v3444
  %v3497 = vsub.f32 %v3471, %v3445
  %v3498 = vsub.f32 %v3472, %v3446
  %v3499 = vsub.f32 %v3473, %v3447
  %v3500 = vsub.f32 %v3474, %v3448
  %v3501 = vsub.f32 %v3475, %v3449
  %v3502 = vsub.f32 %v3476, %v3450
  %v3503 = vsub.f32 %v3477, %v3451
  %v3504 = vsub.f32 %v3478, %v3452
  %v3505 = vsub.f32 %v3479, %v3453
  %v3506 = vsub.f32 %v3480, %v3454
  %v3507 = vsub.f32 %v3481, %v3455
  %v3508 = vsub.f32 %v3482, %v3456
  %v3509 = vmin.f32 %v3353, %v3483
  %v3510 = vmin.f32 %v3354, %v3484
  %v3511 = vmin.f32 %v3355, %v3485
  %v3512 = vmin.f32 %v3356, %v3486
  %v3513 = vmin.f32 %v3357, %v3487
  %v3514 = vmin.f32 %v3358, %v3488
  %v3515 = vmin.f32 %v3359, %v3489
  %v3516 = vmin.f32 %v3360, %v3490
  %v3517 = vmin.f32 %v3361, %v3491
  %v3518 = vmin.f32 %v3362, %v3492
  %v3519 = vmin.f32 %v3363, %v3493
  %v3520 = vmin.f32 %v3364, %v3494
  %v3521 = vmin.f32 %v3365, %v3495
  %v3522 = vmin.f32 %v3366, %v3496
  %v3523 = vmin.f32 %v3367, %v3497
  %v3524 = vmin.f32 %v3368, %v3498
  %v3525 = vmin.f32 %v3369, %v3499
  %v3526 = vmin.f32 %v3370, %v3500
  %v3527 = vmin.f32 %v3371, %v3501
  %v3528 = vmin.f32 %v3372, %v3502
  %v3529 = vmin.f32 %v3373, %v3503
  %v3530 = vmin.f32 %v3374, %v3504
  %v3531 = vmin.f32 %v3375, %v3505
  %v3532 = vmin.f32 %v3376, %v3506
  %v3533 = vmin.f32 %v3377, %v3507
  %v3534 = vmin.f32 %v3378, %v3508
  %3535 = vst [vmem:[%s6] sm:$0xff] %v3509
  %3536 = vst [vmem:[%s6 + $0x8] sm:$0xff] %v3510
  %3537 = vst [vmem:[%s6 + $0x10] sm:$0xff] %v3511
  %3538 = vst [vmem:[%s6 + $0x18] sm:$0xff] %v3512
  %3539 = vst [vmem:[%s6 + $0x20] sm:$0xff] %v3513
  %3540 = vst [vmem:[%s6 + $0x28] sm:$0xff] %v3514
  %3541 = vst [vmem:[%s6 + $0x30] sm:$0xff] %v3515
  %3542 = vst [vmem:[%s6 + $0x38] sm:$0xff] %v3516
  %3543 = vst [vmem:[%s6 + $0x40] sm:$0xff] %v3517
  %3544 = vst [vmem:[%s6 + $0x48] sm:$0xff] %v3518
  %3545 = vst [vmem:[%s6 + $0x50] sm:$0xff] %v3519
  %3546 = vst [vmem:[%s6 + $0x58] sm:$0xff] %v3520
  %3547 = vst [vmem:[%s6 + $0x60] sm:$0xff] %v3521
  %3548 = vst [vmem:[%s6 + $0x68] sm:$0xff] %v3522
  %3549 = vst [vmem:[%s6 + $0x70] sm:$0xff] %v3523
  %3550 = vst [vmem:[%s6 + $0x78] sm:$0xff] %v3524
  %3551 = vst [vmem:[%s6 + $0x80] sm:$0xff] %v3525
  %3552 = vst [vmem:[%s6 + $0x88] sm:$0xff] %v3526
  %3553 = vst [vmem:[%s6 + $0x90] sm:$0xff] %v3527
  %3554 = vst [vmem:[%s6 + $0x98] sm:$0xff] %v3528
  %3555 = vst [vmem:[%s6 + $0xa0] sm:$0xff] %v3529
  %3556 = vst [vmem:[%s6 + $0xa8] sm:$0xff] %v3530
  %3557 = vst [vmem:[%s6 + $0xb0] sm:$0xff] %v3531
  %3558 = vst [vmem:[%s6 + $0xb8] sm:$0xff] %v3532
  %3559 = vst [vmem:[%s6 + $0xc0] sm:$0xff] %v3533
  %3560 = vst [vmem:[%s6 + $0xc8] sm:$0xff] %v3534
  // Predicated region
  $region26: #{_lambda_.1} parent=0 // pred_check
    _
  $region27: #{_lambda_.1} parent=0 // pred_check_branch
    %3562 = sbr.rel (0) target = $region29
  $region28: #{_lambda_.1} parent=0 // pred_region
    _
  $region29: #{_lambda_.1} parent=0 // pred_fallthru
    _
  // Predicated region
  $region30: #{_lambda_.1} parent=0 // pred_check
    _
  $region31: #{_lambda_.1} parent=0 // pred_check_branch
    %3564 = sbr.rel (0) target = $region33
  $region32: #{_lambda_.1} parent=0 // pred_region
    _
  $region33: #{_lambda_.1} parent=0 // pred_fallthru
    _

</llo_original>
